<compile_context>
chip_gen: v5e
topology: v5e:2x2
jax: 0.10.0
libtpu: 0.0.40
codegen_flags: <defaults>
</compile_context>

<pallas_src>
import functools

import jax
import jax.numpy as jnp
from jax.experimental import pallas as pl
from jax.experimental.pallas import tpu as pltpu


# ---------------------------------------------------------------------------
# fused kernel
# ---------------------------------------------------------------------------
def fused_cig_kernel(x_ref, geo_ref, src_ref, dst_ref,
                     ew1_ref, ew2_ref, eb_ref, eln_ref,
                     wsq_ref, bsq_ref, wdb_ref, bdb_ref, lln_ref,
                     w1_ref, b1_ref, w2_ref, b2_ref,
                     pa_ref, pb_ref,
                     o_ref, *, d_real):
    N, DP = x_ref.shape
    E = src_ref.shape[0]
    H = pa_ref.shape[1]

    inv_d = jnp.float32(1.0 / d_real)
    lane = jax.lax.broadcasted_iota(jnp.int32, (1, DP), 1)
    mask = (lane < d_real).astype(jnp.float32)            # (1, DP) real-lane mask

    def ln(x, g, b):
        # masked LayerNorm: statistics over the d_real real lanes only
        xm = x * mask
        mu = jnp.sum(xm, axis=-1, keepdims=True) * inv_d
        xc = (x - mu) * mask
        var = jnp.sum(xc * xc, axis=-1, keepdims=True) * inv_d
        return xc * jax.lax.rsqrt(var + jnp.float32(1e-5)) * g + b

    def mmw(a, w):  # weight matmul: bf16 MXU operands, f32 accumulate
        return jnp.dot(a.astype(jnp.bfloat16), w, preferred_element_type=jnp.float32)

    def mm(a, b):   # gather/scatter/pooling matmuls stay f32
        return jnp.dot(a, b, preferred_element_type=jnp.float32)

    # ---- one-hot incidence built in-register from int32 edge indices -------
    nid = jax.lax.broadcasted_iota(jnp.int32, (E, N), 1)
    S = (nid == src_ref[...]).astype(jnp.float32)          # (E, N) src one-hot
    T = (nid == dst_ref[...]).astype(jnp.float32)          # (E, N) dst one-hot

    # ---- edge geometry glue (gathers + cos/sin) -----------------------------
    geo = geo_ref[...]                                     # (N, DP): pos(2)|rmat(4)|angle(1)
    gs = mm(S, geo)                                        # per-edge src geometry
    gt = mm(T, geo)                                        # per-edge dst geometry
    rel = gs - gt
    rx, ry = rel[:, 0:1], rel[:, 1:2]                      # rel_pos
    m00, m01 = gt[:, 2:3], gt[:, 3:4]                      # rotate_mat[dst]
    m10, m11 = gt[:, 4:5], gt[:, 5:6]
    rot = jnp.concatenate([rx * m00 + ry * m10, rx * m01 + ry * m11], axis=-1)  # (E, 2)
    th = rel[:, 6:7]                                       # rel_theta
    cs = jnp.concatenate([jnp.cos(th), jnp.sin(th)], axis=-1)                   # (E, 2)

    # ---- edge embedding: edge_encoder + rel_embed + aggr_embed --------------
    e = mmw(rot, ew1_ref[0]) + eb_ref[0]
    e = jnp.maximum(ln(e, eln_ref[0], eln_ref[1]), 0.0)
    e = mmw(e, ew2_ref[0]) + eb_ref[1]

    r = mmw(cs, ew1_ref[1]) + eb_ref[2]
    r = jnp.maximum(ln(r, eln_ref[2], eln_ref[3]), 0.0)
    r = mmw(r, ew2_ref[1]) + eb_ref[3]

    a = jnp.maximum(ln(e + r, eln_ref[4], eln_ref[5]), 0.0)
    ee = ln(mmw(a, ew2_ref[2]) + eb_ref[4], eln_ref[6], eln_ref[7])             # (E, DP)

    # ---- CIGLayer (only the last layer affects the module output) -----------
    x = x_ref[...]                                         # (N, DP) alg_embed (padded)
    h = ln(x, lln_ref[0], lln_ref[1])                      # norm1(x)
    xi = mm(T, h)                                          # h[dst]
    xj = mm(S, h)                                          # h[src]

    q = mmw(xi, wsq_ref[0]) + bsq_ref[0]                   # lin_q_node
    kvj = mmw(xj, wdb_ref[0]) + bdb_ref[0]                 # (E, 2DP): [k_node | v_node]
    kve = mmw(ee, wdb_ref[1]) + bdb_ref[1]                 # (E, 2DP): [k_edge | v_edge]
    shh = mmw(h, wdb_ref[2]) + bdb_ref[2]                  # (N, 2DP): [lin_self | lin_hh]

    kn, vn = kvj[:, :DP], kvj[:, DP:]
    ke, ve = kve[:, :DP], kve[:, DP:]

    alpha = mm(q * (kn + ke), pa_ref[...])                 # (E, H); 1/sqrt(dh) folded in pa

    # segment (per-destination) softmax with per-segment max (2-D ops only)
    neg = jnp.float32(-1e30)
    seg = T > 0.5
    m_cols = []
    for head in range(H):                                  # H is small & static
        a_h = alpha[:, head:head + 1]                      # (E, 1)
        m_n = jnp.max(jnp.where(seg, a_h, neg), axis=0, keepdims=True)          # (1, N)
        m_cols.append(jnp.max(jnp.where(seg, m_n, neg), axis=1, keepdims=True))  # (E, 1)
    m_e = jnp.concatenate(m_cols, axis=1)                  # (E, H) per-edge segment max
    p = jnp.exp(alpha - m_e)
    denom_e = mm(T, mm(T.T, p))                            # segment-sum, scattered back
    attn = p * pl.reciprocal(denom_e + jnp.float32(1e-16), approx=True)
    attn_full = mm(attn, pb_ref[...])                      # (E, DP) per-head broadcast

    msg = (vn + ve) * attn_full                            # message()
    agg = mm(T.T, msg)                                     # (N, DP) aggr='add'

    # update(): gated mix with self transform
    gate = jax.nn.sigmoid(mmw(agg, wsq_ref[1]) + bsq_ref[1] + shh[:, DP:])
    upd = agg + gate * (shh[:, :DP] - agg)
    x1 = x + mmw(upd, wsq_ref[2]) + bsq_ref[2]             # out_proj + residual

    # _ff_block on norm2(x1)
    h2 = ln(x1, lln_ref[2], lln_ref[3])
    ff = jnp.maximum(mmw(h2, w1_ref[...]) + b1_ref[...], 0.0)
    x2 = x1 + mmw(ff, w2_ref[...]) + b2_ref[...]

    # module-level final LayerNorm
    o_ref[...] = ln(x2, lln_ref[4], lln_ref[5])


# ---------------------------------------------------------------------------
# pallas_call wrapper (small problem: everything resident in VMEM, no grid)
# NB: at realistic graph sizes add an edge-tile grid + dimension_semantics so
#     v7x's two TensorCores / 64 MiB VMEM are used; unnecessary at this size.
# ---------------------------------------------------------------------------
def run_fused(x_pad, geo, src, dst, packed, *, d_real):
    N, DP = x_pad.shape
    args = (x_pad, geo, src, dst,
            packed["ew1"], packed["ew2"], packed["eb"], packed["eln"],
            packed["wsq"], packed["bsq"], packed["wdb"], packed["bdb"], packed["lln"],
            packed["w1"], packed["b1"], packed["w2"], packed["b2"],
            packed["pa"], packed["pb"])
    return pl.pallas_call(
        functools.partial(fused_cig_kernel, d_real=d_real),
        out_shape=jax.ShapeDtypeStruct((N, DP), jnp.float32),
        in_specs=[pl.BlockSpec(memory_space=pltpu.MemorySpace.VMEM) for _ in args],
        out_specs=pl.BlockSpec(memory_space=pltpu.MemorySpace.VMEM),
    )(*args)


# ---------------------------------------------------------------------------
# parameter init (mirrors the nn.Module parameters, real shapes)
# ---------------------------------------------------------------------------
def init_edge_params(key, D):
    ks = jax.random.split(key, 5)
    n = lambda k, s: jax.random.normal(k, s, jnp.float32) * 0.02
    z = lambda s: jnp.zeros(s, jnp.float32)
    return dict(
        We1=n(ks[0], (2, D)), be1=z((D,)), We2=n(ks[1], (D, D)), be2=z((D,)),
        Wr1=n(ks[2], (2, D)), br1=z((D,)), Wr2=n(ks[3], (D, D)), br2=z((D,)),
        Wa=n(ks[4], (D, D)), ba=z((D,)),
        ln_e_g=jnp.ones((D,)), ln_e_b=z((D,)),
        ln_r_g=jnp.ones((D,)), ln_r_b=z((D,)),
        ln_a1_g=jnp.ones((D,)), ln_a1_b=z((D,)),
        ln_a2_g=jnp.ones((D,)), ln_a2_b=z((D,)),
    )


def init_cig_layer_params(key, D):
    ks = jax.random.split(key, 11)
    n = lambda k, s: jax.random.normal(k, s, jnp.float32) * 0.02
    z = lambda s: jnp.zeros(s, jnp.float32)
    return dict(
        Wq=n(ks[0], (D, D)), bq=z((D,)), Wkn=n(ks[1], (D, D)), bkn=z((D,)),
        Wke=n(ks[2], (D, D)), bke=z((D,)), Wvn=n(ks[3], (D, D)), bvn=z((D,)),
        Wve=n(ks[4], (D, D)), bve=z((D,)), Wself=n(ks[5], (D, D)), bself=z((D,)),
        Wih=n(ks[6], (D, D)), bih=z((D,)), Whh=n(ks[7], (D, D)), bhh=z((D,)),
        Wout=n(ks[8], (D, D)), bout=z((D,)),
        W1=n(ks[9], (D, 4 * D)), b1=z((4 * D,)),
        W2=n(ks[10], (4 * D, D)), b2=z((D,)),
        ln1_g=jnp.ones((D,)), ln1_b=z((D,)),
        ln2_g=jnp.ones((D,)), ln2_b=z((D,)),
    )


# ---------------------------------------------------------------------------
# pack/pad params to 128-lane, bf16-weight kernel layout
# ---------------------------------------------------------------------------
def _pad_mat(w, rows, cols, dtype):
    out = jnp.zeros((rows, cols), dtype)
    return out.at[: w.shape[0], : w.shape[1]].set(w.astype(dtype))


def _pad_vec(v, cols):
    out = jnp.zeros((1, cols), jnp.float32)
    return out.at[0, : v.shape[0]].set(v.astype(jnp.float32))


def pack_params(params, D, DP, H):
    wdt = jnp.bfloat16
    ep = params["edge"]
    lp = params["layers"][-1]   # PyTorch forward overwrites x each layer -> last layer only

    ew1 = jnp.stack([_pad_mat(ep["We1"], 2, DP, wdt), _pad_mat(ep["Wr1"], 2, DP, wdt)])
    ew2 = jnp.stack([_pad_mat(ep[k], DP, DP, wdt) for k in ("We2", "Wr2", "Wa")])
    eb = jnp.stack([_pad_vec(ep[k], DP) for k in ("be1", "be2", "br1", "br2", "ba")])
    eln = jnp.stack([_pad_vec(ep[k], DP) for k in
                     ("ln_e_g", "ln_e_b", "ln_r_g", "ln_r_b",
                      "ln_a1_g", "ln_a1_b", "ln_a2_g", "ln_a2_b")])

    wsq = jnp.stack([_pad_mat(lp[k], DP, DP, wdt) for k in ("Wq", "Wih", "Wout")])
    bsq = jnp.stack([_pad_vec(lp[k], DP) for k in ("bq", "bih", "bout")])

    def dbl_w(wa, wb):
        out = jnp.zeros((DP, 2 * DP), wdt)
        out = out.at[: wa.shape[0], : wa.shape[1]].set(wa.astype(wdt))
        out = out.at[: wb.shape[0], DP: DP + wb.shape[1]].set(wb.astype(wdt))
        return out

    def dbl_b(ba, bb):
        out = jnp.zeros((1, 2 * DP), jnp.float32)
        out = out.at[0, : ba.shape[0]].set(ba.astype(jnp.float32))
        out = out.at[0, DP: DP + bb.shape[0]].set(bb.astype(jnp.float32))
        return out

    wdb = jnp.stack([dbl_w(lp["Wkn"], lp["Wvn"]),
                     dbl_w(lp["Wke"], lp["Wve"]),
                     dbl_w(lp["Wself"], lp["Whh"])])
    bdb = jnp.stack([dbl_b(lp["bkn"], lp["bvn"]),
                     dbl_b(lp["bke"], lp["bve"]),
                     dbl_b(lp["bself"], lp["bhh"])])

    lln = jnp.stack([_pad_vec(lp["ln1_g"], DP), _pad_vec(lp["ln1_b"], DP),
                     _pad_vec(lp["ln2_g"], DP), _pad_vec(lp["ln2_b"], DP),
                     _pad_vec(params["norm_g"], DP), _pad_vec(params["norm_b"], DP)])

    w1 = _pad_mat(lp["W1"], DP, lp["W1"].shape[1], wdt)
    b1 = _pad_vec(lp["b1"], lp["b1"].shape[0])
    w2 = _pad_mat(lp["W2"], lp["W2"].shape[0], DP, wdt)
    b2 = _pad_vec(lp["b2"], DP)

    dh = D // H
    dl = jnp.arange(DP)
    sel = (dl[:, None] < D) & ((dl[:, None] // dh) == jnp.arange(H)[None, :])
    pa = sel.astype(jnp.float32) / float(dh) ** 0.5        # (DP, H) pooling, 1/scale folded
    pb = sel.astype(jnp.float32).T                         # (H, DP) per-head broadcast back

    return dict(ew1=ew1, ew2=ew2, eb=eb, eln=eln, wsq=wsq, bsq=bsq,
                wdb=wdb, bdb=bdb, lln=lln, w1=w1, b1=b1, w2=w2, b2=b2, pa=pa, pb=pb)


# ---------------------------------------------------------------------------
# full module forward
# ---------------------------------------------------------------------------
def cooperative_interaction_subgraph(alg_embed, positions, rotate_mat, rotate_angles,
                                     edge_index, params, *, historical_steps, num_heads):
    N, D = alg_embed.shape
    assert D % num_heads == 0
    DP = ((D + 127) // 128) * 128                          # lane-dense feature width

    src = edge_index[0].astype(jnp.int32).reshape(-1, 1)   # (E, 1)
    dst = edge_index[1].astype(jnp.int32).reshape(-1, 1)

    # per-node geometry packed lane-dense: [pos_x, pos_y, m00, m01, m10, m11, angle, 0...]
    pos_last = positions[:, historical_steps - 1, :]
    geo = jnp.zeros((N, DP), jnp.float32)
    geo = geo.at[:, 0:2].set(pos_last.astype(jnp.float32))
    geo = geo.at[:, 2:6].set(rotate_mat.reshape(N, 4).astype(jnp.float32))
    geo = geo.at[:, 6].set(rotate_angles.astype(jnp.float32))

    x_pad = jnp.zeros((N, DP), jnp.float32).at[:, :D].set(alg_embed.astype(jnp.float32))

    packed = pack_params(params, D, DP, num_heads)
    out = run_fused(x_pad, geo, src, dst, packed, d_real=D)
    return out[:, :D]


# ---------------------------------------------------------------------------
if __name__ == "__main__":
    HIST = 8          # historical_steps
    D = 32            # embed_dim
    H = 8             # num_heads
    LAYERS = 3
    N = 8             # nodes
    E = 16            # edges (post mask/subgraph filtering, which is host-side glue)

    key = jax.random.PRNGKey(0)
    k_in, k_pos, k_ang, k_edge, k_par = jax.random.split(key, 5)

    alg_embed = jax.random.normal(k_in, (N, D), jnp.float32)
    positions = jax.random.normal(k_pos, (N, HIST, 2), jnp.float32)
    rotate_angles = jax.random.uniform(k_ang, (N,), jnp.float32, -3.14, 3.14)
    c, s = jnp.cos(rotate_angles), jnp.sin(rotate_angles)
    rotate_mat = jnp.stack(
        [jnp.stack([c, -s], axis=-1), jnp.stack([s, c], axis=-1)], axis=-2)  # (N, 2, 2)

    src = jax.random.randint(k_edge, (E,), 0, N)
    dst = (src + 1 + jax.random.randint(jax.random.fold_in(k_edge, 1), (E,), 0, N - 1)) % N
    edge_index = jnp.stack([src, dst], axis=0)

    kp = jax.random.split(k_par, LAYERS + 1)
    params = dict(
        edge=init_edge_params(kp[0], D),
        layers=[init_cig_layer_params(kp[i + 1], D) for i in range(LAYERS)],
        norm_g=jnp.ones((D,), jnp.float32),
        norm_b=jnp.zeros((D,), jnp.float32),
    )

    fwd = jax.jit(functools.partial(cooperative_interaction_subgraph,
                                    historical_steps=HIST, num_heads=H))
    out = fwd(alg_embed, positions, rotate_mat, rotate_angles, edge_index, params)
    out = jax.block_until_ready(out)

    assert out.shape == (N, D)
    assert bool(jnp.all(jnp.isfinite(out)))
    print("KERNEL_OK")
</pallas_src>

<mosaic_0001>
module attributes {stable_mosaic.version = 11 : i64} {
  func.func @fused_cig_kernel(%arg0: memref<8x128xf32, #tpu.memory_space<vmem>>, %arg1: memref<8x128xf32, #tpu.memory_space<vmem>>, %arg2: memref<16x1xi32, #tpu.memory_space<vmem>>, %arg3: memref<16x1xi32, #tpu.memory_space<vmem>>, %arg4: memref<2x2x128xbf16, #tpu.memory_space<vmem>>, %arg5: memref<3x128x128xbf16, #tpu.memory_space<vmem>>, %arg6: memref<5x1x128xf32, #tpu.memory_space<vmem>>, %arg7: memref<8x1x128xf32, #tpu.memory_space<vmem>>, %arg8: memref<3x128x128xbf16, #tpu.memory_space<vmem>>, %arg9: memref<3x1x128xf32, #tpu.memory_space<vmem>>, %arg10: memref<3x128x256xbf16, #tpu.memory_space<vmem>>, %arg11: memref<3x1x256xf32, #tpu.memory_space<vmem>>, %arg12: memref<6x1x128xf32, #tpu.memory_space<vmem>>, %arg13: memref<128x128xbf16, #tpu.memory_space<vmem>>, %arg14: memref<1x128xf32, #tpu.memory_space<vmem>>, %arg15: memref<128x128xbf16, #tpu.memory_space<vmem>>, %arg16: memref<1x128xf32, #tpu.memory_space<vmem>>, %arg17: memref<128x8xf32, #tpu.memory_space<vmem>>, %arg18: memref<8x128xf32, #tpu.memory_space<vmem>>, %arg19: memref<8x128xf32, #tpu.memory_space<vmem>>) attributes {dimension_semantics = [], scalar_prefetch = 0 : i64, scratch_operands = 0 : i64, tpu.core_type = #tpu.core_type<tc>} {
    %0 = tpu.iota {dimensions = array<i32: 1>} : vector<1x128xi32>
    %c32_i32 = arith.constant 32 : i32
    %1 = vector.broadcast %c32_i32 : i32 to vector<1x128xi32>
    %2 = arith.cmpi slt, %0, %1 : vector<1x128xi32>
    %3 = arith.extui %2 : vector<1x128xi1> to vector<1x128xi32>
    %4 = arith.sitofp %3 : vector<1x128xi32> to vector<1x128xf32>
    %5 = tpu.iota {dimensions = array<i32: 1>} : vector<16x8xi32>
    %c0 = arith.constant 0 : index
    %c0_0 = arith.constant 0 : index
    %6 = vector.load %arg2[%c0, %c0_0] : memref<16x1xi32, #tpu.memory_space<vmem>>, vector<16x1xi32>
    %7 = vector.broadcast %6 : vector<16x1xi32> to vector<16x8xi32>
    %8 = arith.cmpi eq, %5, %7 : vector<16x8xi32>
    %9 = arith.extui %8 : vector<16x8xi1> to vector<16x8xi32>
    %10 = arith.sitofp %9 : vector<16x8xi32> to vector<16x8xf32>
    %c0_1 = arith.constant 0 : index
    %c0_2 = arith.constant 0 : index
    %11 = vector.load %arg3[%c0_1, %c0_2] : memref<16x1xi32, #tpu.memory_space<vmem>>, vector<16x1xi32>
    %12 = vector.broadcast %11 : vector<16x1xi32> to vector<16x8xi32>
    %13 = arith.cmpi eq, %5, %12 : vector<16x8xi32>
    %14 = arith.extui %13 : vector<16x8xi1> to vector<16x8xi32>
    %15 = arith.sitofp %14 : vector<16x8xi32> to vector<16x8xf32>
    %c0_3 = arith.constant 0 : index
    %c0_4 = arith.constant 0 : index
    %16 = vector.load %arg1[%c0_3, %c0_4] : memref<8x128xf32, #tpu.memory_space<vmem>>, vector<8x128xf32>
    %cst = arith.constant dense<0.000000e+00> : vector<16x128xf32>
    %17 = tpu.matmul %10, %16, %cst {dimension_numbers = #tpu.dot_dimension_numbers<[1], [0], [0], [1], [0, 0, 1, 1], [], []>} : vector<16x8xf32>, vector<8x128xf32>, vector<16x128xf32> -> vector<16x128xf32>
    %cst_5 = arith.constant dense<0.000000e+00> : vector<16x128xf32>
    %18 = tpu.matmul %15, %16, %cst_5 {dimension_numbers = #tpu.dot_dimension_numbers<[1], [0], [0], [1], [0, 0, 1, 1], [], []>} : vector<16x8xf32>, vector<8x128xf32>, vector<16x128xf32> -> vector<16x128xf32>
    %19 = arith.subf %17, %18 : vector<16x128xf32>
    %20 = vector.extract_strided_slice %19 {offsets = [0, 0], sizes = [16, 1], strides = [1, 1]} : vector<16x128xf32> to vector<16x1xf32>
    %21 = vector.extract_strided_slice %19 {offsets = [0, 1], sizes = [16, 1], strides = [1, 1]} : vector<16x128xf32> to vector<16x1xf32>
    %22 = vector.extract_strided_slice %18 {offsets = [0, 2], sizes = [16, 1], strides = [1, 1]} : vector<16x128xf32> to vector<16x1xf32>
    %23 = vector.extract_strided_slice %18 {offsets = [0, 3], sizes = [16, 1], strides = [1, 1]} : vector<16x128xf32> to vector<16x1xf32>
    %24 = vector.extract_strided_slice %18 {offsets = [0, 4], sizes = [16, 1], strides = [1, 1]} : vector<16x128xf32> to vector<16x1xf32>
    %25 = vector.extract_strided_slice %18 {offsets = [0, 5], sizes = [16, 1], strides = [1, 1]} : vector<16x128xf32> to vector<16x1xf32>
    %26 = arith.mulf %20, %22 : vector<16x1xf32>
    %27 = arith.mulf %21, %24 : vector<16x1xf32>
    %28 = arith.addf %26, %27 : vector<16x1xf32>
    %29 = arith.mulf %20, %23 : vector<16x1xf32>
    %30 = arith.mulf %21, %25 : vector<16x1xf32>
    %31 = arith.addf %29, %30 : vector<16x1xf32>
    %32 = tpu.concatenate %28, %31 in 1 : vector<16x1xf32>, vector<16x1xf32> -> vector<16x2xf32>
    %33 = vector.extract_strided_slice %19 {offsets = [0, 6], sizes = [16, 1], strides = [1, 1]} : vector<16x128xf32> to vector<16x1xf32>
    %34 = math.cos %33 : vector<16x1xf32>
    %35 = math.sin %33 : vector<16x1xf32>
    %36 = tpu.concatenate %34, %35 in 1 : vector<16x1xf32>, vector<16x1xf32> -> vector<16x2xf32>
    %c0_6 = arith.constant 0 : index
    %c0_7 = arith.constant 0 : index
    %c0_8 = arith.constant 0 : index
    %37 = vector.load %arg4[%c0_6, %c0_7, %c0_8] : memref<2x2x128xbf16, #tpu.memory_space<vmem>>, vector<1x2x128xbf16>
    %38 = vector.shape_cast %37 : vector<1x2x128xbf16> to vector<2x128xbf16>
    %39 = arith.truncf %32 : vector<16x2xf32> to vector<16x2xbf16>
    %cst_9 = arith.constant dense<0.000000e+00> : vector<16x128xf32>
    %40 = tpu.matmul %39, %38, %cst_9 {dimension_numbers = #tpu.dot_dimension_numbers<[1], [0], [0], [1], [0, 0, 1, 1], [], []>} : vector<16x2xbf16>, vector<2x128xbf16>, vector<16x128xf32> -> vector<16x128xf32>
    %c0_10 = arith.constant 0 : index
    %c0_11 = arith.constant 0 : index
    %c0_12 = arith.constant 0 : index
    %41 = vector.load %arg6[%c0_10, %c0_11, %c0_12] : memref<5x1x128xf32, #tpu.memory_space<vmem>>, vector<1x1x128xf32>
    %42 = vector.shape_cast %41 : vector<1x1x128xf32> to vector<1x128xf32>
    %43 = vector.broadcast %42 : vector<1x128xf32> to vector<16x128xf32>
    %44 = arith.addf %40, %43 : vector<16x128xf32>
    %c0_13 = arith.constant 0 : index
    %c0_14 = arith.constant 0 : index
    %c0_15 = arith.constant 0 : index
    %45 = vector.load %arg7[%c0_13, %c0_14, %c0_15] : memref<8x1x128xf32, #tpu.memory_space<vmem>>, vector<1x1x128xf32>
    %46 = vector.shape_cast %45 : vector<1x1x128xf32> to vector<1x128xf32>
    %c1 = arith.constant 1 : index
    %c0_16 = arith.constant 0 : index
    %c0_17 = arith.constant 0 : index
    %47 = vector.load %arg7[%c1, %c0_16, %c0_17] : memref<8x1x128xf32, #tpu.memory_space<vmem>>, vector<1x1x128xf32>
    %48 = vector.shape_cast %47 : vector<1x1x128xf32> to vector<1x128xf32>
    %49 = vector.broadcast %4 : vector<1x128xf32> to vector<16x128xf32>
    %50 = arith.mulf %44, %49 : vector<16x128xf32>
    %cst_18 = arith.constant dense<0.000000e+00> : vector<16xf32>
    %51 = vector.multi_reduction <add>, %50, %cst_18 [1] : vector<16x128xf32> to vector<16xf32>
    %52 = vector.shape_cast %51 : vector<16xf32> to vector<16x1xf32>
    %cst_19 = arith.constant 3.125000e-02 : f32
    %53 = vector.broadcast %cst_19 : f32 to vector<16x1xf32>
    %54 = arith.mulf %52, %53 : vector<16x1xf32>
    %55 = vector.broadcast %54 : vector<16x1xf32> to vector<16x128xf32>
    %56 = arith.subf %44, %55 : vector<16x128xf32>
    %57 = vector.broadcast %4 : vector<1x128xf32> to vector<16x128xf32>
    %58 = arith.mulf %56, %57 : vector<16x128xf32>
    %59 = arith.mulf %58, %58 : vector<16x128xf32>
    %cst_20 = arith.constant dense<0.000000e+00> : vector<16xf32>
    %60 = vector.multi_reduction <add>, %59, %cst_20 [1] : vector<16x128xf32> to vector<16xf32>
    %61 = vector.shape_cast %60 : vector<16xf32> to vector<16x1xf32>
    %cst_21 = arith.constant 3.125000e-02 : f32
    %62 = vector.broadcast %cst_21 : f32 to vector<16x1xf32>
    %63 = arith.mulf %61, %62 : vector<16x1xf32>
    %cst_22 = arith.constant 9.99999974E-6 : f32
    %64 = vector.broadcast %cst_22 : f32 to vector<16x1xf32>
    %65 = arith.addf %63, %64 : vector<16x1xf32>
    %66 = math.rsqrt %65 : vector<16x1xf32>
    %67 = vector.broadcast %66 : vector<16x1xf32> to vector<16x128xf32>
    %68 = arith.mulf %58, %67 : vector<16x128xf32>
    %69 = vector.broadcast %46 : vector<1x128xf32> to vector<16x128xf32>
    %70 = arith.mulf %68, %69 : vector<16x128xf32>
    %71 = vector.broadcast %48 : vector<1x128xf32> to vector<16x128xf32>
    %72 = arith.addf %70, %71 : vector<16x128xf32>
    %cst_23 = arith.constant 0.000000e+00 : f32
    %73 = vector.broadcast %cst_23 : f32 to vector<16x128xf32>
    %74 = arith.maximumf %72, %73 : vector<16x128xf32>
    %c0_24 = arith.constant 0 : index
    %c0_25 = arith.constant 0 : index
    %c0_26 = arith.constant 0 : index
    %75 = vector.load %arg5[%c0_24, %c0_25, %c0_26] : memref<3x128x128xbf16, #tpu.memory_space<vmem>>, vector<1x128x128xbf16>
    %76 = vector.shape_cast %75 : vector<1x128x128xbf16> to vector<128x128xbf16>
    %77 = arith.truncf %74 : vector<16x128xf32> to vector<16x128xbf16>
    %cst_27 = arith.constant dense<0.000000e+00> : vector<16x128xf32>
    %78 = tpu.matmul %77, %76, %cst_27 {dimension_numbers = #tpu.dot_dimension_numbers<[1], [0], [0], [1], [0, 0, 1, 1], [], []>} : vector<16x128xbf16>, vector<128x128xbf16>, vector<16x128xf32> -> vector<16x128xf32>
    %c1_28 = arith.constant 1 : index
    %c0_29 = arith.constant 0 : index
    %c0_30 = arith.constant 0 : index
    %79 = vector.load %arg6[%c1_28, %c0_29, %c0_30] : memref<5x1x128xf32, #tpu.memory_space<vmem>>, vector<1x1x128xf32>
    %80 = vector.shape_cast %79 : vector<1x1x128xf32> to vector<1x128xf32>
    %81 = vector.broadcast %80 : vector<1x128xf32> to vector<16x128xf32>
    %82 = arith.addf %78, %81 : vector<16x128xf32>
    %c1_31 = arith.constant 1 : index
    %c0_32 = arith.constant 0 : index
    %c0_33 = arith.constant 0 : index
    %83 = vector.load %arg4[%c1_31, %c0_32, %c0_33] : memref<2x2x128xbf16, #tpu.memory_space<vmem>>, vector<1x2x128xbf16>
    %84 = vector.shape_cast %83 : vector<1x2x128xbf16> to vector<2x128xbf16>
    %85 = arith.truncf %36 : vector<16x2xf32> to vector<16x2xbf16>
    %cst_34 = arith.constant dense<0.000000e+00> : vector<16x128xf32>
    %86 = tpu.matmul %85, %84, %cst_34 {dimension_numbers = #tpu.dot_dimension_numbers<[1], [0], [0], [1], [0, 0, 1, 1], [], []>} : vector<16x2xbf16>, vector<2x128xbf16>, vector<16x128xf32> -> vector<16x128xf32>
    %c2 = arith.constant 2 : index
    %c0_35 = arith.constant 0 : index
    %c0_36 = arith.constant 0 : index
    %87 = vector.load %arg6[%c2, %c0_35, %c0_36] : memref<5x1x128xf32, #tpu.memory_space<vmem>>, vector<1x1x128xf32>
    %88 = vector.shape_cast %87 : vector<1x1x128xf32> to vector<1x128xf32>
    %89 = vector.broadcast %88 : vector<1x128xf32> to vector<16x128xf32>
    %90 = arith.addf %86, %89 : vector<16x128xf32>
    %c2_37 = arith.constant 2 : index
    %c0_38 = arith.constant 0 : index
    %c0_39 = arith.constant 0 : index
    %91 = vector.load %arg7[%c2_37, %c0_38, %c0_39] : memref<8x1x128xf32, #tpu.memory_space<vmem>>, vector<1x1x128xf32>
    %92 = vector.shape_cast %91 : vector<1x1x128xf32> to vector<1x128xf32>
    %c3 = arith.constant 3 : index
    %c0_40 = arith.constant 0 : index
    %c0_41 = arith.constant 0 : index
    %93 = vector.load %arg7[%c3, %c0_40, %c0_41] : memref<8x1x128xf32, #tpu.memory_space<vmem>>, vector<1x1x128xf32>
    %94 = vector.shape_cast %93 : vector<1x1x128xf32> to vector<1x128xf32>
    %95 = vector.broadcast %4 : vector<1x128xf32> to vector<16x128xf32>
    %96 = arith.mulf %90, %95 : vector<16x128xf32>
    %cst_42 = arith.constant dense<0.000000e+00> : vector<16xf32>
    %97 = vector.multi_reduction <add>, %96, %cst_42 [1] : vector<16x128xf32> to vector<16xf32>
    %98 = vector.shape_cast %97 : vector<16xf32> to vector<16x1xf32>
    %cst_43 = arith.constant 3.125000e-02 : f32
    %99 = vector.broadcast %cst_43 : f32 to vector<16x1xf32>
    %100 = arith.mulf %98, %99 : vector<16x1xf32>
    %101 = vector.broadcast %100 : vector<16x1xf32> to vector<16x128xf32>
    %102 = arith.subf %90, %101 : vector<16x128xf32>
    %103 = vector.broadcast %4 : vector<1x128xf32> to vector<16x128xf32>
    %104 = arith.mulf %102, %103 : vector<16x128xf32>
    %105 = arith.mulf %104, %104 : vector<16x128xf32>
    %cst_44 = arith.constant dense<0.000000e+00> : vector<16xf32>
    %106 = vector.multi_reduction <add>, %105, %cst_44 [1] : vector<16x128xf32> to vector<16xf32>
    %107 = vector.shape_cast %106 : vector<16xf32> to vector<16x1xf32>
    %cst_45 = arith.constant 3.125000e-02 : f32
    %108 = vector.broadcast %cst_45 : f32 to vector<16x1xf32>
    %109 = arith.mulf %107, %108 : vector<16x1xf32>
    %cst_46 = arith.constant 9.99999974E-6 : f32
    %110 = vector.broadcast %cst_46 : f32 to vector<16x1xf32>
    %111 = arith.addf %109, %110 : vector<16x1xf32>
    %112 = math.rsqrt %111 : vector<16x1xf32>
    %113 = vector.broadcast %112 : vector<16x1xf32> to vector<16x128xf32>
    %114 = arith.mulf %104, %113 : vector<16x128xf32>
    %115 = vector.broadcast %92 : vector<1x128xf32> to vector<16x128xf32>
    %116 = arith.mulf %114, %115 : vector<16x128xf32>
    %117 = vector.broadcast %94 : vector<1x128xf32> to vector<16x128xf32>
    %118 = arith.addf %116, %117 : vector<16x128xf32>
    %cst_47 = arith.constant 0.000000e+00 : f32
    %119 = vector.broadcast %cst_47 : f32 to vector<16x128xf32>
    %120 = arith.maximumf %118, %119 : vector<16x128xf32>
    %c1_48 = arith.constant 1 : index
    %c0_49 = arith.constant 0 : index
    %c0_50 = arith.constant 0 : index
    %121 = vector.load %arg5[%c1_48, %c0_49, %c0_50] : memref<3x128x128xbf16, #tpu.memory_space<vmem>>, vector<1x128x128xbf16>
    %122 = vector.shape_cast %121 : vector<1x128x128xbf16> to vector<128x128xbf16>
    %123 = arith.truncf %120 : vector<16x128xf32> to vector<16x128xbf16>
    %cst_51 = arith.constant dense<0.000000e+00> : vector<16x128xf32>
    %124 = tpu.matmul %123, %122, %cst_51 {dimension_numbers = #tpu.dot_dimension_numbers<[1], [0], [0], [1], [0, 0, 1, 1], [], []>} : vector<16x128xbf16>, vector<128x128xbf16>, vector<16x128xf32> -> vector<16x128xf32>
    %c3_52 = arith.constant 3 : index
    %c0_53 = arith.constant 0 : index
    %c0_54 = arith.constant 0 : index
    %125 = vector.load %arg6[%c3_52, %c0_53, %c0_54] : memref<5x1x128xf32, #tpu.memory_space<vmem>>, vector<1x1x128xf32>
    %126 = vector.shape_cast %125 : vector<1x1x128xf32> to vector<1x128xf32>
    %127 = vector.broadcast %126 : vector<1x128xf32> to vector<16x128xf32>
    %128 = arith.addf %124, %127 : vector<16x128xf32>
    %129 = arith.addf %82, %128 : vector<16x128xf32>
    %c4 = arith.constant 4 : index
    %c0_55 = arith.constant 0 : index
    %c0_56 = arith.constant 0 : index
    %130 = vector.load %arg7[%c4, %c0_55, %c0_56] : memref<8x1x128xf32, #tpu.memory_space<vmem>>, vector<1x1x128xf32>
    %131 = vector.shape_cast %130 : vector<1x1x128xf32> to vector<1x128xf32>
    %c5 = arith.constant 5 : index
    %c0_57 = arith.constant 0 : index
    %c0_58 = arith.constant 0 : index
    %132 = vector.load %arg7[%c5, %c0_57, %c0_58] : memref<8x1x128xf32, #tpu.memory_space<vmem>>, vector<1x1x128xf32>
    %133 = vector.shape_cast %132 : vector<1x1x128xf32> to vector<1x128xf32>
    %134 = vector.broadcast %4 : vector<1x128xf32> to vector<16x128xf32>
    %135 = arith.mulf %129, %134 : vector<16x128xf32>
    %cst_59 = arith.constant dense<0.000000e+00> : vector<16xf32>
    %136 = vector.multi_reduction <add>, %135, %cst_59 [1] : vector<16x128xf32> to vector<16xf32>
    %137 = vector.shape_cast %136 : vector<16xf32> to vector<16x1xf32>
    %cst_60 = arith.constant 3.125000e-02 : f32
    %138 = vector.broadcast %cst_60 : f32 to vector<16x1xf32>
    %139 = arith.mulf %137, %138 : vector<16x1xf32>
    %140 = vector.broadcast %139 : vector<16x1xf32> to vector<16x128xf32>
    %141 = arith.subf %129, %140 : vector<16x128xf32>
    %142 = vector.broadcast %4 : vector<1x128xf32> to vector<16x128xf32>
    %143 = arith.mulf %141, %142 : vector<16x128xf32>
    %144 = arith.mulf %143, %143 : vector<16x128xf32>
    %cst_61 = arith.constant dense<0.000000e+00> : vector<16xf32>
    %145 = vector.multi_reduction <add>, %144, %cst_61 [1] : vector<16x128xf32> to vector<16xf32>
    %146 = vector.shape_cast %145 : vector<16xf32> to vector<16x1xf32>
    %cst_62 = arith.constant 3.125000e-02 : f32
    %147 = vector.broadcast %cst_62 : f32 to vector<16x1xf32>
    %148 = arith.mulf %146, %147 : vector<16x1xf32>
    %cst_63 = arith.constant 9.99999974E-6 : f32
    %149 = vector.broadcast %cst_63 : f32 to vector<16x1xf32>
    %150 = arith.addf %148, %149 : vector<16x1xf32>
    %151 = math.rsqrt %150 : vector<16x1xf32>
    %152 = vector.broadcast %151 : vector<16x1xf32> to vector<16x128xf32>
    %153 = arith.mulf %143, %152 : vector<16x128xf32>
    %154 = vector.broadcast %131 : vector<1x128xf32> to vector<16x128xf32>
    %155 = arith.mulf %153, %154 : vector<16x128xf32>
    %156 = vector.broadcast %133 : vector<1x128xf32> to vector<16x128xf32>
    %157 = arith.addf %155, %156 : vector<16x128xf32>
    %cst_64 = arith.constant 0.000000e+00 : f32
    %158 = vector.broadcast %cst_64 : f32 to vector<16x128xf32>
    %159 = arith.maximumf %157, %158 : vector<16x128xf32>
    %c2_65 = arith.constant 2 : index
    %c0_66 = arith.constant 0 : index
    %c0_67 = arith.constant 0 : index
    %160 = vector.load %arg5[%c2_65, %c0_66, %c0_67] : memref<3x128x128xbf16, #tpu.memory_space<vmem>>, vector<1x128x128xbf16>
    %161 = vector.shape_cast %160 : vector<1x128x128xbf16> to vector<128x128xbf16>
    %162 = arith.truncf %159 : vector<16x128xf32> to vector<16x128xbf16>
    %cst_68 = arith.constant dense<0.000000e+00> : vector<16x128xf32>
    %163 = tpu.matmul %162, %161, %cst_68 {dimension_numbers = #tpu.dot_dimension_numbers<[1], [0], [0], [1], [0, 0, 1, 1], [], []>} : vector<16x128xbf16>, vector<128x128xbf16>, vector<16x128xf32> -> vector<16x128xf32>
    %c4_69 = arith.constant 4 : index
    %c0_70 = arith.constant 0 : index
    %c0_71 = arith.constant 0 : index
    %164 = vector.load %arg6[%c4_69, %c0_70, %c0_71] : memref<5x1x128xf32, #tpu.memory_space<vmem>>, vector<1x1x128xf32>
    %165 = vector.shape_cast %164 : vector<1x1x128xf32> to vector<1x128xf32>
    %166 = vector.broadcast %165 : vector<1x128xf32> to vector<16x128xf32>
    %167 = arith.addf %163, %166 : vector<16x128xf32>
    %c6 = arith.constant 6 : index
    %c0_72 = arith.constant 0 : index
    %c0_73 = arith.constant 0 : index
    %168 = vector.load %arg7[%c6, %c0_72, %c0_73] : memref<8x1x128xf32, #tpu.memory_space<vmem>>, vector<1x1x128xf32>
    %169 = vector.shape_cast %168 : vector<1x1x128xf32> to vector<1x128xf32>
    %c7 = arith.constant 7 : index
    %c0_74 = arith.constant 0 : index
    %c0_75 = arith.constant 0 : index
    %170 = vector.load %arg7[%c7, %c0_74, %c0_75] : memref<8x1x128xf32, #tpu.memory_space<vmem>>, vector<1x1x128xf32>
    %171 = vector.shape_cast %170 : vector<1x1x128xf32> to vector<1x128xf32>
    %172 = vector.broadcast %4 : vector<1x128xf32> to vector<16x128xf32>
    %173 = arith.mulf %167, %172 : vector<16x128xf32>
    %cst_76 = arith.constant dense<0.000000e+00> : vector<16xf32>
    %174 = vector.multi_reduction <add>, %173, %cst_76 [1] : vector<16x128xf32> to vector<16xf32>
    %175 = vector.shape_cast %174 : vector<16xf32> to vector<16x1xf32>
    %cst_77 = arith.constant 3.125000e-02 : f32
    %176 = vector.broadcast %cst_77 : f32 to vector<16x1xf32>
    %177 = arith.mulf %175, %176 : vector<16x1xf32>
    %178 = vector.broadcast %177 : vector<16x1xf32> to vector<16x128xf32>
    %179 = arith.subf %167, %178 : vector<16x128xf32>
    %180 = vector.broadcast %4 : vector<1x128xf32> to vector<16x128xf32>
    %181 = arith.mulf %179, %180 : vector<16x128xf32>
    %182 = arith.mulf %181, %181 : vector<16x128xf32>
    %cst_78 = arith.constant dense<0.000000e+00> : vector<16xf32>
    %183 = vector.multi_reduction <add>, %182, %cst_78 [1] : vector<16x128xf32> to vector<16xf32>
    %184 = vector.shape_cast %183 : vector<16xf32> to vector<16x1xf32>
    %cst_79 = arith.constant 3.125000e-02 : f32
    %185 = vector.broadcast %cst_79 : f32 to vector<16x1xf32>
    %186 = arith.mulf %184, %185 : vector<16x1xf32>
    %cst_80 = arith.constant 9.99999974E-6 : f32
    %187 = vector.broadcast %cst_80 : f32 to vector<16x1xf32>
    %188 = arith.addf %186, %187 : vector<16x1xf32>
    %189 = math.rsqrt %188 : vector<16x1xf32>
    %190 = vector.broadcast %189 : vector<16x1xf32> to vector<16x128xf32>
    %191 = arith.mulf %181, %190 : vector<16x128xf32>
    %192 = vector.broadcast %169 : vector<1x128xf32> to vector<16x128xf32>
    %193 = arith.mulf %191, %192 : vector<16x128xf32>
    %194 = vector.broadcast %171 : vector<1x128xf32> to vector<16x128xf32>
    %195 = arith.addf %193, %194 : vector<16x128xf32>
    %c0_81 = arith.constant 0 : index
    %c0_82 = arith.constant 0 : index
    %196 = vector.load %arg0[%c0_81, %c0_82] : memref<8x128xf32, #tpu.memory_space<vmem>>, vector<8x128xf32>
    %c0_83 = arith.constant 0 : index
    %c0_84 = arith.constant 0 : index
    %c0_85 = arith.constant 0 : index
    %197 = vector.load %arg12[%c0_83, %c0_84, %c0_85] : memref<6x1x128xf32, #tpu.memory_space<vmem>>, vector<1x1x128xf32>
    %198 = vector.shape_cast %197 : vector<1x1x128xf32> to vector<1x128xf32>
    %c1_86 = arith.constant 1 : index
    %c0_87 = arith.constant 0 : index
    %c0_88 = arith.constant 0 : index
    %199 = vector.load %arg12[%c1_86, %c0_87, %c0_88] : memref<6x1x128xf32, #tpu.memory_space<vmem>>, vector<1x1x128xf32>
    %200 = vector.shape_cast %199 : vector<1x1x128xf32> to vector<1x128xf32>
    %201 = vector.broadcast %4 : vector<1x128xf32> to vector<8x128xf32>
    %202 = arith.mulf %196, %201 : vector<8x128xf32>
    %cst_89 = arith.constant dense<0.000000e+00> : vector<8xf32>
    %203 = vector.multi_reduction <add>, %202, %cst_89 [1] : vector<8x128xf32> to vector<8xf32>
    %204 = vector.shape_cast %203 : vector<8xf32> to vector<8x1xf32>
    %cst_90 = arith.constant 3.125000e-02 : f32
    %205 = vector.broadcast %cst_90 : f32 to vector<8x1xf32>
    %206 = arith.mulf %204, %205 : vector<8x1xf32>
    %207 = vector.broadcast %206 : vector<8x1xf32> to vector<8x128xf32>
    %208 = arith.subf %196, %207 : vector<8x128xf32>
    %209 = vector.broadcast %4 : vector<1x128xf32> to vector<8x128xf32>
    %210 = arith.mulf %208, %209 : vector<8x128xf32>
    %211 = arith.mulf %210, %210 : vector<8x128xf32>
    %cst_91 = arith.constant dense<0.000000e+00> : vector<8xf32>
    %212 = vector.multi_reduction <add>, %211, %cst_91 [1] : vector<8x128xf32> to vector<8xf32>
    %213 = vector.shape_cast %212 : vector<8xf32> to vector<8x1xf32>
    %cst_92 = arith.constant 3.125000e-02 : f32
    %214 = vector.broadcast %cst_92 : f32 to vector<8x1xf32>
    %215 = arith.mulf %213, %214 : vector<8x1xf32>
    %cst_93 = arith.constant 9.99999974E-6 : f32
    %216 = vector.broadcast %cst_93 : f32 to vector<8x1xf32>
    %217 = arith.addf %215, %216 : vector<8x1xf32>
    %218 = math.rsqrt %217 : vector<8x1xf32>
    %219 = vector.broadcast %218 : vector<8x1xf32> to vector<8x128xf32>
    %220 = arith.mulf %210, %219 : vector<8x128xf32>
    %221 = vector.broadcast %198 : vector<1x128xf32> to vector<8x128xf32>
    %222 = arith.mulf %220, %221 : vector<8x128xf32>
    %223 = vector.broadcast %200 : vector<1x128xf32> to vector<8x128xf32>
    %224 = arith.addf %222, %223 : vector<8x128xf32>
    %cst_94 = arith.constant dense<0.000000e+00> : vector<16x128xf32>
    %225 = tpu.matmul %15, %224, %cst_94 {dimension_numbers = #tpu.dot_dimension_numbers<[1], [0], [0], [1], [0, 0, 1, 1], [], []>} : vector<16x8xf32>, vector<8x128xf32>, vector<16x128xf32> -> vector<16x128xf32>
    %cst_95 = arith.constant dense<0.000000e+00> : vector<16x128xf32>
    %226 = tpu.matmul %10, %224, %cst_95 {dimension_numbers = #tpu.dot_dimension_numbers<[1], [0], [0], [1], [0, 0, 1, 1], [], []>} : vector<16x8xf32>, vector<8x128xf32>, vector<16x128xf32> -> vector<16x128xf32>
    %c0_96 = arith.constant 0 : index
    %c0_97 = arith.constant 0 : index
    %c0_98 = arith.constant 0 : index
    %227 = vector.load %arg8[%c0_96, %c0_97, %c0_98] : memref<3x128x128xbf16, #tpu.memory_space<vmem>>, vector<1x128x128xbf16>
    %228 = vector.shape_cast %227 : vector<1x128x128xbf16> to vector<128x128xbf16>
    %229 = arith.truncf %225 : vector<16x128xf32> to vector<16x128xbf16>
    %cst_99 = arith.constant dense<0.000000e+00> : vector<16x128xf32>
    %230 = tpu.matmul %229, %228, %cst_99 {dimension_numbers = #tpu.dot_dimension_numbers<[1], [0], [0], [1], [0, 0, 1, 1], [], []>} : vector<16x128xbf16>, vector<128x128xbf16>, vector<16x128xf32> -> vector<16x128xf32>
    %c0_100 = arith.constant 0 : index
    %c0_101 = arith.constant 0 : index
    %c0_102 = arith.constant 0 : index
    %231 = vector.load %arg9[%c0_100, %c0_101, %c0_102] : memref<3x1x128xf32, #tpu.memory_space<vmem>>, vector<1x1x128xf32>
    %232 = vector.shape_cast %231 : vector<1x1x128xf32> to vector<1x128xf32>
    %233 = vector.broadcast %232 : vector<1x128xf32> to vector<16x128xf32>
    %234 = arith.addf %230, %233 : vector<16x128xf32>
    %c0_103 = arith.constant 0 : index
    %c0_104 = arith.constant 0 : index
    %c0_105 = arith.constant 0 : index
    %235 = vector.load %arg10[%c0_103, %c0_104, %c0_105] : memref<3x128x256xbf16, #tpu.memory_space<vmem>>, vector<1x128x256xbf16>
    %236 = vector.shape_cast %235 : vector<1x128x256xbf16> to vector<128x256xbf16>
    %237 = arith.truncf %226 : vector<16x128xf32> to vector<16x128xbf16>
    %cst_106 = arith.constant dense<0.000000e+00> : vector<16x256xf32>
    %238 = tpu.matmul %237, %236, %cst_106 {dimension_numbers = #tpu.dot_dimension_numbers<[1], [0], [0], [1], [0, 0, 1, 1], [], []>} : vector<16x128xbf16>, vector<128x256xbf16>, vector<16x256xf32> -> vector<16x256xf32>
    %c0_107 = arith.constant 0 : index
    %c0_108 = arith.constant 0 : index
    %c0_109 = arith.constant 0 : index
    %239 = vector.load %arg11[%c0_107, %c0_108, %c0_109] : memref<3x1x256xf32, #tpu.memory_space<vmem>>, vector<1x1x256xf32>
    %240 = vector.shape_cast %239 : vector<1x1x256xf32> to vector<1x256xf32>
    %241 = vector.broadcast %240 : vector<1x256xf32> to vector<16x256xf32>
    %242 = arith.addf %238, %241 : vector<16x256xf32>
    %c1_110 = arith.constant 1 : index
    %c0_111 = arith.constant 0 : index
    %c0_112 = arith.constant 0 : index
    %243 = vector.load %arg10[%c1_110, %c0_111, %c0_112] : memref<3x128x256xbf16, #tpu.memory_space<vmem>>, vector<1x128x256xbf16>
    %244 = vector.shape_cast %243 : vector<1x128x256xbf16> to vector<128x256xbf16>
    %245 = arith.truncf %195 : vector<16x128xf32> to vector<16x128xbf16>
    %cst_113 = arith.constant dense<0.000000e+00> : vector<16x256xf32>
    %246 = tpu.matmul %245, %244, %cst_113 {dimension_numbers = #tpu.dot_dimension_numbers<[1], [0], [0], [1], [0, 0, 1, 1], [], []>} : vector<16x128xbf16>, vector<128x256xbf16>, vector<16x256xf32> -> vector<16x256xf32>
    %c1_114 = arith.constant 1 : index
    %c0_115 = arith.constant 0 : index
    %c0_116 = arith.constant 0 : index
    %247 = vector.load %arg11[%c1_114, %c0_115, %c0_116] : memref<3x1x256xf32, #tpu.memory_space<vmem>>, vector<1x1x256xf32>
    %248 = vector.shape_cast %247 : vector<1x1x256xf32> to vector<1x256xf32>
    %249 = vector.broadcast %248 : vector<1x256xf32> to vector<16x256xf32>
    %250 = arith.addf %246, %249 : vector<16x256xf32>
    %c2_117 = arith.constant 2 : index
    %c0_118 = arith.constant 0 : index
    %c0_119 = arith.constant 0 : index
    %251 = vector.load %arg10[%c2_117, %c0_118, %c0_119] : memref<3x128x256xbf16, #tpu.memory_space<vmem>>, vector<1x128x256xbf16>
    %252 = vector.shape_cast %251 : vector<1x128x256xbf16> to vector<128x256xbf16>
    %253 = arith.truncf %224 : vector<8x128xf32> to vector<8x128xbf16>
    %cst_120 = arith.constant dense<0.000000e+00> : vector<8x256xf32>
    %254 = tpu.matmul %253, %252, %cst_120 {dimension_numbers = #tpu.dot_dimension_numbers<[1], [0], [0], [1], [0, 0, 1, 1], [], []>} : vector<8x128xbf16>, vector<128x256xbf16>, vector<8x256xf32> -> vector<8x256xf32>
    %c2_121 = arith.constant 2 : index
    %c0_122 = arith.constant 0 : index
    %c0_123 = arith.constant 0 : index
    %255 = vector.load %arg11[%c2_121, %c0_122, %c0_123] : memref<3x1x256xf32, #tpu.memory_space<vmem>>, vector<1x1x256xf32>
    %256 = vector.shape_cast %255 : vector<1x1x256xf32> to vector<1x256xf32>
    %257 = vector.broadcast %256 : vector<1x256xf32> to vector<8x256xf32>
    %258 = arith.addf %254, %257 : vector<8x256xf32>
    %259 = vector.extract_strided_slice %242 {offsets = [0, 0], sizes = [16, 128], strides = [1, 1]} : vector<16x256xf32> to vector<16x128xf32>
    %260 = vector.extract_strided_slice %242 {offsets = [0, 128], sizes = [16, 128], strides = [1, 1]} : vector<16x256xf32> to vector<16x128xf32>
    %261 = vector.extract_strided_slice %250 {offsets = [0, 0], sizes = [16, 128], strides = [1, 1]} : vector<16x256xf32> to vector<16x128xf32>
    %262 = vector.extract_strided_slice %250 {offsets = [0, 128], sizes = [16, 128], strides = [1, 1]} : vector<16x256xf32> to vector<16x128xf32>
    %263 = arith.addf %259, %261 : vector<16x128xf32>
    %264 = arith.mulf %234, %263 : vector<16x128xf32>
    %c0_124 = arith.constant 0 : index
    %c0_125 = arith.constant 0 : index
    %265 = vector.load %arg17[%c0_124, %c0_125] : memref<128x8xf32, #tpu.memory_space<vmem>>, vector<128x8xf32>
    %cst_126 = arith.constant dense<0.000000e+00> : vector<16x8xf32>
    %266 = tpu.matmul %264, %265, %cst_126 {dimension_numbers = #tpu.dot_dimension_numbers<[1], [0], [0], [1], [0, 0, 1, 1], [], []>} : vector<16x128xf32>, vector<128x8xf32>, vector<16x8xf32> -> vector<16x8xf32>
    %cst_127 = arith.constant 5.000000e-01 : f32
    %267 = vector.broadcast %cst_127 : f32 to vector<16x8xf32>
    %268 = arith.cmpf ogt, %15, %267 : vector<16x8xf32>
    %269 = vector.extract_strided_slice %266 {offsets = [0, 0], sizes = [16, 1], strides = [1, 1]} : vector<16x8xf32> to vector<16x1xf32>
    %cst_128 = arith.constant -1.000000e+30 : f32
    %270 = vector.shape_cast %269 : vector<16x1xf32> to vector<16x1xf32>
    %271 = vector.broadcast %270 : vector<16x1xf32> to vector<16x8xf32>
    %272 = vector.broadcast %cst_128 : f32 to vector<16x8xf32>
    %273 = arith.select %268, %271, %272 : vector<16x8xi1>, vector<16x8xf32>
    %cst_129 = arith.constant dense<0xFF800000> : vector<8xf32>
    %274 = vector.multi_reduction <maximumf>, %273, %cst_129 [0] : vector<16x8xf32> to vector<8xf32>
    %275 = vector.shape_cast %274 : vector<8xf32> to vector<1x8xf32>
    %cst_130 = arith.constant -1.000000e+30 : f32
    %276 = vector.shape_cast %275 : vector<1x8xf32> to vector<1x8xf32>
    %277 = vector.broadcast %276 : vector<1x8xf32> to vector<16x8xf32>
    %278 = vector.broadcast %cst_130 : f32 to vector<16x8xf32>
    %279 = arith.select %268, %277, %278 : vector<16x8xi1>, vector<16x8xf32>
    %cst_131 = arith.constant dense<0xFF800000> : vector<16xf32>
    %280 = vector.multi_reduction <maximumf>, %279, %cst_131 [1] : vector<16x8xf32> to vector<16xf32>
    %281 = vector.shape_cast %280 : vector<16xf32> to vector<16x1xf32>
    %282 = vector.extract_strided_slice %266 {offsets = [0, 1], sizes = [16, 1], strides = [1, 1]} : vector<16x8xf32> to vector<16x1xf32>
    %cst_132 = arith.constant -1.000000e+30 : f32
    %283 = vector.shape_cast %282 : vector<16x1xf32> to vector<16x1xf32>
    %284 = vector.broadcast %283 : vector<16x1xf32> to vector<16x8xf32>
    %285 = vector.broadcast %cst_132 : f32 to vector<16x8xf32>
    %286 = arith.select %268, %284, %285 : vector<16x8xi1>, vector<16x8xf32>
    %cst_133 = arith.constant dense<0xFF800000> : vector<8xf32>
    %287 = vector.multi_reduction <maximumf>, %286, %cst_133 [0] : vector<16x8xf32> to vector<8xf32>
    %288 = vector.shape_cast %287 : vector<8xf32> to vector<1x8xf32>
    %cst_134 = arith.constant -1.000000e+30 : f32
    %289 = vector.shape_cast %288 : vector<1x8xf32> to vector<1x8xf32>
    %290 = vector.broadcast %289 : vector<1x8xf32> to vector<16x8xf32>
    %291 = vector.broadcast %cst_134 : f32 to vector<16x8xf32>
    %292 = arith.select %268, %290, %291 : vector<16x8xi1>, vector<16x8xf32>
    %cst_135 = arith.constant dense<0xFF800000> : vector<16xf32>
    %293 = vector.multi_reduction <maximumf>, %292, %cst_135 [1] : vector<16x8xf32> to vector<16xf32>
    %294 = vector.shape_cast %293 : vector<16xf32> to vector<16x1xf32>
    %295 = vector.extract_strided_slice %266 {offsets = [0, 2], sizes = [16, 1], strides = [1, 1]} : vector<16x8xf32> to vector<16x1xf32>
    %cst_136 = arith.constant -1.000000e+30 : f32
    %296 = vector.shape_cast %295 : vector<16x1xf32> to vector<16x1xf32>
    %297 = vector.broadcast %296 : vector<16x1xf32> to vector<16x8xf32>
    %298 = vector.broadcast %cst_136 : f32 to vector<16x8xf32>
    %299 = arith.select %268, %297, %298 : vector<16x8xi1>, vector<16x8xf32>
    %cst_137 = arith.constant dense<0xFF800000> : vector<8xf32>
    %300 = vector.multi_reduction <maximumf>, %299, %cst_137 [0] : vector<16x8xf32> to vector<8xf32>
    %301 = vector.shape_cast %300 : vector<8xf32> to vector<1x8xf32>
    %cst_138 = arith.constant -1.000000e+30 : f32
    %302 = vector.shape_cast %301 : vector<1x8xf32> to vector<1x8xf32>
    %303 = vector.broadcast %302 : vector<1x8xf32> to vector<16x8xf32>
    %304 = vector.broadcast %cst_138 : f32 to vector<16x8xf32>
    %305 = arith.select %268, %303, %304 : vector<16x8xi1>, vector<16x8xf32>
    %cst_139 = arith.constant dense<0xFF800000> : vector<16xf32>
    %306 = vector.multi_reduction <maximumf>, %305, %cst_139 [1] : vector<16x8xf32> to vector<16xf32>
    %307 = vector.shape_cast %306 : vector<16xf32> to vector<16x1xf32>
    %308 = vector.extract_strided_slice %266 {offsets = [0, 3], sizes = [16, 1], strides = [1, 1]} : vector<16x8xf32> to vector<16x1xf32>
    %cst_140 = arith.constant -1.000000e+30 : f32
    %309 = vector.shape_cast %308 : vector<16x1xf32> to vector<16x1xf32>
    %310 = vector.broadcast %309 : vector<16x1xf32> to vector<16x8xf32>
    %311 = vector.broadcast %cst_140 : f32 to vector<16x8xf32>
    %312 = arith.select %268, %310, %311 : vector<16x8xi1>, vector<16x8xf32>
    %cst_141 = arith.constant dense<0xFF800000> : vector<8xf32>
    %313 = vector.multi_reduction <maximumf>, %312, %cst_141 [0] : vector<16x8xf32> to vector<8xf32>
    %314 = vector.shape_cast %313 : vector<8xf32> to vector<1x8xf32>
    %cst_142 = arith.constant -1.000000e+30 : f32
    %315 = vector.shape_cast %314 : vector<1x8xf32> to vector<1x8xf32>
    %316 = vector.broadcast %315 : vector<1x8xf32> to vector<16x8xf32>
    %317 = vector.broadcast %cst_142 : f32 to vector<16x8xf32>
    %318 = arith.select %268, %316, %317 : vector<16x8xi1>, vector<16x8xf32>
    %cst_143 = arith.constant dense<0xFF800000> : vector<16xf32>
    %319 = vector.multi_reduction <maximumf>, %318, %cst_143 [1] : vector<16x8xf32> to vector<16xf32>
    %320 = vector.shape_cast %319 : vector<16xf32> to vector<16x1xf32>
    %321 = vector.extract_strided_slice %266 {offsets = [0, 4], sizes = [16, 1], strides = [1, 1]} : vector<16x8xf32> to vector<16x1xf32>
    %cst_144 = arith.constant -1.000000e+30 : f32
    %322 = vector.shape_cast %321 : vector<16x1xf32> to vector<16x1xf32>
    %323 = vector.broadcast %322 : vector<16x1xf32> to vector<16x8xf32>
    %324 = vector.broadcast %cst_144 : f32 to vector<16x8xf32>
    %325 = arith.select %268, %323, %324 : vector<16x8xi1>, vector<16x8xf32>
    %cst_145 = arith.constant dense<0xFF800000> : vector<8xf32>
    %326 = vector.multi_reduction <maximumf>, %325, %cst_145 [0] : vector<16x8xf32> to vector<8xf32>
    %327 = vector.shape_cast %326 : vector<8xf32> to vector<1x8xf32>
    %cst_146 = arith.constant -1.000000e+30 : f32
    %328 = vector.shape_cast %327 : vector<1x8xf32> to vector<1x8xf32>
    %329 = vector.broadcast %328 : vector<1x8xf32> to vector<16x8xf32>
    %330 = vector.broadcast %cst_146 : f32 to vector<16x8xf32>
    %331 = arith.select %268, %329, %330 : vector<16x8xi1>, vector<16x8xf32>
    %cst_147 = arith.constant dense<0xFF800000> : vector<16xf32>
    %332 = vector.multi_reduction <maximumf>, %331, %cst_147 [1] : vector<16x8xf32> to vector<16xf32>
    %333 = vector.shape_cast %332 : vector<16xf32> to vector<16x1xf32>
    %334 = vector.extract_strided_slice %266 {offsets = [0, 5], sizes = [16, 1], strides = [1, 1]} : vector<16x8xf32> to vector<16x1xf32>
    %cst_148 = arith.constant -1.000000e+30 : f32
    %335 = vector.shape_cast %334 : vector<16x1xf32> to vector<16x1xf32>
    %336 = vector.broadcast %335 : vector<16x1xf32> to vector<16x8xf32>
    %337 = vector.broadcast %cst_148 : f32 to vector<16x8xf32>
    %338 = arith.select %268, %336, %337 : vector<16x8xi1>, vector<16x8xf32>
    %cst_149 = arith.constant dense<0xFF800000> : vector<8xf32>
    %339 = vector.multi_reduction <maximumf>, %338, %cst_149 [0] : vector<16x8xf32> to vector<8xf32>
    %340 = vector.shape_cast %339 : vector<8xf32> to vector<1x8xf32>
    %cst_150 = arith.constant -1.000000e+30 : f32
    %341 = vector.shape_cast %340 : vector<1x8xf32> to vector<1x8xf32>
    %342 = vector.broadcast %341 : vector<1x8xf32> to vector<16x8xf32>
    %343 = vector.broadcast %cst_150 : f32 to vector<16x8xf32>
    %344 = arith.select %268, %342, %343 : vector<16x8xi1>, vector<16x8xf32>
    %cst_151 = arith.constant dense<0xFF800000> : vector<16xf32>
    %345 = vector.multi_reduction <maximumf>, %344, %cst_151 [1] : vector<16x8xf32> to vector<16xf32>
    %346 = vector.shape_cast %345 : vector<16xf32> to vector<16x1xf32>
    %347 = vector.extract_strided_slice %266 {offsets = [0, 6], sizes = [16, 1], strides = [1, 1]} : vector<16x8xf32> to vector<16x1xf32>
    %cst_152 = arith.constant -1.000000e+30 : f32
    %348 = vector.shape_cast %347 : vector<16x1xf32> to vector<16x1xf32>
    %349 = vector.broadcast %348 : vector<16x1xf32> to vector<16x8xf32>
    %350 = vector.broadcast %cst_152 : f32 to vector<16x8xf32>
    %351 = arith.select %268, %349, %350 : vector<16x8xi1>, vector<16x8xf32>
    %cst_153 = arith.constant dense<0xFF800000> : vector<8xf32>
    %352 = vector.multi_reduction <maximumf>, %351, %cst_153 [0] : vector<16x8xf32> to vector<8xf32>
    %353 = vector.shape_cast %352 : vector<8xf32> to vector<1x8xf32>
    %cst_154 = arith.constant -1.000000e+30 : f32
    %354 = vector.shape_cast %353 : vector<1x8xf32> to vector<1x8xf32>
    %355 = vector.broadcast %354 : vector<1x8xf32> to vector<16x8xf32>
    %356 = vector.broadcast %cst_154 : f32 to vector<16x8xf32>
    %357 = arith.select %268, %355, %356 : vector<16x8xi1>, vector<16x8xf32>
    %cst_155 = arith.constant dense<0xFF800000> : vector<16xf32>
    %358 = vector.multi_reduction <maximumf>, %357, %cst_155 [1] : vector<16x8xf32> to vector<16xf32>
    %359 = vector.shape_cast %358 : vector<16xf32> to vector<16x1xf32>
    %360 = vector.extract_strided_slice %266 {offsets = [0, 7], sizes = [16, 1], strides = [1, 1]} : vector<16x8xf32> to vector<16x1xf32>
    %cst_156 = arith.constant -1.000000e+30 : f32
    %361 = vector.shape_cast %360 : vector<16x1xf32> to vector<16x1xf32>
    %362 = vector.broadcast %361 : vector<16x1xf32> to vector<16x8xf32>
    %363 = vector.broadcast %cst_156 : f32 to vector<16x8xf32>
    %364 = arith.select %268, %362, %363 : vector<16x8xi1>, vector<16x8xf32>
    %cst_157 = arith.constant dense<0xFF800000> : vector<8xf32>
    %365 = vector.multi_reduction <maximumf>, %364, %cst_157 [0] : vector<16x8xf32> to vector<8xf32>
    %366 = vector.shape_cast %365 : vector<8xf32> to vector<1x8xf32>
    %cst_158 = arith.constant -1.000000e+30 : f32
    %367 = vector.shape_cast %366 : vector<1x8xf32> to vector<1x8xf32>
    %368 = vector.broadcast %367 : vector<1x8xf32> to vector<16x8xf32>
    %369 = vector.broadcast %cst_158 : f32 to vector<16x8xf32>
    %370 = arith.select %268, %368, %369 : vector<16x8xi1>, vector<16x8xf32>
    %cst_159 = arith.constant dense<0xFF800000> : vector<16xf32>
    %371 = vector.multi_reduction <maximumf>, %370, %cst_159 [1] : vector<16x8xf32> to vector<16xf32>
    %372 = vector.shape_cast %371 : vector<16xf32> to vector<16x1xf32>
    %373 = tpu.concatenate %281, %294, %307, %320, %333, %346, %359, %372 in 1 : vector<16x1xf32>, vector<16x1xf32>, vector<16x1xf32>, vector<16x1xf32>, vector<16x1xf32>, vector<16x1xf32>, vector<16x1xf32>, vector<16x1xf32> -> vector<16x8xf32>
    %374 = arith.subf %266, %373 : vector<16x8xf32>
    %375 = math.exp %374 : vector<16x8xf32>
    %376 = tpu.transpose %15, [1, 0] : vector<16x8xf32> -> vector<8x16xf32>
    %cst_160 = arith.constant dense<0.000000e+00> : vector<8x8xf32>
    %377 = tpu.matmul %376, %375, %cst_160 {dimension_numbers = #tpu.dot_dimension_numbers<[1], [0], [0], [1], [0, 0, 1, 1], [], []>} : vector<8x16xf32>, vector<16x8xf32>, vector<8x8xf32> -> vector<8x8xf32>
    %cst_161 = arith.constant dense<0.000000e+00> : vector<16x8xf32>
    %378 = tpu.matmul %15, %377, %cst_161 {dimension_numbers = #tpu.dot_dimension_numbers<[1], [0], [0], [1], [0, 0, 1, 1], [], []>} : vector<16x8xf32>, vector<8x8xf32>, vector<16x8xf32> -> vector<16x8xf32>
    %cst_162 = arith.constant 1.000000e-16 : f32
    %379 = vector.broadcast %cst_162 : f32 to vector<16x8xf32>
    %380 = arith.addf %378, %379 : vector<16x8xf32>
    %381 = tpu.reciprocal %380 {approx = true} : vector<16x8xf32> -> vector<16x8xf32>
    %382 = arith.mulf %375, %381 : vector<16x8xf32>
    %c0_163 = arith.constant 0 : index
    %c0_164 = arith.constant 0 : index
    %383 = vector.load %arg18[%c0_163, %c0_164] : memref<8x128xf32, #tpu.memory_space<vmem>>, vector<8x128xf32>
    %cst_165 = arith.constant dense<0.000000e+00> : vector<16x128xf32>
    %384 = tpu.matmul %382, %383, %cst_165 {dimension_numbers = #tpu.dot_dimension_numbers<[1], [0], [0], [1], [0, 0, 1, 1], [], []>} : vector<16x8xf32>, vector<8x128xf32>, vector<16x128xf32> -> vector<16x128xf32>
    %385 = arith.addf %260, %262 : vector<16x128xf32>
    %386 = arith.mulf %385, %384 : vector<16x128xf32>
    %387 = tpu.transpose %15, [1, 0] : vector<16x8xf32> -> vector<8x16xf32>
    %cst_166 = arith.constant dense<0.000000e+00> : vector<8x128xf32>
    %388 = tpu.matmul %387, %386, %cst_166 {dimension_numbers = #tpu.dot_dimension_numbers<[1], [0], [0], [1], [0, 0, 1, 1], [], []>} : vector<8x16xf32>, vector<16x128xf32>, vector<8x128xf32> -> vector<8x128xf32>
    %c1_167 = arith.constant 1 : index
    %c0_168 = arith.constant 0 : index
    %c0_169 = arith.constant 0 : index
    %389 = vector.load %arg8[%c1_167, %c0_168, %c0_169] : memref<3x128x128xbf16, #tpu.memory_space<vmem>>, vector<1x128x128xbf16>
    %390 = vector.shape_cast %389 : vector<1x128x128xbf16> to vector<128x128xbf16>
    %391 = arith.truncf %388 : vector<8x128xf32> to vector<8x128xbf16>
    %cst_170 = arith.constant dense<0.000000e+00> : vector<8x128xf32>
    %392 = tpu.matmul %391, %390, %cst_170 {dimension_numbers = #tpu.dot_dimension_numbers<[1], [0], [0], [1], [0, 0, 1, 1], [], []>} : vector<8x128xbf16>, vector<128x128xbf16>, vector<8x128xf32> -> vector<8x128xf32>
    %c1_171 = arith.constant 1 : index
    %c0_172 = arith.constant 0 : index
    %c0_173 = arith.constant 0 : index
    %393 = vector.load %arg9[%c1_171, %c0_172, %c0_173] : memref<3x1x128xf32, #tpu.memory_space<vmem>>, vector<1x1x128xf32>
    %394 = vector.shape_cast %393 : vector<1x1x128xf32> to vector<1x128xf32>
    %395 = vector.broadcast %394 : vector<1x128xf32> to vector<8x128xf32>
    %396 = arith.addf %392, %395 : vector<8x128xf32>
    %397 = vector.extract_strided_slice %258 {offsets = [0, 128], sizes = [8, 128], strides = [1, 1]} : vector<8x256xf32> to vector<8x128xf32>
    %398 = arith.addf %396, %397 : vector<8x128xf32>
    %399 = arith.negf %398 : vector<8x128xf32>
    %400 = math.exp %399 : vector<8x128xf32>
    %cst_174 = arith.constant 1.000000e+00 : f32
    %401 = vector.broadcast %cst_174 : f32 to vector<8x128xf32>
    %402 = arith.addf %401, %400 : vector<8x128xf32>
    %403 = arith.divf %401, %402 : vector<8x128xf32>
    %404 = vector.extract_strided_slice %258 {offsets = [0, 0], sizes = [8, 128], strides = [1, 1]} : vector<8x256xf32> to vector<8x128xf32>
    %405 = arith.subf %404, %388 : vector<8x128xf32>
    %406 = arith.mulf %403, %405 : vector<8x128xf32>
    %407 = arith.addf %388, %406 : vector<8x128xf32>
    %c2_175 = arith.constant 2 : index
    %c0_176 = arith.constant 0 : index
    %c0_177 = arith.constant 0 : index
    %408 = vector.load %arg8[%c2_175, %c0_176, %c0_177] : memref<3x128x128xbf16, #tpu.memory_space<vmem>>, vector<1x128x128xbf16>
    %409 = vector.shape_cast %408 : vector<1x128x128xbf16> to vector<128x128xbf16>
    %410 = arith.truncf %407 : vector<8x128xf32> to vector<8x128xbf16>
    %cst_178 = arith.constant dense<0.000000e+00> : vector<8x128xf32>
    %411 = tpu.matmul %410, %409, %cst_178 {dimension_numbers = #tpu.dot_dimension_numbers<[1], [0], [0], [1], [0, 0, 1, 1], [], []>} : vector<8x128xbf16>, vector<128x128xbf16>, vector<8x128xf32> -> vector<8x128xf32>
    %412 = arith.addf %196, %411 : vector<8x128xf32>
    %c2_179 = arith.constant 2 : index
    %c0_180 = arith.constant 0 : index
    %c0_181 = arith.constant 0 : index
    %413 = vector.load %arg9[%c2_179, %c0_180, %c0_181] : memref<3x1x128xf32, #tpu.memory_space<vmem>>, vector<1x1x128xf32>
    %414 = vector.shape_cast %413 : vector<1x1x128xf32> to vector<1x128xf32>
    %415 = vector.broadcast %414 : vector<1x128xf32> to vector<8x128xf32>
    %416 = arith.addf %412, %415 : vector<8x128xf32>
    %c2_182 = arith.constant 2 : index
    %c0_183 = arith.constant 0 : index
    %c0_184 = arith.constant 0 : index
    %417 = vector.load %arg12[%c2_182, %c0_183, %c0_184] : memref<6x1x128xf32, #tpu.memory_space<vmem>>, vector<1x1x128xf32>
    %418 = vector.shape_cast %417 : vector<1x1x128xf32> to vector<1x128xf32>
    %c3_185 = arith.constant 3 : index
    %c0_186 = arith.constant 0 : index
    %c0_187 = arith.constant 0 : index
    %419 = vector.load %arg12[%c3_185, %c0_186, %c0_187] : memref<6x1x128xf32, #tpu.memory_space<vmem>>, vector<1x1x128xf32>
    %420 = vector.shape_cast %419 : vector<1x1x128xf32> to vector<1x128xf32>
    %421 = vector.broadcast %4 : vector<1x128xf32> to vector<8x128xf32>
    %422 = arith.mulf %416, %421 : vector<8x128xf32>
    %cst_188 = arith.constant dense<0.000000e+00> : vector<8xf32>
    %423 = vector.multi_reduction <add>, %422, %cst_188 [1] : vector<8x128xf32> to vector<8xf32>
    %424 = vector.shape_cast %423 : vector<8xf32> to vector<8x1xf32>
    %cst_189 = arith.constant 3.125000e-02 : f32
    %425 = vector.broadcast %cst_189 : f32 to vector<8x1xf32>
    %426 = arith.mulf %424, %425 : vector<8x1xf32>
    %427 = vector.broadcast %426 : vector<8x1xf32> to vector<8x128xf32>
    %428 = arith.subf %416, %427 : vector<8x128xf32>
    %429 = vector.broadcast %4 : vector<1x128xf32> to vector<8x128xf32>
    %430 = arith.mulf %428, %429 : vector<8x128xf32>
    %431 = arith.mulf %430, %430 : vector<8x128xf32>
    %cst_190 = arith.constant dense<0.000000e+00> : vector<8xf32>
    %432 = vector.multi_reduction <add>, %431, %cst_190 [1] : vector<8x128xf32> to vector<8xf32>
    %433 = vector.shape_cast %432 : vector<8xf32> to vector<8x1xf32>
    %cst_191 = arith.constant 3.125000e-02 : f32
    %434 = vector.broadcast %cst_191 : f32 to vector<8x1xf32>
    %435 = arith.mulf %433, %434 : vector<8x1xf32>
    %cst_192 = arith.constant 9.99999974E-6 : f32
    %436 = vector.broadcast %cst_192 : f32 to vector<8x1xf32>
    %437 = arith.addf %435, %436 : vector<8x1xf32>
    %438 = math.rsqrt %437 : vector<8x1xf32>
    %439 = vector.broadcast %438 : vector<8x1xf32> to vector<8x128xf32>
    %440 = arith.mulf %430, %439 : vector<8x128xf32>
    %441 = vector.broadcast %418 : vector<1x128xf32> to vector<8x128xf32>
    %442 = arith.mulf %440, %441 : vector<8x128xf32>
    %443 = vector.broadcast %420 : vector<1x128xf32> to vector<8x128xf32>
    %444 = arith.addf %442, %443 : vector<8x128xf32>
    %c0_193 = arith.constant 0 : index
    %c0_194 = arith.constant 0 : index
    %445 = vector.load %arg13[%c0_193, %c0_194] : memref<128x128xbf16, #tpu.memory_space<vmem>>, vector<128x128xbf16>
    %446 = arith.truncf %444 : vector<8x128xf32> to vector<8x128xbf16>
    %cst_195 = arith.constant dense<0.000000e+00> : vector<8x128xf32>
    %447 = tpu.matmul %446, %445, %cst_195 {dimension_numbers = #tpu.dot_dimension_numbers<[1], [0], [0], [1], [0, 0, 1, 1], [], []>} : vector<8x128xbf16>, vector<128x128xbf16>, vector<8x128xf32> -> vector<8x128xf32>
    %c0_196 = arith.constant 0 : index
    %c0_197 = arith.constant 0 : index
    %448 = vector.load %arg14[%c0_196, %c0_197] : memref<1x128xf32, #tpu.memory_space<vmem>>, vector<1x128xf32>
    %449 = vector.broadcast %448 : vector<1x128xf32> to vector<8x128xf32>
    %450 = arith.addf %447, %449 : vector<8x128xf32>
    %cst_198 = arith.constant 0.000000e+00 : f32
    %451 = vector.broadcast %cst_198 : f32 to vector<8x128xf32>
    %452 = arith.maximumf %450, %451 : vector<8x128xf32>
    %c0_199 = arith.constant 0 : index
    %c0_200 = arith.constant 0 : index
    %453 = vector.load %arg15[%c0_199, %c0_200] : memref<128x128xbf16, #tpu.memory_space<vmem>>, vector<128x128xbf16>
    %454 = arith.truncf %452 : vector<8x128xf32> to vector<8x128xbf16>
    %cst_201 = arith.constant dense<0.000000e+00> : vector<8x128xf32>
    %455 = tpu.matmul %454, %453, %cst_201 {dimension_numbers = #tpu.dot_dimension_numbers<[1], [0], [0], [1], [0, 0, 1, 1], [], []>} : vector<8x128xbf16>, vector<128x128xbf16>, vector<8x128xf32> -> vector<8x128xf32>
    %456 = arith.addf %416, %455 : vector<8x128xf32>
    %c0_202 = arith.constant 0 : index
    %c0_203 = arith.constant 0 : index
    %457 = vector.load %arg16[%c0_202, %c0_203] : memref<1x128xf32, #tpu.memory_space<vmem>>, vector<1x128xf32>
    %458 = vector.broadcast %457 : vector<1x128xf32> to vector<8x128xf32>
    %459 = arith.addf %456, %458 : vector<8x128xf32>
    %c4_204 = arith.constant 4 : index
    %c0_205 = arith.constant 0 : index
    %c0_206 = arith.constant 0 : index
    %460 = vector.load %arg12[%c4_204, %c0_205, %c0_206] : memref<6x1x128xf32, #tpu.memory_space<vmem>>, vector<1x1x128xf32>
    %461 = vector.shape_cast %460 : vector<1x1x128xf32> to vector<1x128xf32>
    %c5_207 = arith.constant 5 : index
    %c0_208 = arith.constant 0 : index
    %c0_209 = arith.constant 0 : index
    %462 = vector.load %arg12[%c5_207, %c0_208, %c0_209] : memref<6x1x128xf32, #tpu.memory_space<vmem>>, vector<1x1x128xf32>
    %463 = vector.shape_cast %462 : vector<1x1x128xf32> to vector<1x128xf32>
    %464 = vector.broadcast %4 : vector<1x128xf32> to vector<8x128xf32>
    %465 = arith.mulf %459, %464 : vector<8x128xf32>
    %cst_210 = arith.constant dense<0.000000e+00> : vector<8xf32>
    %466 = vector.multi_reduction <add>, %465, %cst_210 [1] : vector<8x128xf32> to vector<8xf32>
    %467 = vector.shape_cast %466 : vector<8xf32> to vector<8x1xf32>
    %cst_211 = arith.constant 3.125000e-02 : f32
    %468 = vector.broadcast %cst_211 : f32 to vector<8x1xf32>
    %469 = arith.mulf %467, %468 : vector<8x1xf32>
    %470 = vector.broadcast %469 : vector<8x1xf32> to vector<8x128xf32>
    %471 = arith.subf %459, %470 : vector<8x128xf32>
    %472 = vector.broadcast %4 : vector<1x128xf32> to vector<8x128xf32>
    %473 = arith.mulf %471, %472 : vector<8x128xf32>
    %474 = arith.mulf %473, %473 : vector<8x128xf32>
    %cst_212 = arith.constant dense<0.000000e+00> : vector<8xf32>
    %475 = vector.multi_reduction <add>, %474, %cst_212 [1] : vector<8x128xf32> to vector<8xf32>
    %476 = vector.shape_cast %475 : vector<8xf32> to vector<8x1xf32>
    %cst_213 = arith.constant 3.125000e-02 : f32
    %477 = vector.broadcast %cst_213 : f32 to vector<8x1xf32>
    %478 = arith.mulf %476, %477 : vector<8x1xf32>
    %cst_214 = arith.constant 9.99999974E-6 : f32
    %479 = vector.broadcast %cst_214 : f32 to vector<8x1xf32>
    %480 = arith.addf %478, %479 : vector<8x1xf32>
    %481 = math.rsqrt %480 : vector<8x1xf32>
    %482 = vector.broadcast %481 : vector<8x1xf32> to vector<8x128xf32>
    %483 = arith.mulf %473, %482 : vector<8x128xf32>
    %484 = vector.broadcast %461 : vector<1x128xf32> to vector<8x128xf32>
    %485 = arith.mulf %483, %484 : vector<8x128xf32>
    %486 = vector.broadcast %463 : vector<1x128xf32> to vector<8x128xf32>
    %487 = arith.addf %485, %486 : vector<8x128xf32>
    %c0_215 = arith.constant 0 : index
    %c0_216 = arith.constant 0 : index
    %488 = vector.load %arg19[%c0_215, %c0_216] : memref<8x128xf32, #tpu.memory_space<vmem>>, vector<8x128xf32>
    tpu.vector_store %arg19[%c0_215, %c0_216], %487 {strides = array<i32>} : memref<8x128xf32, #tpu.memory_space<vmem>>, vector<8x128xf32>,
    return
  }
}

</mosaic_0001>

<llo_original>
// kernel: cooperative_interaction_subgraph.1
$region0: #{cooperative_interaction_subgraph.1}
  #allocation0 [shape = 'u32[]', space=smem, size = 0x4, offset = 0x4, fixed_abs, tag = 'smem constant byte address 0x4 - core index']
  #allocation1 [shape = 'u32[72,128]{1,0:T(1,128)}', space=vmem, size = 0x9000, scoped, tag = 'internal scratch']
  %s0 = inlined_call_operand.vmem [shape: f32[8,128], index: 0, kind: input, shape index: {}]
  %s1 = inlined_call_operand.vmem [shape: f32[8,128], index: 1, kind: input, shape index: {}]
  %s2 = inlined_call_operand.vmem [shape: s32[16,1], index: 2, kind: input, shape index: {}]
  %s3 = inlined_call_operand.vmem [shape: s32[16,1], index: 3, kind: input, shape index: {}]
  %s4 = inlined_call_operand.vmem [shape: bf16[2,2,128], index: 4, kind: input, shape index: {}]
  %s5 = inlined_call_operand.vmem [shape: bf16[3,128,128], index: 5, kind: input, shape index: {}]
  %s6 = inlined_call_operand.vmem [shape: f32[5,1,128], index: 6, kind: input, shape index: {}]
  %s7 = inlined_call_operand.vmem [shape: f32[8,1,128], index: 7, kind: input, shape index: {}]
  %s8 = inlined_call_operand.vmem [shape: bf16[3,128,128], index: 8, kind: input, shape index: {}]
  %s9 = inlined_call_operand.vmem [shape: f32[3,1,128], index: 9, kind: input, shape index: {}]
  %s10 = inlined_call_operand.vmem [shape: bf16[3,128,256], index: 10, kind: input, shape index: {}]
  %s11 = inlined_call_operand.vmem [shape: f32[3,1,256], index: 11, kind: input, shape index: {}]
  %s12 = inlined_call_operand.vmem [shape: f32[6,1,128], index: 12, kind: input, shape index: {}]
  %s13 = inlined_call_operand.vmem [shape: bf16[128,128], index: 13, kind: input, shape index: {}]
  %s14 = inlined_call_operand.vmem [shape: f32[1,128], index: 14, kind: input, shape index: {}]
  %s15 = inlined_call_operand.vmem [shape: bf16[128,128], index: 15, kind: input, shape index: {}]
  %s16 = inlined_call_operand.vmem [shape: f32[1,128], index: 16, kind: input, shape index: {}]
  %s17 = inlined_call_operand.vmem [shape: f32[128,8], index: 17, kind: input, shape index: {}]
  %s18 = inlined_call_operand.vmem [shape: f32[8,128], index: 18, kind: input, shape index: {}]
  %s19 = inlined_call_operand.hbm [shape: f32[8,128], index: 19, kind: output, shape index: {}]
  %s20 = sld [smem:[#allocation0]]
  $region86: #{cooperative_interaction_subgraph.1} parent=0
    _
  %s22 = ssub.s32 1, %s20
  %s23 = scalar_select 0, %s22, %s20
  $region1: #{cooperative_interaction_subgraph.1} parent=0
    #allocation2 [shape = 'u8[4096]{0}', space=vmem, size = 0x1000, scoped, tag = 'output window, operand 0, single buffered']
    #allocation3 [shape = 's32[1]{0}', space=sflag, size = 0x4, scoped, tag = 'scoped memory for cooperative_interaction_subgraph.1']
    %24 = vsyncpa [#allocation3], 0
    // Predicated region
    $region2: #{cooperative_interaction_subgraph.1} parent=1 // pred_check
      _
    $region3: #{cooperative_interaction_subgraph.1} parent=1 // pred_check_branch
      %26 = sbr.rel (0) target = $region5
    $region4: #{cooperative_interaction_subgraph.1} parent=1 // pred_region
      _
    $region5: #{cooperative_interaction_subgraph.1} parent=1 // pred_fallthru
      _
    // Predicated region
    $region6: #{cooperative_interaction_subgraph.1} parent=1 // pred_check
      _
    $region7: #{cooperative_interaction_subgraph.1} parent=1 // pred_check_branch
      %28 = sbr.rel (0) target = $region9
    $region8: #{cooperative_interaction_subgraph.1} parent=1 // pred_region
      _
    $region9: #{cooperative_interaction_subgraph.1} parent=1 // pred_fallthru
      _
    // Predicated region
    $region10: #{cooperative_interaction_subgraph.1} parent=1 // pred_check
      _
    $region11: #{cooperative_interaction_subgraph.1} parent=1 // pred_check_branch
      %30 = sbr.rel (0) target = $region13
    $region12: #{cooperative_interaction_subgraph.1} parent=1 // pred_region
      _
    $region13: #{cooperative_interaction_subgraph.1} parent=1 // pred_fallthru
      _
    // Predicated region
    $region14: #{cooperative_interaction_subgraph.1} parent=1 // pred_check
      _
    $region15: #{cooperative_interaction_subgraph.1} parent=1 // pred_check_branch
      %32 = sbr.rel (0) target = $region17
    $region16: #{cooperative_interaction_subgraph.1} parent=1 // pred_region
      _
    $region17: #{cooperative_interaction_subgraph.1} parent=1 // pred_fallthru
      _
    // Predicated region
    $region18: #{cooperative_interaction_subgraph.1} parent=1 // pred_check
      _
    $region19: #{cooperative_interaction_subgraph.1} parent=1 // pred_check_branch
      %34 = sbr.rel (0) target = $region21
    $region20: #{cooperative_interaction_subgraph.1} parent=1 // pred_region
      _
    $region21: #{cooperative_interaction_subgraph.1} parent=1 // pred_fallthru
      _
    // Predicated region
    $region22: #{cooperative_interaction_subgraph.1} parent=1 // pred_check
      _
    $region23: #{cooperative_interaction_subgraph.1} parent=1 // pred_check_branch
      %36 = sbr.rel (0) target = $region25
    $region24: #{cooperative_interaction_subgraph.1} parent=1 // pred_region
      _
    $region25: #{cooperative_interaction_subgraph.1} parent=1 // pred_fallthru
      _
    // Predicated region
    $region26: #{cooperative_interaction_subgraph.1} parent=1 // pred_check
      _
    $region27: #{cooperative_interaction_subgraph.1} parent=1 // pred_check_branch
      %38 = sbr.rel (0) target = $region29
    $region28: #{cooperative_interaction_subgraph.1} parent=1 // pred_region
      _
    $region29: #{cooperative_interaction_subgraph.1} parent=1 // pred_fallthru
      _
    // Predicated region
    $region30: #{cooperative_interaction_subgraph.1} parent=1 // pred_check
      _
    $region31: #{cooperative_interaction_subgraph.1} parent=1 // pred_check_branch
      %40 = sbr.rel (0) target = $region33
    $region32: #{cooperative_interaction_subgraph.1} parent=1 // pred_region
      _
    $region33: #{cooperative_interaction_subgraph.1} parent=1 // pred_fallthru
      _
    // Predicated region
    $region34: #{cooperative_interaction_subgraph.1} parent=1 // pred_check
      _
    $region35: #{cooperative_interaction_subgraph.1} parent=1 // pred_check_branch
      %42 = sbr.rel (0) target = $region37
    $region36: #{cooperative_interaction_subgraph.1} parent=1 // pred_region
      _
    $region37: #{cooperative_interaction_subgraph.1} parent=1 // pred_fallthru
      _
    // Predicated region
    $region38: #{cooperative_interaction_subgraph.1} parent=1 // pred_check
      _
    $region39: #{cooperative_interaction_subgraph.1} parent=1 // pred_check_branch
      %44 = sbr.rel (0) target = $region41
    $region40: #{cooperative_interaction_subgraph.1} parent=1 // pred_region
      _
    $region41: #{cooperative_interaction_subgraph.1} parent=1 // pred_fallthru
      _
    // Predicated region
    $region42: #{cooperative_interaction_subgraph.1} parent=1 // pred_check
      _
    $region43: #{cooperative_interaction_subgraph.1} parent=1 // pred_check_branch
      %46 = sbr.rel (0) target = $region45
    $region44: #{cooperative_interaction_subgraph.1} parent=1 // pred_region
      _
    $region45: #{cooperative_interaction_subgraph.1} parent=1 // pred_fallthru
      _
    // Predicated region
    $region46: #{cooperative_interaction_subgraph.1} parent=1 // pred_check
      _
    $region47: #{cooperative_interaction_subgraph.1} parent=1 // pred_check_branch
      %48 = sbr.rel (0) target = $region49
    $region48: #{cooperative_interaction_subgraph.1} parent=1 // pred_region
      _
    $region49: #{cooperative_interaction_subgraph.1} parent=1 // pred_fallthru
      _
    // Predicated region
    $region50: #{cooperative_interaction_subgraph.1} parent=1 // pred_check
      _
    $region51: #{cooperative_interaction_subgraph.1} parent=1 // pred_check_branch
      %50 = sbr.rel (0) target = $region53
    $region52: #{cooperative_interaction_subgraph.1} parent=1 // pred_region
      _
    $region53: #{cooperative_interaction_subgraph.1} parent=1 // pred_fallthru
      _
    // Predicated region
    $region54: #{cooperative_interaction_subgraph.1} parent=1 // pred_check
      _
    $region55: #{cooperative_interaction_subgraph.1} parent=1 // pred_check_branch
      %52 = sbr.rel (0) target = $region57
    $region56: #{cooperative_interaction_subgraph.1} parent=1 // pred_region
      _
    $region57: #{cooperative_interaction_subgraph.1} parent=1 // pred_fallthru
      _
    // Predicated region
    $region58: #{cooperative_interaction_subgraph.1} parent=1 // pred_check
      _
    $region59: #{cooperative_interaction_subgraph.1} parent=1 // pred_check_branch
      %54 = sbr.rel (0) target = $region61
    $region60: #{cooperative_interaction_subgraph.1} parent=1 // pred_region
      _
    $region61: #{cooperative_interaction_subgraph.1} parent=1 // pred_fallthru
      _
    // Predicated region
    $region62: #{cooperative_interaction_subgraph.1} parent=1 // pred_check
      _
    $region63: #{cooperative_interaction_subgraph.1} parent=1 // pred_check_branch
      %56 = sbr.rel (0) target = $region65
    $region64: #{cooperative_interaction_subgraph.1} parent=1 // pred_region
      _
    $region65: #{cooperative_interaction_subgraph.1} parent=1 // pred_fallthru
      _
    // Predicated region
    $region66: #{cooperative_interaction_subgraph.1} parent=1 // pred_check
      _
    $region67: #{cooperative_interaction_subgraph.1} parent=1 // pred_check_branch
      %58 = sbr.rel (0) target = $region69
    $region68: #{cooperative_interaction_subgraph.1} parent=1 // pred_region
      _
    $region69: #{cooperative_interaction_subgraph.1} parent=1 // pred_fallthru
      _
    // Predicated region
    $region70: #{cooperative_interaction_subgraph.1} parent=1 // pred_check
      _
    $region71: #{cooperative_interaction_subgraph.1} parent=1 // pred_check_branch
      %60 = sbr.rel (0) target = $region73
    $region72: #{cooperative_interaction_subgraph.1} parent=1 // pred_region
      _
    $region73: #{cooperative_interaction_subgraph.1} parent=1 // pred_fallthru
      _
    // Predicated region
    $region74: #{cooperative_interaction_subgraph.1} parent=1 // pred_check
      _
    $region75: #{cooperative_interaction_subgraph.1} parent=1 // pred_check_branch
      %62 = sbr.rel (0) target = $region77
    $region76: #{cooperative_interaction_subgraph.1} parent=1 // pred_region
      _
    $region77: #{cooperative_interaction_subgraph.1} parent=1 // pred_fallthru
      _
    %v64 = vlaneseq
    %v65 = vand.u32 %v64, 127
    %vm66 = vcmp.lt.s32.totalorder %v65, 32
    %v67 = vsel %vm66, 1, 0
    %v68 = vcvt.s32.f32 %v67
    %v69 = vld [vmem:[%s2] sm:$0xff]
    %v70 = vld [vmem:[%s2 + $0x8] sm:$0xff]
    %71 = vset.pattern.permute.xlu0 0
    %72 = vperm.xlu0 %71, %v69
    %v73 = vpop.permute.xlu0 %72
    %74 = vset.pattern.permute.xlu0 0
    %75 = vperm.xlu0 %74, %v70
    %v76 = vpop.permute.xlu0 %75
    %vm77 = vcmp.eq.s32.totalorder %v65, %v73
    %vm78 = vcmp.eq.s32.totalorder %v65, %v76
    %v79 = vsel %vm77, 1, 0
    %v80 = vsel %vm78, 1, 0
    %v81 = vcvt.s32.f32 %v79
    %v82 = vcvt.s32.f32 %v80
    %v83 = vld [vmem:[%s3] sm:$0xff]
    %v84 = vld [vmem:[%s3 + $0x8] sm:$0xff]
    %85 = vset.pattern.permute.xlu0 0
    %86 = vperm.xlu0 %85, %v83
    %v87 = vpop.permute.xlu0 %86
    %88 = vset.pattern.permute.xlu0 0
    %89 = vperm.xlu0 %88, %v84
    %v90 = vpop.permute.xlu0 %89
    %vm91 = vcmp.eq.s32.totalorder %v65, %v87
    %vm92 = vcmp.eq.s32.totalorder %v65, %v90
    %v93 = vsel %vm91, 1, 0
    %v94 = vsel %vm92, 1, 0
    %v95 = vcvt.s32.f32 %v93
    %v96 = vcvt.s32.f32 %v94
    %v97 = vld [vmem:[%s1] sm:$0xff]
    %vm98 = vcmask 64512
    %v100 = vsel %vm98, %v81, 0
    %v103 = vsel %vm98, %v82, 0
    %105 = vmatpush.msra.mxu0 0.0
    %106 = vmatpush.msra.mxu0 0.0
    %107 = vmatpush.msra.mxu0 0.0
    %108 = vmatpush.msra.mxu0 0.0
    %109 = vmatpush.msra.mxu0 0.0
    %110 = vmatpush.msra.mxu0 0.0
    %111 = vmatpush.msra.mxu0 0.0
    %112 = vmatpush.msra.mxu0 0.0
    %113 = vmatpush.msra.mxu0 0.0
    %114 = vmatpush.msra.mxu0 0.0
    %115 = vmatpush.msra.mxu0 0.0
    %116 = vmatpush.msra.mxu0 0.0
    %117 = vmatpush.msra.mxu0 0.0
    %118 = vmatpush.msra.mxu0 0.0
    %119 = vmatpush.msra.mxu0 0.0
    %120 = vmatpush.msra.mxu0 %v97
    %121 = vmatmul.f32.gmra.mxu0 %v100
    %v122 = vpop.f32.mrf.mxu0
    %v123 = vadd.f32 0.0, %v122
    %124 = vmatmul.f32.gmra.mxu0 %v103
    %v125 = vpop.f32.mrf.mxu0
    %v126 = vadd.f32 0.0, %v125
    %127 = vdwg.mxu0
    %v129 = vsel %vm98, %v95, 0
    %v132 = vsel %vm98, %v96, 0
    %134 = vmatpush.msra.mxu0 0.0
    %135 = vmatpush.msra.mxu0 0.0
    %136 = vmatpush.msra.mxu0 0.0
    %137 = vmatpush.msra.mxu0 0.0
    %138 = vmatpush.msra.mxu0 0.0
    %139 = vmatpush.msra.mxu0 0.0
    %140 = vmatpush.msra.mxu0 0.0
    %141 = vmatpush.msra.mxu0 0.0
    %142 = vmatpush.msra.mxu0 0.0
    %143 = vmatpush.msra.mxu0 0.0
    %144 = vmatpush.msra.mxu0 0.0
    %145 = vmatpush.msra.mxu0 0.0
    %146 = vmatpush.msra.mxu0 0.0
    %147 = vmatpush.msra.mxu0 0.0
    %148 = vmatpush.msra.mxu0 0.0
    %149 = vmatpush.msra.mxu0 %v97
    %150 = vmatmul.f32.gmra.mxu0 %v129
    %v151 = vpop.f32.mrf.mxu0
    %v152 = vadd.f32 0.0, %v151
    %153 = vmatmul.f32.gmra.mxu0 %v132
    %v154 = vpop.f32.mrf.mxu0
    %v155 = vadd.f32 0.0, %v154
    %156 = vdwg.mxu0
    %v157 = vsub.f32 %v123, %v152
    %v158 = vsub.f32 %v126, %v155
    %161 = vrot.lane.b32.xlu0 %v152, 126
    %v162 = vpop.permute.xlu0 %161
    %163 = vrot.lane.b32.xlu0 %v155, 126
    %v164 = vpop.permute.xlu0 %163
    %v167 = vmul.f32 %v157, %v162
    %v168 = vmul.f32 %v158, %v164
    %169 = vrot.lane.b32.xlu0 %v152, 125
    %v170 = vpop.permute.xlu0 %169
    %171 = vrot.lane.b32.xlu0 %v155, 125
    %v172 = vpop.permute.xlu0 %171
    %v175 = vmul.f32 %v157, %v170
    %v176 = vmul.f32 %v158, %v172
    %179 = vrot.lane.b32.xlu0 %v175, 127
    %v180 = vpop.permute.xlu0 %179
    %181 = vrot.lane.b32.xlu0 %v176, 127
    %v182 = vpop.permute.xlu0 %181
    %v185 = vadd.f32 %v167, %v180
    %v186 = vadd.f32 %v168, %v182
    %187 = vrot.lane.b32.xlu0 %v152, 124
    %v188 = vpop.permute.xlu0 %187
    %189 = vrot.lane.b32.xlu0 %v155, 124
    %v190 = vpop.permute.xlu0 %189
    %v193 = vmul.f32 %v157, %v188
    %v194 = vmul.f32 %v158, %v190
    %197 = vrot.lane.b32.xlu0 %v193, 127
    %v198 = vpop.permute.xlu0 %197
    %199 = vrot.lane.b32.xlu0 %v194, 127
    %v200 = vpop.permute.xlu0 %199
    %v203 = vadd.f32 %v175, %v198
    %v204 = vadd.f32 %v176, %v200
    %207 = vrot.lane.b32.xlu0 %v203, 1
    %v208 = vpop.permute.xlu0 %207
    %209 = vrot.lane.b32.xlu0 %v204, 1
    %v210 = vpop.permute.xlu0 %209
    %vm213 = vcmask 7168
    %v214 = vsel %vm213, %v185, %v208
    %v215 = vsel %vm213, %v186, %v210
    %v216 = vand.u32 2147483647, %v157
    %vm217 = vcmp.le.f32.partialorder %v216, 0.7853982
    %vm218 = vcmp.lt.s32.totalorder %v157, 0
    %v219 = vand.u32 %v157, 2139095040
    %v220 = vshrl.u32 %v219, 23
    %v221 = vsub.s32 %v220, 127
    %v222 = vand.u32 2147483647, %v157
    %v223 = vand.u32 %v222, 8388607
    %v224 = vor.u32 %v223, 8388608
    %v225 = vsub.s32 0, %v224
    %v226 = vadd.s32 %v221, 1
    %vm227 = vcmp.gt.s32.totalorder %v226, 0
    %v228 = vsel %vm227, %v226, 0
    %v229 = vshrl.u32 %v228, 5
    %v230 = vand.u32 %v228, 31
    %v231 = vsub.s32 32, %v230
    %v232 = vshrl.u32 683565275, %v231
    %v233 = vshll.u32 683565275, %v230
    %v234 = vshrl.u32 2475754826, %v231
    %v235 = vor.u32 %v233, %v234
    %v236 = vshll.u32 2475754826, %v230
    %v237 = vshrl.u32 2131351028, %v231
    %v238 = vor.u32 %v236, %v237
    %v239 = vshll.u32 2131351028, %v230
    %v240 = vshrl.u32 2102212464, %v231
    %v241 = vor.u32 %v239, %v240
    %v242 = vshll.u32 2102212464, %v230
    %v243 = vshrl.u32 920167782, %v231
    %v244 = vor.u32 %v242, %v243
    %v245 = vshll.u32 920167782, %v230
    %v246 = vshrl.u32 1326507024, %v231
    %v247 = vor.u32 %v245, %v246
    %vm248 = vcmp.lt.s32.totalorder %v229, 1
    %vm249 = vcmp.lt.s32.totalorder %v229, 2
    %vm250 = vcmp.lt.s32.totalorder %v229, 3
    %vm251 = vcmp.lt.s32.totalorder %v229, 4
    %v252 = vsel %vm248, %v232, %v235
    %v253 = vsel %vm251, %v241, 2102212464
    %v254 = vsel %vm250, %v238, %v253
    %v255 = vsel %vm249, %v252, %v254
    %v256 = vsel %vm248, %v235, %v238
    %v257 = vsel %vm251, %v244, 920167782
    %v258 = vsel %vm250, %v241, %v257
    %v259 = vsel %vm249, %v256, %v258
    %v260 = vsel %vm248, %v238, %v241
    %v261 = vsel %vm251, %v247, 1326507024
    %v262 = vsel %vm250, %v244, %v261
    %v263 = vsel %vm249, %v260, %v262
    %v264 = vshll.u32 %v224, 8
    %v265 = vand.u32 %v264, 65535
    %v266 = vshrl.u32 %v264, 16
    %v267 = vand.u32 %v263, 65535
    %v268 = vshrl.u32 %v263, 16
    %v269 = vmul.u32 %v265, %v267
    %v270 = vmul.u32 %v265, %v268
    %v271 = vmul.u32 %v266, %v267
    %v272 = vmul.u32 %v266, %v268
    %v273 = vshll.u32 %v270, 16
    %v274 = vshrl.u32 %v270, 16
    %v275 = vshll.u32 %v271, 16
    %v276 = vshrl.u32 %v271, 16
    %vm277 = vc.u32 %v269, %v273
    %v278 = vsel %vm277, 1, 0
    %v279 = vadd.s32 %v269, %v273
    %v280 = vadd.s32 %v272, %v278
    %vm281 = vc.u32 %v279, %v275
    %v282 = vsel %vm281, 1, 0
    %v283 = vadd.s32 %v279, %v275
    %v284 = vadd.s32 %v280, %v282
    %v285 = vadd.s32 %v284, %v274
    %v286 = vadd.s32 %v285, %v276
    %v287 = vand.u32 %v264, 65535
    %v288 = vshrl.u32 %v264, 16
    %v289 = vand.u32 %v259, 65535
    %v290 = vshrl.u32 %v259, 16
    %v291 = vmul.u32 %v287, %v289
    %v292 = vmul.u32 %v287, %v290
    %v293 = vmul.u32 %v288, %v289
    %v294 = vmul.u32 %v288, %v290
    %v295 = vshll.u32 %v292, 16
    %v296 = vshrl.u32 %v292, 16
    %v297 = vshll.u32 %v293, 16
    %v298 = vshrl.u32 %v293, 16
    %vm299 = vc.u32 %v291, %v295
    %v300 = vsel %vm299, 1, 0
    %v301 = vadd.s32 %v291, %v295
    %v302 = vadd.s32 %v294, %v300
    %vm303 = vc.u32 %v301, %v297
    %v304 = vsel %vm303, 1, 0
    %v305 = vadd.s32 %v301, %v297
    %v306 = vadd.s32 %v302, %v304
    %v307 = vadd.s32 %v306, %v296
    %v308 = vadd.s32 %v307, %v298
    %v309 = vmul.u32 %v264, %v255
    %v310 = vadd.s32 %v286, %v305
    %vm311 = vc.u32 %v286, %v305
    %v312 = vadd.s32 %v308, 1
    %v313 = vsel %vm311, %v312, %v308
    %v314 = vadd.s32 %v309, %v313
    %v315 = vadd.s32 %v314, 536870912
    %v316 = vshrl.u32 %v315, 30
    %v317 = vshll.u32 %v316, 30
    %v318 = vsub.s32 %v314, %v317
    %vm319 = vcmp.lt.s32.totalorder %v318, 0
    %v320 = vsub.s32 0, %v318
    %v321 = vsel %vm319, %v320, %v318
    %v322 = vclz %v321
    %v323 = vsub.s32 %v322, 2
    %vm324 = vcmp.gt.s32.totalorder 0, %v323
    %v325 = vsel %vm324, 0, %v323
    %v326 = vsub.s32 32, %v325
    %v327 = vshll.u32 %v318, %v325
    %v328 = vshrl.u32 %v310, %v326
    %v329 = vor.u32 %v327, %v328
    %v330 = vsub.s32 4294967266, %v325
    %v331 = vadd.s32 %v330, 127
    %v332 = vshll.u32 %v331, 23
    %v333 = vor.u32 4788187, %v332
    %v334 = vand.u32 2147483647, %v333
    %v336 = vcvt.s32.f32 %v329
    %v337 = vmul.f32 %v336, %v334
    %v338 = vxor.u32 %v337, 2147483648
    %v339 = vsel %vm218, %v338, %v337
    %v340 = vsub.s32 4, %v316
    %v341 = vsel %vm218, %v340, %v316
    %v342 = vsel %vm217, %v157, %v339
    %v343 = vsel %vm217, 0, %v341
    %v344 = vmul.f32 %v342, %v342
    %v345 = vmul.f32 %v344, -0.001358992
    %v346 = vadd.f32 %v345, 0.041655596
    %v347 = vmul.f32 %v344, %v346
    %v348 = vadd.f32 %v347, -0.4999988
    %v349 = vmul.f32 %v344, %v348
    %v350 = vadd.f32 1.0, %v349
    %v351 = vmul.f32 %v342, %v342
    %v352 = vmul.f32 %v351, -0.00019511016
    %v353 = vadd.f32 %v352, 0.008332121
    %v354 = vmul.f32 %v351, %v353
    %v355 = vadd.f32 %v354, -0.16666654
    %v356 = vmul.f32 %v351, %v355
    %v357 = vadd.f32 %v356, 1.0
    %v358 = vmul.f32 %v357, %v342
    %vm359 = vweird.f32 %v157
    %v360 = vand.u32 %v343, 3
    %vm361 = vcmp.lt.s32.totalorder %v360, 2
    %vm362 = vcmp.eq.s32.totalorder %v360, 0
    %v363 = vxor.u32 %v358, 2147483648
    %v364 = vsel %vm362, %v350, %v363
    %vm365 = vcmp.eq.s32.totalorder %v360, 2
    %v366 = vxor.u32 %v350, 2147483648
    %v367 = vsel %vm365, %v366, %v358
    %v368 = vsel %vm361, %v364, %v367
    %v369 = vsel %vm359, nan, %v368
    %v370 = vand.u32 2147483647, %v158
    %vm371 = vcmp.le.f32.partialorder %v370, 0.7853982
    %vm372 = vcmp.lt.s32.totalorder %v158, 0
    %v373 = vand.u32 %v158, 2139095040
    %v374 = vshrl.u32 %v373, 23
    %v375 = vsub.s32 %v374, 127
    %v376 = vand.u32 2147483647, %v158
    %v377 = vand.u32 %v376, 8388607
    %v378 = vor.u32 %v377, 8388608
    %v379 = vsub.s32 0, %v378
    %v380 = vadd.s32 %v375, 1
    %vm381 = vcmp.gt.s32.totalorder %v380, 0
    %v382 = vsel %vm381, %v380, 0
    %v383 = vshrl.u32 %v382, 5
    %v384 = vand.u32 %v382, 31
    %v385 = vsub.s32 32, %v384
    %v386 = vshrl.u32 683565275, %v385
    %v387 = vshll.u32 683565275, %v384
    %v388 = vshrl.u32 2475754826, %v385
    %v389 = vor.u32 %v387, %v388
    %v390 = vshll.u32 2475754826, %v384
    %v391 = vshrl.u32 2131351028, %v385
    %v392 = vor.u32 %v390, %v391
    %v393 = vshll.u32 2131351028, %v384
    %v394 = vshrl.u32 2102212464, %v385
    %v395 = vor.u32 %v393, %v394
    %v396 = vshll.u32 2102212464, %v384
    %v397 = vshrl.u32 920167782, %v385
    %v398 = vor.u32 %v396, %v397
    %v399 = vshll.u32 920167782, %v384
    %v400 = vshrl.u32 1326507024, %v385
    %v401 = vor.u32 %v399, %v400
    %vm402 = vcmp.lt.s32.totalorder %v383, 1
    %vm403 = vcmp.lt.s32.totalorder %v383, 2
    %vm404 = vcmp.lt.s32.totalorder %v383, 3
    %vm405 = vcmp.lt.s32.totalorder %v383, 4
    %v406 = vsel %vm402, %v386, %v389
    %v407 = vsel %vm405, %v395, 2102212464
    %v408 = vsel %vm404, %v392, %v407
    %v409 = vsel %vm403, %v406, %v408
    %v410 = vsel %vm402, %v389, %v392
    %v411 = vsel %vm405, %v398, 920167782
    %v412 = vsel %vm404, %v395, %v411
    %v413 = vsel %vm403, %v410, %v412
    %v414 = vsel %vm402, %v392, %v395
    %v415 = vsel %vm405, %v401, 1326507024
    %v416 = vsel %vm404, %v398, %v415
    %v417 = vsel %vm403, %v414, %v416
    %v418 = vshll.u32 %v378, 8
    %v419 = vand.u32 %v418, 65535
    %v420 = vshrl.u32 %v418, 16
    %v421 = vand.u32 %v417, 65535
    %v422 = vshrl.u32 %v417, 16
    %v423 = vmul.u32 %v419, %v421
    %v424 = vmul.u32 %v419, %v422
    %v425 = vmul.u32 %v420, %v421
    %v426 = vmul.u32 %v420, %v422
    %v427 = vshll.u32 %v424, 16
    %v428 = vshrl.u32 %v424, 16
    %v429 = vshll.u32 %v425, 16
    %v430 = vshrl.u32 %v425, 16
    %vm431 = vc.u32 %v423, %v427
    %v432 = vsel %vm431, 1, 0
    %v433 = vadd.s32 %v423, %v427
    %v434 = vadd.s32 %v426, %v432
    %vm435 = vc.u32 %v433, %v429
    %v436 = vsel %vm435, 1, 0
    %v437 = vadd.s32 %v433, %v429
    %v438 = vadd.s32 %v434, %v436
    %v439 = vadd.s32 %v438, %v428
    %v440 = vadd.s32 %v439, %v430
    %v441 = vand.u32 %v418, 65535
    %v442 = vshrl.u32 %v418, 16
    %v443 = vand.u32 %v413, 65535
    %v444 = vshrl.u32 %v413, 16
    %v445 = vmul.u32 %v441, %v443
    %v446 = vmul.u32 %v441, %v444
    %v447 = vmul.u32 %v442, %v443
    %v448 = vmul.u32 %v442, %v444
    %v449 = vshll.u32 %v446, 16
    %v450 = vshrl.u32 %v446, 16
    %v451 = vshll.u32 %v447, 16
    %v452 = vshrl.u32 %v447, 16
    %vm453 = vc.u32 %v445, %v449
    %v454 = vsel %vm453, 1, 0
    %v455 = vadd.s32 %v445, %v449
    %v456 = vadd.s32 %v448, %v454
    %vm457 = vc.u32 %v455, %v451
    %v458 = vsel %vm457, 1, 0
    %v459 = vadd.s32 %v455, %v451
    %v460 = vadd.s32 %v456, %v458
    %v461 = vadd.s32 %v460, %v450
    %v462 = vadd.s32 %v461, %v452
    %v463 = vmul.u32 %v418, %v409
    %v464 = vadd.s32 %v440, %v459
    %vm465 = vc.u32 %v440, %v459
    %v466 = vadd.s32 %v462, 1
    %v467 = vsel %vm465, %v466, %v462
    %v468 = vadd.s32 %v463, %v467
    %v469 = vadd.s32 %v468, 536870912
    %v470 = vshrl.u32 %v469, 30
    %v471 = vshll.u32 %v470, 30
    %v472 = vsub.s32 %v468, %v471
    %vm473 = vcmp.lt.s32.totalorder %v472, 0
    %v474 = vsub.s32 0, %v472
    %v475 = vsel %vm473, %v474, %v472
    %v476 = vclz %v475
    %v477 = vsub.s32 %v476, 2
    %vm478 = vcmp.gt.s32.totalorder 0, %v477
    %v479 = vsel %vm478, 0, %v477
    %v480 = vsub.s32 32, %v479
    %v481 = vshll.u32 %v472, %v479
    %v482 = vshrl.u32 %v464, %v480
    %v483 = vor.u32 %v481, %v482
    %v484 = vsub.s32 4294967266, %v479
    %v485 = vadd.s32 %v484, 127
    %v486 = vshll.u32 %v485, 23
    %v487 = vor.u32 4788187, %v486
    %v488 = vand.u32 2147483647, %v487
    %v490 = vcvt.s32.f32 %v483
    %v491 = vmul.f32 %v490, %v488
    %v492 = vxor.u32 %v491, 2147483648
    %v493 = vsel %vm372, %v492, %v491
    %v494 = vsub.s32 4, %v470
    %v495 = vsel %vm372, %v494, %v470
    %v496 = vsel %vm371, %v158, %v493
    %v497 = vsel %vm371, 0, %v495
    %v498 = vmul.f32 %v496, %v496
    %v499 = vmul.f32 %v498, -0.001358992
    %v500 = vadd.f32 %v499, 0.041655596
    %v501 = vmul.f32 %v498, %v500
    %v502 = vadd.f32 %v501, -0.4999988
    %v503 = vmul.f32 %v498, %v502
    %v504 = vadd.f32 1.0, %v503
    %v505 = vmul.f32 %v496, %v496
    %v506 = vmul.f32 %v505, -0.00019511016
    %v507 = vadd.f32 %v506, 0.008332121
    %v508 = vmul.f32 %v505, %v507
    %v509 = vadd.f32 %v508, -0.16666654
    %v510 = vmul.f32 %v505, %v509
    %v511 = vadd.f32 %v510, 1.0
    %v512 = vmul.f32 %v511, %v496
    %vm513 = vweird.f32 %v158
    %v514 = vand.u32 %v497, 3
    %vm515 = vcmp.lt.s32.totalorder %v514, 2
    %vm516 = vcmp.eq.s32.totalorder %v514, 0
    %v517 = vxor.u32 %v512, 2147483648
    %v518 = vsel %vm516, %v504, %v517
    %vm519 = vcmp.eq.s32.totalorder %v514, 2
    %v520 = vxor.u32 %v504, 2147483648
    %v521 = vsel %vm519, %v520, %v512
    %v522 = vsel %vm515, %v518, %v521
    %v523 = vsel %vm513, nan, %v522
    %v524 = vand.u32 2147483647, %v157
    %vm525 = vcmp.le.f32.partialorder %v524, 0.7853982
    %vm526 = vcmp.lt.s32.totalorder %v157, 0
    %v527 = vand.u32 %v157, 2139095040
    %v528 = vshrl.u32 %v527, 23
    %v529 = vsub.s32 %v528, 127
    %v530 = vand.u32 2147483647, %v157
    %v531 = vand.u32 %v530, 8388607
    %v532 = vor.u32 %v531, 8388608
    %v533 = vsub.s32 0, %v532
    %v534 = vadd.s32 %v529, 1
    %vm535 = vcmp.gt.s32.totalorder %v534, 0
    %v536 = vsel %vm535, %v534, 0
    %v537 = vshrl.u32 %v536, 5
    %v538 = vand.u32 %v536, 31
    %v539 = vsub.s32 32, %v538
    %v540 = vshrl.u32 683565275, %v539
    %v541 = vshll.u32 683565275, %v538
    %v542 = vshrl.u32 2475754826, %v539
    %v543 = vor.u32 %v541, %v542
    %v544 = vshll.u32 2475754826, %v538
    %v545 = vshrl.u32 2131351028, %v539
    %v546 = vor.u32 %v544, %v545
    %v547 = vshll.u32 2131351028, %v538
    %v548 = vshrl.u32 2102212464, %v539
    %v549 = vor.u32 %v547, %v548
    %v550 = vshll.u32 2102212464, %v538
    %v551 = vshrl.u32 920167782, %v539
    %v552 = vor.u32 %v550, %v551
    %v553 = vshll.u32 920167782, %v538
    %v554 = vshrl.u32 1326507024, %v539
    %v555 = vor.u32 %v553, %v554
    %vm556 = vcmp.lt.s32.totalorder %v537, 1
    %vm557 = vcmp.lt.s32.totalorder %v537, 2
    %vm558 = vcmp.lt.s32.totalorder %v537, 3
    %vm559 = vcmp.lt.s32.totalorder %v537, 4
    %v560 = vsel %vm556, %v540, %v543
    %v561 = vsel %vm559, %v549, 2102212464
    %v562 = vsel %vm558, %v546, %v561
    %v563 = vsel %vm557, %v560, %v562
    %v564 = vsel %vm556, %v543, %v546
    %v565 = vsel %vm559, %v552, 920167782
    %v566 = vsel %vm558, %v549, %v565
    %v567 = vsel %vm557, %v564, %v566
    %v568 = vsel %vm556, %v546, %v549
    %v569 = vsel %vm559, %v555, 1326507024
    %v570 = vsel %vm558, %v552, %v569
    %v571 = vsel %vm557, %v568, %v570
    %v572 = vshll.u32 %v532, 8
    %v573 = vand.u32 %v572, 65535
    %v574 = vshrl.u32 %v572, 16
    %v575 = vand.u32 %v571, 65535
    %v576 = vshrl.u32 %v571, 16
    %v577 = vmul.u32 %v573, %v575
    %v578 = vmul.u32 %v573, %v576
    %v579 = vmul.u32 %v574, %v575
    %v580 = vmul.u32 %v574, %v576
    %v581 = vshll.u32 %v578, 16
    %v582 = vshrl.u32 %v578, 16
    %v583 = vshll.u32 %v579, 16
    %v584 = vshrl.u32 %v579, 16
    %vm585 = vc.u32 %v577, %v581
    %v586 = vsel %vm585, 1, 0
    %v587 = vadd.s32 %v577, %v581
    %v588 = vadd.s32 %v580, %v586
    %vm589 = vc.u32 %v587, %v583
    %v590 = vsel %vm589, 1, 0
    %v591 = vadd.s32 %v587, %v583
    %v592 = vadd.s32 %v588, %v590
    %v593 = vadd.s32 %v592, %v582
    %v594 = vadd.s32 %v593, %v584
    %v595 = vand.u32 %v572, 65535
    %v596 = vshrl.u32 %v572, 16
    %v597 = vand.u32 %v567, 65535
    %v598 = vshrl.u32 %v567, 16
    %v599 = vmul.u32 %v595, %v597
    %v600 = vmul.u32 %v595, %v598
    %v601 = vmul.u32 %v596, %v597
    %v602 = vmul.u32 %v596, %v598
    %v603 = vshll.u32 %v600, 16
    %v604 = vshrl.u32 %v600, 16
    %v605 = vshll.u32 %v601, 16
    %v606 = vshrl.u32 %v601, 16
    %vm607 = vc.u32 %v599, %v603
    %v608 = vsel %vm607, 1, 0
    %v609 = vadd.s32 %v599, %v603
    %v610 = vadd.s32 %v602, %v608
    %vm611 = vc.u32 %v609, %v605
    %v612 = vsel %vm611, 1, 0
    %v613 = vadd.s32 %v609, %v605
    %v614 = vadd.s32 %v610, %v612
    %v615 = vadd.s32 %v614, %v604
    %v616 = vadd.s32 %v615, %v606
    %v617 = vmul.u32 %v572, %v563
    %v618 = vadd.s32 %v594, %v613
    %vm619 = vc.u32 %v594, %v613
    %v620 = vadd.s32 %v616, 1
    %v621 = vsel %vm619, %v620, %v616
    %v622 = vadd.s32 %v617, %v621
    %v623 = vadd.s32 %v622, 536870912
    %v624 = vshrl.u32 %v623, 30
    %v625 = vshll.u32 %v624, 30
    %v626 = vsub.s32 %v622, %v625
    %vm627 = vcmp.lt.s32.totalorder %v626, 0
    %v628 = vsub.s32 0, %v626
    %v629 = vsel %vm627, %v628, %v626
    %v630 = vclz %v629
    %v631 = vsub.s32 %v630, 2
    %vm632 = vcmp.gt.s32.totalorder 0, %v631
    %v633 = vsel %vm632, 0, %v631
    %v634 = vsub.s32 32, %v633
    %v635 = vshll.u32 %v626, %v633
    %v636 = vshrl.u32 %v618, %v634
    %v637 = vor.u32 %v635, %v636
    %v638 = vsub.s32 4294967266, %v633
    %v639 = vadd.s32 %v638, 127
    %v640 = vshll.u32 %v639, 23
    %v641 = vor.u32 4788187, %v640
    %v642 = vand.u32 2147483647, %v641
    %v644 = vcvt.s32.f32 %v637
    %v645 = vmul.f32 %v644, %v642
    %v646 = vxor.u32 %v645, 2147483648
    %v647 = vsel %vm526, %v646, %v645
    %v648 = vsub.s32 4, %v624
    %v649 = vsel %vm526, %v648, %v624
    %v650 = vsel %vm525, %v157, %v647
    %v651 = vsel %vm525, 0, %v649
    %v652 = vmul.f32 %v650, %v650
    %v653 = vmul.f32 %v652, -0.001358992
    %v654 = vadd.f32 %v653, 0.041655596
    %v655 = vmul.f32 %v652, %v654
    %v656 = vadd.f32 %v655, -0.4999988
    %v657 = vmul.f32 %v652, %v656
    %v658 = vadd.f32 1.0, %v657
    %v659 = vmul.f32 %v650, %v650
    %v660 = vmul.f32 %v659, -0.00019511016
    %v661 = vadd.f32 %v660, 0.008332121
    %v662 = vmul.f32 %v659, %v661
    %v663 = vadd.f32 %v662, -0.16666654
    %v664 = vmul.f32 %v659, %v663
    %v665 = vadd.f32 %v664, 1.0
    %v666 = vmul.f32 %v665, %v650
    %vm667 = vweird.f32 %v157
    %v668 = vadd.s32 %v651, 3
    %v669 = vand.u32 %v668, 3
    %vm670 = vcmp.lt.s32.totalorder %v669, 2
    %vm671 = vcmp.eq.s32.totalorder %v669, 0
    %v672 = vxor.u32 %v666, 2147483648
    %v673 = vsel %vm671, %v658, %v672
    %vm674 = vcmp.eq.s32.totalorder %v669, 2
    %v675 = vxor.u32 %v658, 2147483648
    %v676 = vsel %vm674, %v675, %v666
    %v677 = vsel %vm670, %v673, %v676
    %v678 = vsel %vm667, nan, %v677
    %v679 = vand.u32 2147483647, %v158
    %vm680 = vcmp.le.f32.partialorder %v679, 0.7853982
    %vm681 = vcmp.lt.s32.totalorder %v158, 0
    %v682 = vand.u32 %v158, 2139095040
    %v683 = vshrl.u32 %v682, 23
    %v684 = vsub.s32 %v683, 127
    %v685 = vand.u32 2147483647, %v158
    %v686 = vand.u32 %v685, 8388607
    %v687 = vor.u32 %v686, 8388608
    %v688 = vsub.s32 0, %v687
    %v689 = vadd.s32 %v684, 1
    %vm690 = vcmp.gt.s32.totalorder %v689, 0
    %v691 = vsel %vm690, %v689, 0
    %v692 = vshrl.u32 %v691, 5
    %v693 = vand.u32 %v691, 31
    %v694 = vsub.s32 32, %v693
    %v695 = vshrl.u32 683565275, %v694
    %v696 = vshll.u32 683565275, %v693
    %v697 = vshrl.u32 2475754826, %v694
    %v698 = vor.u32 %v696, %v697
    %v699 = vshll.u32 2475754826, %v693
    %v700 = vshrl.u32 2131351028, %v694
    %v701 = vor.u32 %v699, %v700
    %v702 = vshll.u32 2131351028, %v693
    %v703 = vshrl.u32 2102212464, %v694
    %v704 = vor.u32 %v702, %v703
    %v705 = vshll.u32 2102212464, %v693
    %v706 = vshrl.u32 920167782, %v694
    %v707 = vor.u32 %v705, %v706
    %v708 = vshll.u32 920167782, %v693
    %v709 = vshrl.u32 1326507024, %v694
    %v710 = vor.u32 %v708, %v709
    %vm711 = vcmp.lt.s32.totalorder %v692, 1
    %vm712 = vcmp.lt.s32.totalorder %v692, 2
    %vm713 = vcmp.lt.s32.totalorder %v692, 3
    %vm714 = vcmp.lt.s32.totalorder %v692, 4
    %v715 = vsel %vm711, %v695, %v698
    %v716 = vsel %vm714, %v704, 2102212464
    %v717 = vsel %vm713, %v701, %v716
    %v718 = vsel %vm712, %v715, %v717
    %v719 = vsel %vm711, %v698, %v701
    %v720 = vsel %vm714, %v707, 920167782
    %v721 = vsel %vm713, %v704, %v720
    %v722 = vsel %vm712, %v719, %v721
    %v723 = vsel %vm711, %v701, %v704
    %v724 = vsel %vm714, %v710, 1326507024
    %v725 = vsel %vm713, %v707, %v724
    %v726 = vsel %vm712, %v723, %v725
    %v727 = vshll.u32 %v687, 8
    %v728 = vand.u32 %v727, 65535
    %v729 = vshrl.u32 %v727, 16
    %v730 = vand.u32 %v726, 65535
    %v731 = vshrl.u32 %v726, 16
    %v732 = vmul.u32 %v728, %v730
    %v733 = vmul.u32 %v728, %v731
    %v734 = vmul.u32 %v729, %v730
    %v735 = vmul.u32 %v729, %v731
    %v736 = vshll.u32 %v733, 16
    %v737 = vshrl.u32 %v733, 16
    %v738 = vshll.u32 %v734, 16
    %v739 = vshrl.u32 %v734, 16
    %vm740 = vc.u32 %v732, %v736
    %v741 = vsel %vm740, 1, 0
    %v742 = vadd.s32 %v732, %v736
    %v743 = vadd.s32 %v735, %v741
    %vm744 = vc.u32 %v742, %v738
    %v745 = vsel %vm744, 1, 0
    %v746 = vadd.s32 %v742, %v738
    %v747 = vadd.s32 %v743, %v745
    %v748 = vadd.s32 %v747, %v737
    %v749 = vadd.s32 %v748, %v739
    %v750 = vand.u32 %v727, 65535
    %v751 = vshrl.u32 %v727, 16
    %v752 = vand.u32 %v722, 65535
    %v753 = vshrl.u32 %v722, 16
    %v754 = vmul.u32 %v750, %v752
    %v755 = vmul.u32 %v750, %v753
    %v756 = vmul.u32 %v751, %v752
    %v757 = vmul.u32 %v751, %v753
    %v758 = vshll.u32 %v755, 16
    %v759 = vshrl.u32 %v755, 16
    %v760 = vshll.u32 %v756, 16
    %v761 = vshrl.u32 %v756, 16
    %vm762 = vc.u32 %v754, %v758
    %v763 = vsel %vm762, 1, 0
    %v764 = vadd.s32 %v754, %v758
    %v765 = vadd.s32 %v757, %v763
    %vm766 = vc.u32 %v764, %v760
    %v767 = vsel %vm766, 1, 0
    %v768 = vadd.s32 %v764, %v760
    %v769 = vadd.s32 %v765, %v767
    %v770 = vadd.s32 %v769, %v759
    %v771 = vadd.s32 %v770, %v761
    %v772 = vmul.u32 %v727, %v718
    %v773 = vadd.s32 %v749, %v768
    %vm774 = vc.u32 %v749, %v768
    %v775 = vadd.s32 %v771, 1
    %v776 = vsel %vm774, %v775, %v771
    %v777 = vadd.s32 %v772, %v776
    %v778 = vadd.s32 %v777, 536870912
    %v779 = vshrl.u32 %v778, 30
    %v780 = vshll.u32 %v779, 30
    %v781 = vsub.s32 %v777, %v780
    %vm782 = vcmp.lt.s32.totalorder %v781, 0
    %v783 = vsub.s32 0, %v781
    %v784 = vsel %vm782, %v783, %v781
    %v785 = vclz %v784
    %v786 = vsub.s32 %v785, 2
    %vm787 = vcmp.gt.s32.totalorder 0, %v786
    %v788 = vsel %vm787, 0, %v786
    %v789 = vsub.s32 32, %v788
    %v790 = vshll.u32 %v781, %v788
    %v791 = vshrl.u32 %v773, %v789
    %v792 = vor.u32 %v790, %v791
    %v793 = vsub.s32 4294967266, %v788
    %v794 = vadd.s32 %v793, 127
    %v795 = vshll.u32 %v794, 23
    %v796 = vor.u32 4788187, %v795
    %v797 = vand.u32 2147483647, %v796
    %v799 = vcvt.s32.f32 %v792
    %v800 = vmul.f32 %v799, %v797
    %v801 = vxor.u32 %v800, 2147483648
    %v802 = vsel %vm681, %v801, %v800
    %v803 = vsub.s32 4, %v779
    %v804 = vsel %vm681, %v803, %v779
    %v805 = vsel %vm680, %v158, %v802
    %v806 = vsel %vm680, 0, %v804
    %v807 = vmul.f32 %v805, %v805
    %v808 = vmul.f32 %v807, -0.001358992
    %v809 = vadd.f32 %v808, 0.041655596
    %v810 = vmul.f32 %v807, %v809
    %v811 = vadd.f32 %v810, -0.4999988
    %v812 = vmul.f32 %v807, %v811
    %v813 = vadd.f32 1.0, %v812
    %v814 = vmul.f32 %v805, %v805
    %v815 = vmul.f32 %v814, -0.00019511016
    %v816 = vadd.f32 %v815, 0.008332121
    %v817 = vmul.f32 %v814, %v816
    %v818 = vadd.f32 %v817, -0.16666654
    %v819 = vmul.f32 %v814, %v818
    %v820 = vadd.f32 %v819, 1.0
    %v821 = vmul.f32 %v820, %v805
    %vm822 = vweird.f32 %v158
    %v823 = vadd.s32 %v806, 3
    %v824 = vand.u32 %v823, 3
    %vm825 = vcmp.lt.s32.totalorder %v824, 2
    %vm826 = vcmp.eq.s32.totalorder %v824, 0
    %v827 = vxor.u32 %v821, 2147483648
    %v828 = vsel %vm826, %v813, %v827
    %vm829 = vcmp.eq.s32.totalorder %v824, 2
    %v830 = vxor.u32 %v813, 2147483648
    %v831 = vsel %vm829, %v830, %v821
    %v832 = vsel %vm825, %v828, %v831
    %v833 = vsel %vm822, nan, %v832
    %836 = vrot.lane.b32.xlu0 %v369, 122
    %v837 = vpop.permute.xlu0 %836
    %838 = vrot.lane.b32.xlu0 %v523, 122
    %v839 = vpop.permute.xlu0 %838
    %844 = vrot.lane.b32.xlu0 %v678, 123
    %v845 = vpop.permute.xlu0 %844
    %846 = vrot.lane.b32.xlu0 %v833, 123
    %v847 = vpop.permute.xlu0 %846
    %v850 = vsel %vm213, %v837, %v845
    %v851 = vsel %vm213, %v839, %v847
    %v852 = vld [vmem:[%s4] sm:$0x1]
    %v853 = vpack.c.bf16 %v215, %v214
    %v854 = vld [vmem:[%s6] sm:$0x1]
    %v856 = vperm.slane %v854, 0
    %vm858 = vcmask 15360
    %v860 = vsel %vm858, %v853, 0
    %vm862 = vcmask 1040384
    %v864 = vsel %vm862, %v852, 0
    %866 = vmatpush.bf16.msra.mxu0 0
    %867 = vmatpush.bf16.msra.mxu0 0
    %868 = vmatpush.bf16.msra.mxu0 0
    %869 = vmatpush.bf16.msra.mxu0 0
    %870 = vmatpush.bf16.msra.mxu0 0
    %871 = vmatpush.bf16.msra.mxu0 0
    %872 = vmatpush.bf16.msra.mxu0 0
    %873 = vmatpush.bf16.msra.mxu0 %v864
    %874 = vmatmul.bf16.gmra.mxu0 %v860
    %v875 = vpop.f32.mrf.mxu0
    %v876 = vadd.f32 %v856, %v875
    %v877 = vpop.f32.mrf.mxu0
    %v878 = vadd.f32 %v856, %v877
    %879 = vdwg.mxu0
    %v880 = vld [vmem:[%s7] sm:$0x1]
    %s881 = scalar_lea.vmem %s7, 1
    %v882 = vld [vmem:[%s881] sm:$0x1]
    %v883 = vmul.f32 %v876, %v68
    %v884 = vmul.f32 %v878, %v68
    %885 = vadd.xlane.f32.xlu0 %v883
    %v886 = vpop.xlane.xlu0 %885
    %887 = vadd.xlane.f32.xlu0 %v884
    %v888 = vpop.xlane.xlu0 %887
    %v889 = vmul.f32 %v886, 0.03125
    %v890 = vmul.f32 %v888, 0.03125
    %v891 = vsub.f32 %v876, %v889
    %v892 = vsub.f32 %v878, %v890
    %v893 = vmul.f32 %v891, %v68
    %v894 = vmul.f32 %v892, %v68
    %v895 = vmul.f32 %v893, %v893
    %v896 = vmul.f32 %v894, %v894
    %897 = vadd.xlane.f32.xlu0 %v895
    %v898 = vpop.xlane.xlu0 %897
    %899 = vadd.xlane.f32.xlu0 %v896
    %v900 = vpop.xlane.xlu0 %899
    %v901 = vmul.f32 %v898, 0.03125
    %v902 = vmul.f32 %v900, 0.03125
    %v903 = vadd.f32 %v901, 1e-05
    %v904 = vadd.f32 %v902, 1e-05
    %v905 = vrsqrt.pop %v903
    %v906 = vmul.f32 %v905, %v903
    %v907 = vmul.f32 %v906, %v905
    %v908 = vmul.f32 0.5, %v907
    %v909 = vsub.f32 1.5, %v908
    %v910 = vmul.f32 %v905, %v909
    %vm911 = vweird.f32 %v903
    %vm912 = vweird.f32 %v905
    %vm913 = vmor %vm911, %vm912
    %v914 = vsel %vm913, %v905, %v910
    %v915 = vrsqrt.pop %v904
    %v916 = vmul.f32 %v915, %v904
    %v917 = vmul.f32 %v916, %v915
    %v918 = vmul.f32 0.5, %v917
    %v919 = vsub.f32 1.5, %v918
    %v920 = vmul.f32 %v915, %v919
    %vm921 = vweird.f32 %v904
    %vm922 = vweird.f32 %v915
    %vm923 = vmor %vm921, %vm922
    %v924 = vsel %vm923, %v915, %v920
    %v925 = vmul.f32 %v893, %v914
    %v926 = vmul.f32 %v894, %v924
    %v928 = vperm.slane %v880, 0
    %v930 = vmul.f32 %v925, %v928
    %v931 = vmul.f32 %v926, %v928
    %v933 = vperm.slane %v882, 0
    %v935 = vadd.f32 %v930, %v933
    %v936 = vadd.f32 %v931, %v933
    %v937 = vmax.f32 %v935, 0.0
    %v938 = vmax.f32 %v936, 0.0
    %v939 = vld [vmem:[%s5] sm:$0xf]
    %v940 = vld [vmem:[%s5 + $0x4] sm:$0xf]
    %v941 = vld [vmem:[%s5 + $0x8] sm:$0xf]
    %v942 = vld [vmem:[%s5 + $0xc] sm:$0xf]
    %v943 = vld [vmem:[%s5 + $0x10] sm:$0xf]
    %v944 = vld [vmem:[%s5 + $0x14] sm:$0xf]
    %v945 = vld [vmem:[%s5 + $0x18] sm:$0xf]
    %v946 = vld [vmem:[%s5 + $0x1c] sm:$0xf]
    %v947 = vld [vmem:[%s5 + $0x20] sm:$0xf]
    %v948 = vld [vmem:[%s5 + $0x24] sm:$0xf]
    %v949 = vld [vmem:[%s5 + $0x28] sm:$0xf]
    %v950 = vld [vmem:[%s5 + $0x2c] sm:$0xf]
    %v951 = vld [vmem:[%s5 + $0x30] sm:$0xf]
    %v952 = vld [vmem:[%s5 + $0x34] sm:$0xf]
    %v953 = vld [vmem:[%s5 + $0x38] sm:$0xf]
    %v954 = vld [vmem:[%s5 + $0x3c] sm:$0xf]
    %v955 = vpack.c.bf16 %v938, %v937
    %s956 = scalar_lea.vmem %s6, 1
    %v957 = vld [vmem:[%s956] sm:$0x1]
    %v959 = vperm.slane %v957, 0
    %v977 = vunpack.c.l.b16 %v939
    %v978 = vunpack.c.l.b16 %v940
    %v979 = vunpack.c.l.b16 %v941
    %v980 = vunpack.c.l.b16 %v942
    %v981 = vunpack.c.l.b16 %v943
    %v982 = vunpack.c.l.b16 %v944
    %v983 = vunpack.c.l.b16 %v945
    %v984 = vunpack.c.l.b16 %v946
    %v985 = vunpack.c.l.b16 %v947
    %v986 = vunpack.c.l.b16 %v948
    %v987 = vunpack.c.l.b16 %v949
    %v988 = vunpack.c.l.b16 %v950
    %v989 = vunpack.c.l.b16 %v951
    %v990 = vunpack.c.l.b16 %v952
    %v991 = vunpack.c.l.b16 %v953
    %v992 = vunpack.c.l.b16 %v954
    %v993 = vpack.c.b16 %v978, %v977
    %v994 = vpack.c.b16 %v980, %v979
    %v995 = vpack.c.b16 %v982, %v981
    %v996 = vpack.c.b16 %v984, %v983
    %v997 = vpack.c.b16 %v986, %v985
    %v998 = vpack.c.b16 %v988, %v987
    %v999 = vpack.c.b16 %v990, %v989
    %v1000 = vpack.c.b16 %v992, %v991
    %1009 = vmatpush.bf16.msra.mxu0 %v1000
    %1010 = vmatpush.bf16.msra.mxu0 %v999
    %1011 = vmatpush.bf16.msra.mxu0 %v998
    %1012 = vmatpush.bf16.msra.mxu0 %v997
    %1013 = vmatpush.bf16.msra.mxu0 %v996
    %1014 = vmatpush.bf16.msra.mxu0 %v995
    %1015 = vmatpush.bf16.msra.mxu0 %v994
    %1016 = vmatpush.bf16.msra.mxu0 %v993
    %1017 = vmatmul.bf16.gmra.mxu0 %v955
    %v1018 = vpop.f32.mrf.mxu0
    %v1019 = vadd.f32 %v959, %v1018
    %v1020 = vpop.f32.mrf.mxu0
    %v1021 = vadd.f32 %v959, %v1020
    %1022 = vdwg.mxu0
    %s1023 = scalar_lea.vmem %s4, 1
    %v1024 = vld [vmem:[%s1023] sm:$0x1]
    %v1025 = vpack.c.bf16 %v851, %v850
    %s1026 = scalar_lea.vmem %s6, 2
    %v1027 = vld [vmem:[%s1026] sm:$0x1]
    %v1029 = vperm.slane %v1027, 0
    %v1032 = vsel %vm858, %v1025, 0
    %v1035 = vsel %vm862, %v1024, 0
    %1037 = vmatpush.bf16.msra.mxu0 0
    %1038 = vmatpush.bf16.msra.mxu0 0
    %1039 = vmatpush.bf16.msra.mxu0 0
    %1040 = vmatpush.bf16.msra.mxu0 0
    %1041 = vmatpush.bf16.msra.mxu0 0
    %1042 = vmatpush.bf16.msra.mxu0 0
    %1043 = vmatpush.bf16.msra.mxu0 0
    %1044 = vmatpush.bf16.msra.mxu0 %v1035
    %1045 = vmatmul.bf16.gmra.mxu0 %v1032
    %v1046 = vpop.f32.mrf.mxu0
    %v1047 = vadd.f32 %v1029, %v1046
    %v1048 = vpop.f32.mrf.mxu0
    %v1049 = vadd.f32 %v1029, %v1048
    %1050 = vdwg.mxu0
    %s1051 = scalar_lea.vmem %s7, 2
    %v1052 = vld [vmem:[%s1051] sm:$0x1]
    %s1053 = scalar_lea.vmem %s7, 3
    %v1054 = vld [vmem:[%s1053] sm:$0x1]
    %v1055 = vmul.f32 %v1047, %v68
    %v1056 = vmul.f32 %v1049, %v68
    %1057 = vadd.xlane.f32.xlu0 %v1055
    %v1058 = vpop.xlane.xlu0 %1057
    %1059 = vadd.xlane.f32.xlu0 %v1056
    %v1060 = vpop.xlane.xlu0 %1059
    %v1061 = vmul.f32 %v1058, 0.03125
    %v1062 = vmul.f32 %v1060, 0.03125
    %v1063 = vsub.f32 %v1047, %v1061
    %v1064 = vsub.f32 %v1049, %v1062
    %v1065 = vmul.f32 %v1063, %v68
    %v1066 = vmul.f32 %v1064, %v68
    %v1067 = vmul.f32 %v1065, %v1065
    %v1068 = vmul.f32 %v1066, %v1066
    %1069 = vadd.xlane.f32.xlu0 %v1067
    %v1070 = vpop.xlane.xlu0 %1069
    %1071 = vadd.xlane.f32.xlu0 %v1068
    %v1072 = vpop.xlane.xlu0 %1071
    %v1073 = vmul.f32 %v1070, 0.03125
    %v1074 = vmul.f32 %v1072, 0.03125
    %v1075 = vadd.f32 %v1073, 1e-05
    %v1076 = vadd.f32 %v1074, 1e-05
    %v1077 = vrsqrt.pop %v1075
    %v1078 = vmul.f32 %v1077, %v1075
    %v1079 = vmul.f32 %v1078, %v1077
    %v1080 = vmul.f32 0.5, %v1079
    %v1081 = vsub.f32 1.5, %v1080
    %v1082 = vmul.f32 %v1077, %v1081
    %vm1083 = vweird.f32 %v1075
    %vm1084 = vweird.f32 %v1077
    %vm1085 = vmor %vm1083, %vm1084
    %v1086 = vsel %vm1085, %v1077, %v1082
    %v1087 = vrsqrt.pop %v1076
    %v1088 = vmul.f32 %v1087, %v1076
    %v1089 = vmul.f32 %v1088, %v1087
    %v1090 = vmul.f32 0.5, %v1089
    %v1091 = vsub.f32 1.5, %v1090
    %v1092 = vmul.f32 %v1087, %v1091
    %vm1093 = vweird.f32 %v1076
    %vm1094 = vweird.f32 %v1087
    %vm1095 = vmor %vm1093, %vm1094
    %v1096 = vsel %vm1095, %v1087, %v1092
    %v1097 = vmul.f32 %v1065, %v1086
    %v1098 = vmul.f32 %v1066, %v1096
    %v1100 = vperm.slane %v1052, 0
    %v1102 = vmul.f32 %v1097, %v1100
    %v1103 = vmul.f32 %v1098, %v1100
    %v1105 = vperm.slane %v1054, 0
    %v1107 = vadd.f32 %v1102, %v1105
    %v1108 = vadd.f32 %v1103, %v1105
    %v1109 = vmax.f32 %v1107, 0.0
    %v1110 = vmax.f32 %v1108, 0.0
    %s1111 = scalar_lea.vmem %s5, 64
    %v1112 = vld [vmem:[%s1111] sm:$0xf]
    %v1113 = vld [vmem:[%s1111 + $0x4] sm:$0xf]
    %v1114 = vld [vmem:[%s1111 + $0x8] sm:$0xf]
    %v1115 = vld [vmem:[%s1111 + $0xc] sm:$0xf]
    %v1116 = vld [vmem:[%s1111 + $0x10] sm:$0xf]
    %v1117 = vld [vmem:[%s1111 + $0x14] sm:$0xf]
    %v1118 = vld [vmem:[%s1111 + $0x18] sm:$0xf]
    %v1119 = vld [vmem:[%s1111 + $0x1c] sm:$0xf]
    %v1120 = vld [vmem:[%s1111 + $0x20] sm:$0xf]
    %v1121 = vld [vmem:[%s1111 + $0x24] sm:$0xf]
    %v1122 = vld [vmem:[%s1111 + $0x28] sm:$0xf]
    %v1123 = vld [vmem:[%s1111 + $0x2c] sm:$0xf]
    %v1124 = vld [vmem:[%s1111 + $0x30] sm:$0xf]
    %v1125 = vld [vmem:[%s1111 + $0x34] sm:$0xf]
    %v1126 = vld [vmem:[%s1111 + $0x38] sm:$0xf]
    %v1127 = vld [vmem:[%s1111 + $0x3c] sm:$0xf]
    %v1128 = vpack.c.bf16 %v1110, %v1109
    %s1129 = scalar_lea.vmem %s6, 3
    %v1130 = vld [vmem:[%s1129] sm:$0x1]
    %v1132 = vperm.slane %v1130, 0
    %v1150 = vunpack.c.l.b16 %v1112
    %v1151 = vunpack.c.l.b16 %v1113
    %v1152 = vunpack.c.l.b16 %v1114
    %v1153 = vunpack.c.l.b16 %v1115
    %v1154 = vunpack.c.l.b16 %v1116
    %v1155 = vunpack.c.l.b16 %v1117
    %v1156 = vunpack.c.l.b16 %v1118
    %v1157 = vunpack.c.l.b16 %v1119
    %v1158 = vunpack.c.l.b16 %v1120
    %v1159 = vunpack.c.l.b16 %v1121
    %v1160 = vunpack.c.l.b16 %v1122
    %v1161 = vunpack.c.l.b16 %v1123
    %v1162 = vunpack.c.l.b16 %v1124
    %v1163 = vunpack.c.l.b16 %v1125
    %v1164 = vunpack.c.l.b16 %v1126
    %v1165 = vunpack.c.l.b16 %v1127
    %v1166 = vpack.c.b16 %v1151, %v1150
    %v1167 = vpack.c.b16 %v1153, %v1152
    %v1168 = vpack.c.b16 %v1155, %v1154
    %v1169 = vpack.c.b16 %v1157, %v1156
    %v1170 = vpack.c.b16 %v1159, %v1158
    %v1171 = vpack.c.b16 %v1161, %v1160
    %v1172 = vpack.c.b16 %v1163, %v1162
    %v1173 = vpack.c.b16 %v1165, %v1164
    %1182 = vmatpush.bf16.msra.mxu0 %v1173
    %1183 = vmatpush.bf16.msra.mxu0 %v1172
    %1184 = vmatpush.bf16.msra.mxu0 %v1171
    %1185 = vmatpush.bf16.msra.mxu0 %v1170
    %1186 = vmatpush.bf16.msra.mxu0 %v1169
    %1187 = vmatpush.bf16.msra.mxu0 %v1168
    %1188 = vmatpush.bf16.msra.mxu0 %v1167
    %1189 = vmatpush.bf16.msra.mxu0 %v1166
    %1190 = vmatmul.bf16.gmra.mxu0 %v1128
    %v1191 = vpop.f32.mrf.mxu0
    %v1192 = vadd.f32 %v1132, %v1191
    %v1193 = vpop.f32.mrf.mxu0
    %v1194 = vadd.f32 %v1132, %v1193
    %1195 = vdwg.mxu0
    %v1196 = vadd.f32 %v1019, %v1192
    %v1197 = vadd.f32 %v1021, %v1194
    %s1198 = scalar_lea.vmem %s7, 4
    %v1199 = vld [vmem:[%s1198] sm:$0x1]
    %s1200 = scalar_lea.vmem %s7, 5
    %v1201 = vld [vmem:[%s1200] sm:$0x1]
    %v1202 = vmul.f32 %v1196, %v68
    %v1203 = vmul.f32 %v1197, %v68
    %1204 = vadd.xlane.f32.xlu0 %v1202
    %v1205 = vpop.xlane.xlu0 %1204
    %1206 = vadd.xlane.f32.xlu0 %v1203
    %v1207 = vpop.xlane.xlu0 %1206
    %v1208 = vmul.f32 %v1205, 0.03125
    %v1209 = vmul.f32 %v1207, 0.03125
    %v1210 = vsub.f32 %v1196, %v1208
    %v1211 = vsub.f32 %v1197, %v1209
    %v1212 = vmul.f32 %v1210, %v68
    %v1213 = vmul.f32 %v1211, %v68
    %v1214 = vmul.f32 %v1212, %v1212
    %v1215 = vmul.f32 %v1213, %v1213
    %1216 = vadd.xlane.f32.xlu0 %v1214
    %v1217 = vpop.xlane.xlu0 %1216
    %1218 = vadd.xlane.f32.xlu0 %v1215
    %v1219 = vpop.xlane.xlu0 %1218
    %v1220 = vmul.f32 %v1217, 0.03125
    %v1221 = vmul.f32 %v1219, 0.03125
    %v1222 = vadd.f32 %v1220, 1e-05
    %v1223 = vadd.f32 %v1221, 1e-05
    %v1224 = vrsqrt.pop %v1222
    %v1225 = vmul.f32 %v1224, %v1222
    %v1226 = vmul.f32 %v1225, %v1224
    %v1227 = vmul.f32 0.5, %v1226
    %v1228 = vsub.f32 1.5, %v1227
    %v1229 = vmul.f32 %v1224, %v1228
    %vm1230 = vweird.f32 %v1222
    %vm1231 = vweird.f32 %v1224
    %vm1232 = vmor %vm1230, %vm1231
    %v1233 = vsel %vm1232, %v1224, %v1229
    %v1234 = vrsqrt.pop %v1223
    %v1235 = vmul.f32 %v1234, %v1223
    %v1236 = vmul.f32 %v1235, %v1234
    %v1237 = vmul.f32 0.5, %v1236
    %v1238 = vsub.f32 1.5, %v1237
    %v1239 = vmul.f32 %v1234, %v1238
    %vm1240 = vweird.f32 %v1223
    %vm1241 = vweird.f32 %v1234
    %vm1242 = vmor %vm1240, %vm1241
    %v1243 = vsel %vm1242, %v1234, %v1239
    %v1244 = vmul.f32 %v1212, %v1233
    %v1245 = vmul.f32 %v1213, %v1243
    %v1247 = vperm.slane %v1199, 0
    %v1249 = vmul.f32 %v1244, %v1247
    %v1250 = vmul.f32 %v1245, %v1247
    %v1252 = vperm.slane %v1201, 0
    %v1254 = vadd.f32 %v1249, %v1252
    %v1255 = vadd.f32 %v1250, %v1252
    %v1256 = vmax.f32 %v1254, 0.0
    %v1257 = vmax.f32 %v1255, 0.0
    %s1258 = scalar_lea.vmem %s5, 128
    %v1259 = vld [vmem:[%s1258] sm:$0xf]
    %v1260 = vld [vmem:[%s1258 + $0x4] sm:$0xf]
    %v1261 = vld [vmem:[%s1258 + $0x8] sm:$0xf]
    %v1262 = vld [vmem:[%s1258 + $0xc] sm:$0xf]
    %v1263 = vld [vmem:[%s1258 + $0x10] sm:$0xf]
    %v1264 = vld [vmem:[%s1258 + $0x14] sm:$0xf]
    %v1265 = vld [vmem:[%s1258 + $0x18] sm:$0xf]
    %v1266 = vld [vmem:[%s1258 + $0x1c] sm:$0xf]
    %v1267 = vld [vmem:[%s1258 + $0x20] sm:$0xf]
    %v1268 = vld [vmem:[%s1258 + $0x24] sm:$0xf]
    %v1269 = vld [vmem:[%s1258 + $0x28] sm:$0xf]
    %v1270 = vld [vmem:[%s1258 + $0x2c] sm:$0xf]
    %v1271 = vld [vmem:[%s1258 + $0x30] sm:$0xf]
    %v1272 = vld [vmem:[%s1258 + $0x34] sm:$0xf]
    %v1273 = vld [vmem:[%s1258 + $0x38] sm:$0xf]
    %v1274 = vld [vmem:[%s1258 + $0x3c] sm:$0xf]
    %v1275 = vpack.c.bf16 %v1257, %v1256
    %s1276 = scalar_lea.vmem %s6, 4
    %v1277 = vld [vmem:[%s1276] sm:$0x1]
    %v1279 = vperm.slane %v1277, 0
    %v1297 = vunpack.c.l.b16 %v1259
    %v1298 = vunpack.c.l.b16 %v1260
    %v1299 = vunpack.c.l.b16 %v1261
    %v1300 = vunpack.c.l.b16 %v1262
    %v1301 = vunpack.c.l.b16 %v1263
    %v1302 = vunpack.c.l.b16 %v1264
    %v1303 = vunpack.c.l.b16 %v1265
    %v1304 = vunpack.c.l.b16 %v1266
    %v1305 = vunpack.c.l.b16 %v1267
    %v1306 = vunpack.c.l.b16 %v1268
    %v1307 = vunpack.c.l.b16 %v1269
    %v1308 = vunpack.c.l.b16 %v1270
    %v1309 = vunpack.c.l.b16 %v1271
    %v1310 = vunpack.c.l.b16 %v1272
    %v1311 = vunpack.c.l.b16 %v1273
    %v1312 = vunpack.c.l.b16 %v1274
    %v1313 = vpack.c.b16 %v1298, %v1297
    %v1314 = vpack.c.b16 %v1300, %v1299
    %v1315 = vpack.c.b16 %v1302, %v1301
    %v1316 = vpack.c.b16 %v1304, %v1303
    %v1317 = vpack.c.b16 %v1306, %v1305
    %v1318 = vpack.c.b16 %v1308, %v1307
    %v1319 = vpack.c.b16 %v1310, %v1309
    %v1320 = vpack.c.b16 %v1312, %v1311
    %1329 = vmatpush.bf16.msra.mxu0 %v1320
    %1330 = vmatpush.bf16.msra.mxu0 %v1319
    %1331 = vmatpush.bf16.msra.mxu0 %v1318
    %1332 = vmatpush.bf16.msra.mxu0 %v1317
    %1333 = vmatpush.bf16.msra.mxu0 %v1316
    %1334 = vmatpush.bf16.msra.mxu0 %v1315
    %1335 = vmatpush.bf16.msra.mxu0 %v1314
    %1336 = vmatpush.bf16.msra.mxu0 %v1313
    %1337 = vmatmul.bf16.gmra.mxu0 %v1275
    %v1338 = vpop.f32.mrf.mxu0
    %v1339 = vadd.f32 %v1279, %v1338
    %v1340 = vpop.f32.mrf.mxu0
    %v1341 = vadd.f32 %v1279, %v1340
    %1342 = vdwg.mxu0
    %s1343 = scalar_lea.vmem %s7, 6
    %v1344 = vld [vmem:[%s1343] sm:$0x1]
    %s1345 = scalar_lea.vmem %s7, 7
    %v1346 = vld [vmem:[%s1345] sm:$0x1]
    %v1347 = vmul.f32 %v1339, %v68
    %v1348 = vmul.f32 %v1341, %v68
    %1349 = vadd.xlane.f32.xlu0 %v1347
    %v1350 = vpop.xlane.xlu0 %1349
    %1351 = vadd.xlane.f32.xlu0 %v1348
    %v1352 = vpop.xlane.xlu0 %1351
    %v1353 = vmul.f32 %v1350, 0.03125
    %v1354 = vmul.f32 %v1352, 0.03125
    %v1355 = vsub.f32 %v1339, %v1353
    %v1356 = vsub.f32 %v1341, %v1354
    %v1357 = vmul.f32 %v1355, %v68
    %v1358 = vmul.f32 %v1356, %v68
    %v1359 = vmul.f32 %v1357, %v1357
    %v1360 = vmul.f32 %v1358, %v1358
    %1361 = vadd.xlane.f32.xlu0 %v1359
    %v1362 = vpop.xlane.xlu0 %1361
    %1363 = vadd.xlane.f32.xlu0 %v1360
    %v1364 = vpop.xlane.xlu0 %1363
    %v1365 = vmul.f32 %v1362, 0.03125
    %v1366 = vmul.f32 %v1364, 0.03125
    %v1367 = vadd.f32 %v1365, 1e-05
    %v1368 = vadd.f32 %v1366, 1e-05
    %v1369 = vrsqrt.pop %v1367
    %v1370 = vmul.f32 %v1369, %v1367
    %v1371 = vmul.f32 %v1370, %v1369
    %v1372 = vmul.f32 0.5, %v1371
    %v1373 = vsub.f32 1.5, %v1372
    %v1374 = vmul.f32 %v1369, %v1373
    %vm1375 = vweird.f32 %v1367
    %vm1376 = vweird.f32 %v1369
    %vm1377 = vmor %vm1375, %vm1376
    %v1378 = vsel %vm1377, %v1369, %v1374
    %v1379 = vrsqrt.pop %v1368
    %v1380 = vmul.f32 %v1379, %v1368
    %v1381 = vmul.f32 %v1380, %v1379
    %v1382 = vmul.f32 0.5, %v1381
    %v1383 = vsub.f32 1.5, %v1382
    %v1384 = vmul.f32 %v1379, %v1383
    %vm1385 = vweird.f32 %v1368
    %vm1386 = vweird.f32 %v1379
    %vm1387 = vmor %vm1385, %vm1386
    %v1388 = vsel %vm1387, %v1379, %v1384
    %v1389 = vmul.f32 %v1357, %v1378
    %v1390 = vmul.f32 %v1358, %v1388
    %v1392 = vperm.slane %v1344, 0
    %v1394 = vmul.f32 %v1389, %v1392
    %v1395 = vmul.f32 %v1390, %v1392
    %v1397 = vperm.slane %v1346, 0
    %v1399 = vadd.f32 %v1394, %v1397
    %v1400 = vadd.f32 %v1395, %v1397
    %v1401 = vld [vmem:[%s0] sm:$0xff]
    %v1402 = vld [vmem:[%s12] sm:$0x1]
    %s1403 = scalar_lea.vmem %s12, 1
    %v1404 = vld [vmem:[%s1403] sm:$0x1]
    %v1405 = vmul.f32 %v1401, %v68
    %1406 = vadd.xlane.f32.xlu0 %v1405
    %v1407 = vpop.xlane.xlu0 %1406
    %v1408 = vmul.f32 %v1407, 0.03125
    %v1409 = vsub.f32 %v1401, %v1408
    %v1410 = vmul.f32 %v1409, %v68
    %v1411 = vmul.f32 %v1410, %v1410
    %1412 = vadd.xlane.f32.xlu0 %v1411
    %v1413 = vpop.xlane.xlu0 %1412
    %v1414 = vmul.f32 %v1413, 0.03125
    %v1415 = vadd.f32 %v1414, 1e-05
    %v1416 = vrsqrt.pop %v1415
    %v1417 = vmul.f32 %v1416, %v1415
    %v1418 = vmul.f32 %v1417, %v1416
    %v1419 = vmul.f32 0.5, %v1418
    %v1420 = vsub.f32 1.5, %v1419
    %v1421 = vmul.f32 %v1416, %v1420
    %vm1422 = vweird.f32 %v1415
    %vm1423 = vweird.f32 %v1416
    %vm1424 = vmor %vm1422, %vm1423
    %v1425 = vsel %vm1424, %v1416, %v1421
    %v1426 = vmul.f32 %v1410, %v1425
    %v1428 = vperm.slane %v1402, 0
    %v1430 = vmul.f32 %v1426, %v1428
    %v1432 = vperm.slane %v1404, 0
    %v1434 = vadd.f32 %v1430, %v1432
    %1435 = vmatpush.msra.mxu0 0.0
    %1436 = vmatpush.msra.mxu0 0.0
    %1437 = vmatpush.msra.mxu0 0.0
    %1438 = vmatpush.msra.mxu0 0.0
    %1439 = vmatpush.msra.mxu0 0.0
    %1440 = vmatpush.msra.mxu0 0.0
    %1441 = vmatpush.msra.mxu0 0.0
    %1442 = vmatpush.msra.mxu0 0.0
    %1443 = vmatpush.msra.mxu0 0.0
    %1444 = vmatpush.msra.mxu0 0.0
    %1445 = vmatpush.msra.mxu0 0.0
    %1446 = vmatpush.msra.mxu0 0.0
    %1447 = vmatpush.msra.mxu0 0.0
    %1448 = vmatpush.msra.mxu0 0.0
    %1449 = vmatpush.msra.mxu0 0.0
    %1450 = vmatpush.msra.mxu0 %v1434
    %1451 = vmatmul.f32.gmra.mxu0 %v129
    %v1452 = vpop.f32.mrf.mxu0
    %v1453 = vadd.f32 0.0, %v1452
    %1454 = vmatmul.f32.gmra.mxu0 %v132
    %v1455 = vpop.f32.mrf.mxu0
    %v1456 = vadd.f32 0.0, %v1455
    %1457 = vdwg.mxu0
    %1458 = vmatpush.msra.mxu0 0.0
    %1459 = vmatpush.msra.mxu0 0.0
    %1460 = vmatpush.msra.mxu0 0.0
    %1461 = vmatpush.msra.mxu0 0.0
    %1462 = vmatpush.msra.mxu0 0.0
    %1463 = vmatpush.msra.mxu0 0.0
    %1464 = vmatpush.msra.mxu0 0.0
    %1465 = vmatpush.msra.mxu0 0.0
    %1466 = vmatpush.msra.mxu0 0.0
    %1467 = vmatpush.msra.mxu0 0.0
    %1468 = vmatpush.msra.mxu0 0.0
    %1469 = vmatpush.msra.mxu0 0.0
    %1470 = vmatpush.msra.mxu0 0.0
    %1471 = vmatpush.msra.mxu0 0.0
    %1472 = vmatpush.msra.mxu0 0.0
    %1473 = vmatpush.msra.mxu0 %v1434
    %1474 = vmatmul.f32.gmra.mxu0 %v100
    %v1475 = vpop.f32.mrf.mxu0
    %v1476 = vadd.f32 0.0, %v1475
    %1477 = vmatmul.f32.gmra.mxu0 %v103
    %v1478 = vpop.f32.mrf.mxu0
    %v1479 = vadd.f32 0.0, %v1478
    %1480 = vdwg.mxu0
    %v1481 = vld [vmem:[%s8] sm:$0xf]
    %v1482 = vld [vmem:[%s8 + $0x4] sm:$0xf]
    %v1483 = vld [vmem:[%s8 + $0x8] sm:$0xf]
    %v1484 = vld [vmem:[%s8 + $0xc] sm:$0xf]
    %v1485 = vld [vmem:[%s8 + $0x10] sm:$0xf]
    %v1486 = vld [vmem:[%s8 + $0x14] sm:$0xf]
    %v1487 = vld [vmem:[%s8 + $0x18] sm:$0xf]
    %v1488 = vld [vmem:[%s8 + $0x1c] sm:$0xf]
    %v1489 = vld [vmem:[%s8 + $0x20] sm:$0xf]
    %v1490 = vld [vmem:[%s8 + $0x24] sm:$0xf]
    %v1491 = vld [vmem:[%s8 + $0x28] sm:$0xf]
    %v1492 = vld [vmem:[%s8 + $0x2c] sm:$0xf]
    %v1493 = vld [vmem:[%s8 + $0x30] sm:$0xf]
    %v1494 = vld [vmem:[%s8 + $0x34] sm:$0xf]
    %v1495 = vld [vmem:[%s8 + $0x38] sm:$0xf]
    %v1496 = vld [vmem:[%s8 + $0x3c] sm:$0xf]
    %v1497 = vpack.c.bf16 %v1456, %v1453
    %v1498 = vld [vmem:[%s9] sm:$0x1]
    %v1500 = vperm.slane %v1498, 0
    %v1518 = vunpack.c.l.b16 %v1481
    %v1519 = vunpack.c.l.b16 %v1482
    %v1520 = vunpack.c.l.b16 %v1483
    %v1521 = vunpack.c.l.b16 %v1484
    %v1522 = vunpack.c.l.b16 %v1485
    %v1523 = vunpack.c.l.b16 %v1486
    %v1524 = vunpack.c.l.b16 %v1487
    %v1525 = vunpack.c.l.b16 %v1488
    %v1526 = vunpack.c.l.b16 %v1489
    %v1527 = vunpack.c.l.b16 %v1490
    %v1528 = vunpack.c.l.b16 %v1491
    %v1529 = vunpack.c.l.b16 %v1492
    %v1530 = vunpack.c.l.b16 %v1493
    %v1531 = vunpack.c.l.b16 %v1494
    %v1532 = vunpack.c.l.b16 %v1495
    %v1533 = vunpack.c.l.b16 %v1496
    %v1534 = vpack.c.b16 %v1519, %v1518
    %v1535 = vpack.c.b16 %v1521, %v1520
    %v1536 = vpack.c.b16 %v1523, %v1522
    %v1537 = vpack.c.b16 %v1525, %v1524
    %v1538 = vpack.c.b16 %v1527, %v1526
    %v1539 = vpack.c.b16 %v1529, %v1528
    %v1540 = vpack.c.b16 %v1531, %v1530
    %v1541 = vpack.c.b16 %v1533, %v1532
    %1550 = vmatpush.bf16.msra.mxu0 %v1541
    %1551 = vmatpush.bf16.msra.mxu0 %v1540
    %1552 = vmatpush.bf16.msra.mxu0 %v1539
    %1553 = vmatpush.bf16.msra.mxu0 %v1538
    %1554 = vmatpush.bf16.msra.mxu0 %v1537
    %1555 = vmatpush.bf16.msra.mxu0 %v1536
    %1556 = vmatpush.bf16.msra.mxu0 %v1535
    %1557 = vmatpush.bf16.msra.mxu0 %v1534
    %1558 = vmatmul.bf16.gmra.mxu0 %v1497
    %v1559 = vpop.f32.mrf.mxu0
    %v1560 = vadd.f32 %v1500, %v1559
    %v1561 = vpop.f32.mrf.mxu0
    %v1562 = vadd.f32 %v1500, %v1561
    %1563 = vdwg.mxu0
    %v1564 = vld [vmem:[%s10] sm:$0xff]
    %v1565 = vld [vmem:[%s10 + $0x8] sm:$0xff]
    %v1566 = vld [vmem:[%s10 + $0x10] sm:$0xff]
    %v1567 = vld [vmem:[%s10 + $0x18] sm:$0xff]
    %v1568 = vld [vmem:[%s10 + $0x20] sm:$0xff]
    %v1569 = vld [vmem:[%s10 + $0x28] sm:$0xff]
    %v1570 = vld [vmem:[%s10 + $0x30] sm:$0xff]
    %v1571 = vld [vmem:[%s10 + $0x38] sm:$0xff]
    %v1572 = vld [vmem:[%s10 + $0x40] sm:$0xff]
    %v1573 = vld [vmem:[%s10 + $0x48] sm:$0xff]
    %v1574 = vld [vmem:[%s10 + $0x50] sm:$0xff]
    %v1575 = vld [vmem:[%s10 + $0x58] sm:$0xff]
    %v1576 = vld [vmem:[%s10 + $0x60] sm:$0xff]
    %v1577 = vld [vmem:[%s10 + $0x68] sm:$0xff]
    %v1578 = vld [vmem:[%s10 + $0x70] sm:$0xff]
    %v1579 = vld [vmem:[%s10 + $0x78] sm:$0xff]
    %v1580 = vpack.c.bf16 %v1479, %v1476
    %v1581 = vld [vmem:[%s11] sm:$0x3]
    %v1583 = vperm.slane %v1581, 0
    %v1584 = vperm.slane %v1581, 1
    %v1603 = vunpack.c.l.b16 %v1564
    %v1604 = vunpack.c.h.b16 %v1564
    %v1605 = vunpack.c.l.b16 %v1565
    %v1606 = vunpack.c.h.b16 %v1565
    %v1607 = vunpack.c.l.b16 %v1566
    %v1608 = vunpack.c.h.b16 %v1566
    %v1609 = vunpack.c.l.b16 %v1567
    %v1610 = vunpack.c.h.b16 %v1567
    %v1611 = vunpack.c.l.b16 %v1568
    %v1612 = vunpack.c.h.b16 %v1568
    %v1613 = vunpack.c.l.b16 %v1569
    %v1614 = vunpack.c.h.b16 %v1569
    %v1615 = vunpack.c.l.b16 %v1570
    %v1616 = vunpack.c.h.b16 %v1570
    %v1617 = vunpack.c.l.b16 %v1571
    %v1618 = vunpack.c.h.b16 %v1571
    %v1619 = vunpack.c.l.b16 %v1572
    %v1620 = vunpack.c.h.b16 %v1572
    %v1621 = vunpack.c.l.b16 %v1573
    %v1622 = vunpack.c.h.b16 %v1573
    %v1623 = vunpack.c.l.b16 %v1574
    %v1624 = vunpack.c.h.b16 %v1574
    %v1625 = vunpack.c.l.b16 %v1575
    %v1626 = vunpack.c.h.b16 %v1575
    %v1627 = vunpack.c.l.b16 %v1576
    %v1628 = vunpack.c.h.b16 %v1576
    %v1629 = vunpack.c.l.b16 %v1577
    %v1630 = vunpack.c.h.b16 %v1577
    %v1631 = vunpack.c.l.b16 %v1578
    %v1632 = vunpack.c.h.b16 %v1578
    %v1633 = vunpack.c.l.b16 %v1579
    %v1634 = vunpack.c.h.b16 %v1579
    %v1635 = vpack.c.b16 %v1605, %v1603
    %v1636 = vpack.c.b16 %v1606, %v1604
    %v1637 = vpack.c.b16 %v1609, %v1607
    %v1638 = vpack.c.b16 %v1610, %v1608
    %v1639 = vpack.c.b16 %v1613, %v1611
    %v1640 = vpack.c.b16 %v1614, %v1612
    %v1641 = vpack.c.b16 %v1617, %v1615
    %v1642 = vpack.c.b16 %v1618, %v1616
    %v1643 = vpack.c.b16 %v1621, %v1619
    %v1644 = vpack.c.b16 %v1622, %v1620
    %v1645 = vpack.c.b16 %v1625, %v1623
    %v1646 = vpack.c.b16 %v1626, %v1624
    %v1647 = vpack.c.b16 %v1629, %v1627
    %v1648 = vpack.c.b16 %v1630, %v1628
    %v1649 = vpack.c.b16 %v1633, %v1631
    %v1650 = vpack.c.b16 %v1634, %v1632
    %1667 = vmatpush.bf16.msra.mxu0 %v1649
    %1668 = vmatpush.bf16.msra.mxu0 %v1647
    %1669 = vmatpush.bf16.msra.mxu0 %v1645
    %1670 = vmatpush.bf16.msra.mxu0 %v1643
    %1671 = vmatpush.bf16.msra.mxu0 %v1641
    %1672 = vmatpush.bf16.msra.mxu0 %v1639
    %1673 = vmatpush.bf16.msra.mxu0 %v1637
    %1674 = vmatpush.bf16.msra.mxu0 %v1635
    %1675 = vmatmul.bf16.gmra.mxu0 %v1580
    %v1676 = vpop.f32.mrf.mxu0
    %v1677 = vadd.f32 %v1583, %v1676
    %v1678 = vpop.f32.mrf.mxu0
    %v1679 = vadd.f32 %v1583, %v1678
    %1680 = vdwg.mxu0
    %1681 = vmatpush.bf16.msra.mxu0 %v1650
    %1682 = vmatpush.bf16.msra.mxu0 %v1648
    %1683 = vmatpush.bf16.msra.mxu0 %v1646
    %1684 = vmatpush.bf16.msra.mxu0 %v1644
    %1685 = vmatpush.bf16.msra.mxu0 %v1642
    %1686 = vmatpush.bf16.msra.mxu0 %v1640
    %1687 = vmatpush.bf16.msra.mxu0 %v1638
    %1688 = vmatpush.bf16.msra.mxu0 %v1636
    %1689 = vmatmul.bf16.gmra.mxu0 %v1580
    %v1690 = vpop.f32.mrf.mxu0
    %v1691 = vadd.f32 %v1584, %v1690
    %v1692 = vpop.f32.mrf.mxu0
    %v1693 = vadd.f32 %v1584, %v1692
    %1694 = vdwg.mxu0
    %s1695 = scalar_lea.vmem %s10, 128
    %v1696 = vld [vmem:[%s1695] sm:$0xff]
    %v1697 = vld [vmem:[%s1695 + $0x8] sm:$0xff]
    %v1698 = vld [vmem:[%s1695 + $0x10] sm:$0xff]
    %v1699 = vld [vmem:[%s1695 + $0x18] sm:$0xff]
    %v1700 = vld [vmem:[%s1695 + $0x20] sm:$0xff]
    %v1701 = vld [vmem:[%s1695 + $0x28] sm:$0xff]
    %v1702 = vld [vmem:[%s1695 + $0x30] sm:$0xff]
    %v1703 = vld [vmem:[%s1695 + $0x38] sm:$0xff]
    %v1704 = vld [vmem:[%s1695 + $0x40] sm:$0xff]
    %v1705 = vld [vmem:[%s1695 + $0x48] sm:$0xff]
    %v1706 = vld [vmem:[%s1695 + $0x50] sm:$0xff]
    %v1707 = vld [vmem:[%s1695 + $0x58] sm:$0xff]
    %v1708 = vld [vmem:[%s1695 + $0x60] sm:$0xff]
    %v1709 = vld [vmem:[%s1695 + $0x68] sm:$0xff]
    %v1710 = vld [vmem:[%s1695 + $0x70] sm:$0xff]
    %v1711 = vld [vmem:[%s1695 + $0x78] sm:$0xff]
    %v1712 = vpack.c.bf16 %v1400, %v1399
    %s1713 = scalar_lea.vmem %s11, 2
    %v1714 = vld [vmem:[%s1713] sm:$0x3]
    %v1716 = vperm.slane %v1714, 0
    %v1717 = vperm.slane %v1714, 1
    %v1736 = vunpack.c.l.b16 %v1696
    %v1737 = vunpack.c.h.b16 %v1696
    %v1738 = vunpack.c.l.b16 %v1697
    %v1739 = vunpack.c.h.b16 %v1697
    %v1740 = vunpack.c.l.b16 %v1698
    %v1741 = vunpack.c.h.b16 %v1698
    %v1742 = vunpack.c.l.b16 %v1699
    %v1743 = vunpack.c.h.b16 %v1699
    %v1744 = vunpack.c.l.b16 %v1700
    %v1745 = vunpack.c.h.b16 %v1700
    %v1746 = vunpack.c.l.b16 %v1701
    %v1747 = vunpack.c.h.b16 %v1701
    %v1748 = vunpack.c.l.b16 %v1702
    %v1749 = vunpack.c.h.b16 %v1702
    %v1750 = vunpack.c.l.b16 %v1703
    %v1751 = vunpack.c.h.b16 %v1703
    %v1752 = vunpack.c.l.b16 %v1704
    %v1753 = vunpack.c.h.b16 %v1704
    %v1754 = vunpack.c.l.b16 %v1705
    %v1755 = vunpack.c.h.b16 %v1705
    %v1756 = vunpack.c.l.b16 %v1706
    %v1757 = vunpack.c.h.b16 %v1706
    %v1758 = vunpack.c.l.b16 %v1707
    %v1759 = vunpack.c.h.b16 %v1707
    %v1760 = vunpack.c.l.b16 %v1708
    %v1761 = vunpack.c.h.b16 %v1708
    %v1762 = vunpack.c.l.b16 %v1709
    %v1763 = vunpack.c.h.b16 %v1709
    %v1764 = vunpack.c.l.b16 %v1710
    %v1765 = vunpack.c.h.b16 %v1710
    %v1766 = vunpack.c.l.b16 %v1711
    %v1767 = vunpack.c.h.b16 %v1711
    %v1768 = vpack.c.b16 %v1738, %v1736
    %v1769 = vpack.c.b16 %v1739, %v1737
    %v1770 = vpack.c.b16 %v1742, %v1740
    %v1771 = vpack.c.b16 %v1743, %v1741
    %v1772 = vpack.c.b16 %v1746, %v1744
    %v1773 = vpack.c.b16 %v1747, %v1745
    %v1774 = vpack.c.b16 %v1750, %v1748
    %v1775 = vpack.c.b16 %v1751, %v1749
    %v1776 = vpack.c.b16 %v1754, %v1752
    %v1777 = vpack.c.b16 %v1755, %v1753
    %v1778 = vpack.c.b16 %v1758, %v1756
    %v1779 = vpack.c.b16 %v1759, %v1757
    %v1780 = vpack.c.b16 %v1762, %v1760
    %v1781 = vpack.c.b16 %v1763, %v1761
    %v1782 = vpack.c.b16 %v1766, %v1764
    %v1783 = vpack.c.b16 %v1767, %v1765
    %1800 = vmatpush.bf16.msra.mxu0 %v1782
    %1801 = vmatpush.bf16.msra.mxu0 %v1780
    %1802 = vmatpush.bf16.msra.mxu0 %v1778
    %1803 = vmatpush.bf16.msra.mxu0 %v1776
    %1804 = vmatpush.bf16.msra.mxu0 %v1774
    %1805 = vmatpush.bf16.msra.mxu0 %v1772
    %1806 = vmatpush.bf16.msra.mxu0 %v1770
    %1807 = vmatpush.bf16.msra.mxu0 %v1768
    %1808 = vmatmul.bf16.gmra.mxu0 %v1712
    %v1809 = vpop.f32.mrf.mxu0
    %v1810 = vadd.f32 %v1716, %v1809
    %v1811 = vpop.f32.mrf.mxu0
    %v1812 = vadd.f32 %v1716, %v1811
    %1813 = vdwg.mxu0
    %1814 = vmatpush.bf16.msra.mxu0 %v1783
    %1815 = vmatpush.bf16.msra.mxu0 %v1781
    %1816 = vmatpush.bf16.msra.mxu0 %v1779
    %1817 = vmatpush.bf16.msra.mxu0 %v1777
    %1818 = vmatpush.bf16.msra.mxu0 %v1775
    %1819 = vmatpush.bf16.msra.mxu0 %v1773
    %1820 = vmatpush.bf16.msra.mxu0 %v1771
    %1821 = vmatpush.bf16.msra.mxu0 %v1769
    %1822 = vmatmul.bf16.gmra.mxu0 %v1712
    %v1823 = vpop.f32.mrf.mxu0
    %v1824 = vadd.f32 %v1717, %v1823
    %v1825 = vpop.f32.mrf.mxu0
    %v1826 = vadd.f32 %v1717, %v1825
    %1827 = vdwg.mxu0
    %s1828 = scalar_lea.vmem %s10, 256
    %v1829 = vld [vmem:[%s1828] sm:$0xff]
    %v1830 = vld [vmem:[%s1828 + $0x8] sm:$0xff]
    %v1831 = vld [vmem:[%s1828 + $0x10] sm:$0xff]
    %v1832 = vld [vmem:[%s1828 + $0x18] sm:$0xff]
    %v1833 = vld [vmem:[%s1828 + $0x20] sm:$0xff]
    %v1834 = vld [vmem:[%s1828 + $0x28] sm:$0xff]
    %v1835 = vld [vmem:[%s1828 + $0x30] sm:$0xff]
    %v1836 = vld [vmem:[%s1828 + $0x38] sm:$0xff]
    %v1837 = vld [vmem:[%s1828 + $0x40] sm:$0xff]
    %v1838 = vld [vmem:[%s1828 + $0x48] sm:$0xff]
    %v1839 = vld [vmem:[%s1828 + $0x50] sm:$0xff]
    %v1840 = vld [vmem:[%s1828 + $0x58] sm:$0xff]
    %v1841 = vld [vmem:[%s1828 + $0x60] sm:$0xff]
    %v1842 = vld [vmem:[%s1828 + $0x68] sm:$0xff]
    %v1843 = vld [vmem:[%s1828 + $0x70] sm:$0xff]
    %v1844 = vld [vmem:[%s1828 + $0x78] sm:$0xff]
    %v1845 = vpack.c.bf16 %v1434, %v1434
    %s1846 = scalar_lea.vmem %s11, 4
    %v1847 = vld [vmem:[%s1846] sm:$0x3]
    %v1849 = vperm.slane %v1847, 0
    %v1850 = vperm.slane %v1847, 1
    %v1869 = vunpack.c.l.b16 %v1829
    %v1870 = vunpack.c.h.b16 %v1829
    %v1871 = vunpack.c.l.b16 %v1830
    %v1872 = vunpack.c.h.b16 %v1830
    %v1873 = vunpack.c.l.b16 %v1831
    %v1874 = vunpack.c.h.b16 %v1831
    %v1875 = vunpack.c.l.b16 %v1832
    %v1876 = vunpack.c.h.b16 %v1832
    %v1877 = vunpack.c.l.b16 %v1833
    %v1878 = vunpack.c.h.b16 %v1833
    %v1879 = vunpack.c.l.b16 %v1834
    %v1880 = vunpack.c.h.b16 %v1834
    %v1881 = vunpack.c.l.b16 %v1835
    %v1882 = vunpack.c.h.b16 %v1835
    %v1883 = vunpack.c.l.b16 %v1836
    %v1884 = vunpack.c.h.b16 %v1836
    %v1885 = vunpack.c.l.b16 %v1837
    %v1886 = vunpack.c.h.b16 %v1837
    %v1887 = vunpack.c.l.b16 %v1838
    %v1888 = vunpack.c.h.b16 %v1838
    %v1889 = vunpack.c.l.b16 %v1839
    %v1890 = vunpack.c.h.b16 %v1839
    %v1891 = vunpack.c.l.b16 %v1840
    %v1892 = vunpack.c.h.b16 %v1840
    %v1893 = vunpack.c.l.b16 %v1841
    %v1894 = vunpack.c.h.b16 %v1841
    %v1895 = vunpack.c.l.b16 %v1842
    %v1896 = vunpack.c.h.b16 %v1842
    %v1897 = vunpack.c.l.b16 %v1843
    %v1898 = vunpack.c.h.b16 %v1843
    %v1899 = vunpack.c.l.b16 %v1844
    %v1900 = vunpack.c.h.b16 %v1844
    %v1901 = vpack.c.b16 %v1871, %v1869
    %v1902 = vpack.c.b16 %v1872, %v1870
    %v1903 = vpack.c.b16 %v1875, %v1873
    %v1904 = vpack.c.b16 %v1876, %v1874
    %v1905 = vpack.c.b16 %v1879, %v1877
    %v1906 = vpack.c.b16 %v1880, %v1878
    %v1907 = vpack.c.b16 %v1883, %v1881
    %v1908 = vpack.c.b16 %v1884, %v1882
    %v1909 = vpack.c.b16 %v1887, %v1885
    %v1910 = vpack.c.b16 %v1888, %v1886
    %v1911 = vpack.c.b16 %v1891, %v1889
    %v1912 = vpack.c.b16 %v1892, %v1890
    %v1913 = vpack.c.b16 %v1895, %v1893
    %v1914 = vpack.c.b16 %v1896, %v1894
    %v1915 = vpack.c.b16 %v1899, %v1897
    %v1916 = vpack.c.b16 %v1900, %v1898
    %1933 = vmatpush.bf16.msra.mxu0 %v1915
    %1934 = vmatpush.bf16.msra.mxu0 %v1913
    %1935 = vmatpush.bf16.msra.mxu0 %v1911
    %1936 = vmatpush.bf16.msra.mxu0 %v1909
    %1937 = vmatpush.bf16.msra.mxu0 %v1907
    %1938 = vmatpush.bf16.msra.mxu0 %v1905
    %1939 = vmatpush.bf16.msra.mxu0 %v1903
    %1940 = vmatpush.bf16.msra.mxu0 %v1901
    %1941 = vmatmul.bf16.gmra.mxu0 %v1845
    %v1942 = vpop.f32.mrf.mxu0
    %v1943 = vadd.f32 %v1849, %v1942
    %v1944 = vpop.f32.mrf.mxu0
    %1945 = vdwg.mxu0
    %1946 = vmatpush.bf16.msra.mxu0 %v1916
    %1947 = vmatpush.bf16.msra.mxu0 %v1914
    %1948 = vmatpush.bf16.msra.mxu0 %v1912
    %1949 = vmatpush.bf16.msra.mxu0 %v1910
    %1950 = vmatpush.bf16.msra.mxu0 %v1908
    %1951 = vmatpush.bf16.msra.mxu0 %v1906
    %1952 = vmatpush.bf16.msra.mxu0 %v1904
    %1953 = vmatpush.bf16.msra.mxu0 %v1902
    %1954 = vmatmul.bf16.gmra.mxu0 %v1845
    %v1955 = vpop.f32.mrf.mxu0
    %v1956 = vadd.f32 %v1850, %v1955
    %v1957 = vpop.f32.mrf.mxu0
    %1958 = vdwg.mxu0
    %v1959 = vadd.f32 %v1677, %v1810
    %v1960 = vadd.f32 %v1679, %v1812
    %v1961 = vmul.f32 %v1560, %v1959
    %v1962 = vmul.f32 %v1562, %v1960
    %v1963 = vld [vmem:[%s17] sm:$0xff]
    %v1964 = vld [vmem:[%s17 + $0x8] sm:$0xff]
    %v1965 = vld [vmem:[%s17 + $0x10] sm:$0xff]
    %v1966 = vld [vmem:[%s17 + $0x18] sm:$0xff]
    %v1967 = vld [vmem:[%s17 + $0x20] sm:$0xff]
    %v1968 = vld [vmem:[%s17 + $0x28] sm:$0xff]
    %v1969 = vld [vmem:[%s17 + $0x30] sm:$0xff]
    %v1970 = vld [vmem:[%s17 + $0x38] sm:$0xff]
    %v1971 = vld [vmem:[%s17 + $0x40] sm:$0xff]
    %v1972 = vld [vmem:[%s17 + $0x48] sm:$0xff]
    %v1973 = vld [vmem:[%s17 + $0x50] sm:$0xff]
    %v1974 = vld [vmem:[%s17 + $0x58] sm:$0xff]
    %v1975 = vld [vmem:[%s17 + $0x60] sm:$0xff]
    %v1976 = vld [vmem:[%s17 + $0x68] sm:$0xff]
    %v1977 = vld [vmem:[%s17 + $0x70] sm:$0xff]
    %v1978 = vld [vmem:[%s17 + $0x78] sm:$0xff]
    %1979 = vmatpush.msra.mxu0 %v1978
    %1980 = vmatpush.msra.mxu0 %v1977
    %1981 = vmatpush.msra.mxu0 %v1976
    %1982 = vmatpush.msra.mxu0 %v1975
    %1983 = vmatpush.msra.mxu0 %v1974
    %1984 = vmatpush.msra.mxu0 %v1973
    %1985 = vmatpush.msra.mxu0 %v1972
    %1986 = vmatpush.msra.mxu0 %v1971
    %1987 = vmatpush.msra.mxu0 %v1970
    %1988 = vmatpush.msra.mxu0 %v1969
    %1989 = vmatpush.msra.mxu0 %v1968
    %1990 = vmatpush.msra.mxu0 %v1967
    %1991 = vmatpush.msra.mxu0 %v1966
    %1992 = vmatpush.msra.mxu0 %v1965
    %1993 = vmatpush.msra.mxu0 %v1964
    %1994 = vmatpush.msra.mxu0 %v1963
    %1995 = vmatmul.f32.gmra.mxu0 %v1961
    %v1996 = vpop.f32.mrf.mxu0
    %v1997 = vadd.f32 0.0, %v1996
    %1998 = vmatmul.f32.gmra.mxu0 %v1962
    %v1999 = vpop.f32.mrf.mxu0
    %v2000 = vadd.f32 0.0, %v1999
    %2001 = vdwg.mxu0
    %vm2002 = vcmp.gt.f32.partialorder %v95, 0.5
    %vm2003 = vcmp.gt.f32.partialorder %v96, 0.5
    %2005 = vset.pattern.permute.xlu0 0
    %2006 = vperm.xlu0 %2005, %v1997
    %v2007 = vpop.permute.xlu0 %2006
    %2010 = vset.pattern.permute.xlu0 0
    %2011 = vperm.xlu0 %2010, %v2000
    %v2012 = vpop.permute.xlu0 %2011
    %v2014 = vsel %vm2002, %v2007, -1e+30
    %v2015 = vsel %vm2003, %v2012, -1e+30
    %v2016 = vsel %vm98, %v2014, -inf
    %v2017 = vsel %vm98, %v2015, -inf
    %v2018 = vmax.f32 %v2016, %v2017
    %v2019 = vrot.slane %v2018, 4
    %v2020 = vmax.f32 %v2018, %v2019
    %v2021 = vrot.slane %v2020, 2
    %v2022 = vmax.f32 %v2020, %v2021
    %v2023 = vrot.slane %v2022, 1
    %v2024 = vmax.f32 %v2022, %v2023
    %v2025 = vsel %vm2002, %v2024, -1e+30
    %v2026 = vsel %vm2003, %v2024, -1e+30
    %v2027 = vsel %vm98, %v2025, -inf
    %2028 = vmax.xlane.f32.xlu0 %v2027
    %v2029 = vpop.xlane.xlu0 %2028
    %v2030 = vsel %vm98, %v2026, -inf
    %2031 = vmax.xlane.f32.xlu0 %v2030
    %v2032 = vpop.xlane.xlu0 %2031
    %2033 = vset.pattern.permute.xlu0 1
    %2034 = vperm.xlu0 %2033, %v1997
    %v2035 = vpop.permute.xlu0 %2034
    %2037 = vset.pattern.permute.xlu0 1
    %2038 = vperm.xlu0 %2037, %v2000
    %v2039 = vpop.permute.xlu0 %2038
    %v2041 = vsel %vm2002, %v2035, -1e+30
    %v2042 = vsel %vm2003, %v2039, -1e+30
    %v2043 = vsel %vm98, %v2041, -inf
    %v2044 = vsel %vm98, %v2042, -inf
    %v2045 = vmax.f32 %v2043, %v2044
    %v2046 = vrot.slane %v2045, 4
    %v2047 = vmax.f32 %v2045, %v2046
    %v2048 = vrot.slane %v2047, 2
    %v2049 = vmax.f32 %v2047, %v2048
    %v2050 = vrot.slane %v2049, 1
    %v2051 = vmax.f32 %v2049, %v2050
    %v2052 = vsel %vm2002, %v2051, -1e+30
    %v2053 = vsel %vm2003, %v2051, -1e+30
    %v2054 = vsel %vm98, %v2052, -inf
    %2055 = vmax.xlane.f32.xlu0 %v2054
    %v2056 = vpop.xlane.xlu0 %2055
    %v2057 = vsel %vm98, %v2053, -inf
    %2058 = vmax.xlane.f32.xlu0 %v2057
    %v2059 = vpop.xlane.xlu0 %2058
    %2060 = vset.pattern.permute.xlu0 2
    %2061 = vperm.xlu0 %2060, %v1997
    %v2062 = vpop.permute.xlu0 %2061
    %2064 = vset.pattern.permute.xlu0 2
    %2065 = vperm.xlu0 %2064, %v2000
    %v2066 = vpop.permute.xlu0 %2065
    %v2068 = vsel %vm2002, %v2062, -1e+30
    %v2069 = vsel %vm2003, %v2066, -1e+30
    %v2070 = vsel %vm98, %v2068, -inf
    %v2071 = vsel %vm98, %v2069, -inf
    %v2072 = vmax.f32 %v2070, %v2071
    %v2073 = vrot.slane %v2072, 4
    %v2074 = vmax.f32 %v2072, %v2073
    %v2075 = vrot.slane %v2074, 2
    %v2076 = vmax.f32 %v2074, %v2075
    %v2077 = vrot.slane %v2076, 1
    %v2078 = vmax.f32 %v2076, %v2077
    %v2079 = vsel %vm2002, %v2078, -1e+30
    %v2080 = vsel %vm2003, %v2078, -1e+30
    %v2081 = vsel %vm98, %v2079, -inf
    %2082 = vmax.xlane.f32.xlu0 %v2081
    %v2083 = vpop.xlane.xlu0 %2082
    %v2084 = vsel %vm98, %v2080, -inf
    %2085 = vmax.xlane.f32.xlu0 %v2084
    %v2086 = vpop.xlane.xlu0 %2085
    %2087 = vset.pattern.permute.xlu0 3
    %2088 = vperm.xlu0 %2087, %v1997
    %v2089 = vpop.permute.xlu0 %2088
    %2091 = vset.pattern.permute.xlu0 3
    %2092 = vperm.xlu0 %2091, %v2000
    %v2093 = vpop.permute.xlu0 %2092
    %v2095 = vsel %vm2002, %v2089, -1e+30
    %v2096 = vsel %vm2003, %v2093, -1e+30
    %v2097 = vsel %vm98, %v2095, -inf
    %v2098 = vsel %vm98, %v2096, -inf
    %v2099 = vmax.f32 %v2097, %v2098
    %v2100 = vrot.slane %v2099, 4
    %v2101 = vmax.f32 %v2099, %v2100
    %v2102 = vrot.slane %v2101, 2
    %v2103 = vmax.f32 %v2101, %v2102
    %v2104 = vrot.slane %v2103, 1
    %v2105 = vmax.f32 %v2103, %v2104
    %v2106 = vsel %vm2002, %v2105, -1e+30
    %v2107 = vsel %vm2003, %v2105, -1e+30
    %v2108 = vsel %vm98, %v2106, -inf
    %2109 = vmax.xlane.f32.xlu0 %v2108
    %v2110 = vpop.xlane.xlu0 %2109
    %v2111 = vsel %vm98, %v2107, -inf
    %2112 = vmax.xlane.f32.xlu0 %v2111
    %v2113 = vpop.xlane.xlu0 %2112
    %2114 = vset.pattern.permute.xlu0 4
    %2115 = vperm.xlu0 %2114, %v1997
    %v2116 = vpop.permute.xlu0 %2115
    %2118 = vset.pattern.permute.xlu0 4
    %2119 = vperm.xlu0 %2118, %v2000
    %v2120 = vpop.permute.xlu0 %2119
    %v2122 = vsel %vm2002, %v2116, -1e+30
    %v2123 = vsel %vm2003, %v2120, -1e+30
    %v2124 = vsel %vm98, %v2122, -inf
    %v2125 = vsel %vm98, %v2123, -inf
    %v2126 = vmax.f32 %v2124, %v2125
    %v2127 = vrot.slane %v2126, 4
    %v2128 = vmax.f32 %v2126, %v2127
    %v2129 = vrot.slane %v2128, 2
    %v2130 = vmax.f32 %v2128, %v2129
    %v2131 = vrot.slane %v2130, 1
    %v2132 = vmax.f32 %v2130, %v2131
    %v2133 = vsel %vm2002, %v2132, -1e+30
    %v2134 = vsel %vm2003, %v2132, -1e+30
    %v2135 = vsel %vm98, %v2133, -inf
    %2136 = vmax.xlane.f32.xlu0 %v2135
    %v2137 = vpop.xlane.xlu0 %2136
    %v2138 = vsel %vm98, %v2134, -inf
    %2139 = vmax.xlane.f32.xlu0 %v2138
    %v2140 = vpop.xlane.xlu0 %2139
    %2141 = vset.pattern.permute.xlu0 5
    %2142 = vperm.xlu0 %2141, %v1997
    %v2143 = vpop.permute.xlu0 %2142
    %2145 = vset.pattern.permute.xlu0 5
    %2146 = vperm.xlu0 %2145, %v2000
    %v2147 = vpop.permute.xlu0 %2146
    %v2149 = vsel %vm2002, %v2143, -1e+30
    %v2150 = vsel %vm2003, %v2147, -1e+30
    %v2151 = vsel %vm98, %v2149, -inf
    %v2152 = vsel %vm98, %v2150, -inf
    %v2153 = vmax.f32 %v2151, %v2152
    %v2154 = vrot.slane %v2153, 4
    %v2155 = vmax.f32 %v2153, %v2154
    %v2156 = vrot.slane %v2155, 2
    %v2157 = vmax.f32 %v2155, %v2156
    %v2158 = vrot.slane %v2157, 1
    %v2159 = vmax.f32 %v2157, %v2158
    %v2160 = vsel %vm2002, %v2159, -1e+30
    %v2161 = vsel %vm2003, %v2159, -1e+30
    %v2162 = vsel %vm98, %v2160, -inf
    %2163 = vmax.xlane.f32.xlu0 %v2162
    %v2164 = vpop.xlane.xlu0 %2163
    %v2165 = vsel %vm98, %v2161, -inf
    %2166 = vmax.xlane.f32.xlu0 %v2165
    %v2167 = vpop.xlane.xlu0 %2166
    %2168 = vset.pattern.permute.xlu0 6
    %2169 = vperm.xlu0 %2168, %v1997
    %v2170 = vpop.permute.xlu0 %2169
    %2172 = vset.pattern.permute.xlu0 6
    %2173 = vperm.xlu0 %2172, %v2000
    %v2174 = vpop.permute.xlu0 %2173
    %v2176 = vsel %vm2002, %v2170, -1e+30
    %v2177 = vsel %vm2003, %v2174, -1e+30
    %v2178 = vsel %vm98, %v2176, -inf
    %v2179 = vsel %vm98, %v2177, -inf
    %v2180 = vmax.f32 %v2178, %v2179
    %v2181 = vrot.slane %v2180, 4
    %v2182 = vmax.f32 %v2180, %v2181
    %v2183 = vrot.slane %v2182, 2
    %v2184 = vmax.f32 %v2182, %v2183
    %v2185 = vrot.slane %v2184, 1
    %v2186 = vmax.f32 %v2184, %v2185
    %v2187 = vsel %vm2002, %v2186, -1e+30
    %v2188 = vsel %vm2003, %v2186, -1e+30
    %v2189 = vsel %vm98, %v2187, -inf
    %2190 = vmax.xlane.f32.xlu0 %v2189
    %v2191 = vpop.xlane.xlu0 %2190
    %v2192 = vsel %vm98, %v2188, -inf
    %2193 = vmax.xlane.f32.xlu0 %v2192
    %v2194 = vpop.xlane.xlu0 %2193
    %2195 = vset.pattern.permute.xlu0 7
    %2196 = vperm.xlu0 %2195, %v1997
    %v2197 = vpop.permute.xlu0 %2196
    %2199 = vset.pattern.permute.xlu0 7
    %2200 = vperm.xlu0 %2199, %v2000
    %v2201 = vpop.permute.xlu0 %2200
    %v2203 = vsel %vm2002, %v2197, -1e+30
    %v2204 = vsel %vm2003, %v2201, -1e+30
    %v2205 = vsel %vm98, %v2203, -inf
    %v2206 = vsel %vm98, %v2204, -inf
    %v2207 = vmax.f32 %v2205, %v2206
    %v2208 = vrot.slane %v2207, 4
    %v2209 = vmax.f32 %v2207, %v2208
    %v2210 = vrot.slane %v2209, 2
    %v2211 = vmax.f32 %v2209, %v2210
    %v2212 = vrot.slane %v2211, 1
    %v2213 = vmax.f32 %v2211, %v2212
    %v2214 = vsel %vm2002, %v2213, -1e+30
    %v2215 = vsel %vm2003, %v2213, -1e+30
    %v2216 = vsel %vm98, %v2214, -inf
    %2217 = vmax.xlane.f32.xlu0 %v2216
    %v2218 = vpop.xlane.xlu0 %2217
    %v2219 = vsel %vm98, %v2215, -inf
    %2220 = vmax.xlane.f32.xlu0 %v2219
    %v2221 = vpop.xlane.xlu0 %2220
    %v2222 = vsel %vm213, %v2029, %v2056
    %v2223 = vsel %vm213, %v2032, %v2059
    %v2224 = vsel %vm858, %v2222, %v2083
    %v2225 = vsel %vm858, %v2223, %v2086
    %vm2226 = vcmask 23552
    %v2227 = vsel %vm2226, %v2224, %v2110
    %v2228 = vsel %vm2226, %v2225, %v2113
    %vm2229 = vcmask 31744
    %v2230 = vsel %vm2229, %v2227, %v2137
    %v2231 = vsel %vm2229, %v2228, %v2140
    %vm2232 = vcmask 39936
    %v2233 = vsel %vm2232, %v2230, %v2164
    %v2234 = vsel %vm2232, %v2231, %v2167
    %vm2235 = vcmask 48128
    %v2236 = vsel %vm2235, %v2233, %v2191
    %v2237 = vsel %vm2235, %v2234, %v2194
    %vm2238 = vcmask 56320
    %v2239 = vsel %vm2238, %v2236, %v2218
    %v2240 = vsel %vm2238, %v2237, %v2221
    %v2241 = vsub.f32 %v1997, %v2239
    %v2242 = vsub.f32 %v2000, %v2240
    %v2243 = vmul.f32 %v2241, 1.442695
    %v2244 = vpow.pop %v2243
    %v2245 = vmul.f32 %v2242, 1.442695
    %v2246 = vpow.pop %v2245
    %2247 = vxpose.xlu0.b32.start [1/16] %v95, 128
    %2248 = vxpose.xlu0.b32.cont [2/16] %v96, 128
    %2249 = vxpose.xlu0.b32.cont [3/16] 0.0, 128
    %2250 = vxpose.xlu0.b32.cont [4/16] 0.0, 128
    %2251 = vxpose.xlu0.b32.cont [5/16] 0.0, 128
    %2252 = vxpose.xlu0.b32.cont [6/16] 0.0, 128
    %2253 = vxpose.xlu0.b32.cont [7/16] 0.0, 128
    %2254 = vxpose.xlu0.b32.cont [8/16] 0.0, 128
    %2255 = vxpose.xlu0.b32.cont [9/16] 0.0, 128
    %2256 = vxpose.xlu0.b32.cont [10/16] 0.0, 128
    %2257 = vxpose.xlu0.b32.cont [11/16] 0.0, 128
    %2258 = vxpose.xlu0.b32.cont [12/16] 0.0, 128
    %2259 = vxpose.xlu0.b32.cont [13/16] 0.0, 128
    %2260 = vxpose.xlu0.b32.cont [14/16] 0.0, 128
    %2261 = vxpose.xlu0.b32.cont [15/16] 0.0, 128
    %2262 = vxpose.xlu0.b32.end [16/16] 0.0, 128
    %v2263 = vpop.trf.xlu0
    %v2264 = vpop.trf.xlu0
    %v2265 = vpop.trf.xlu0
    %v2266 = vpop.trf.xlu0
    %v2267 = vpop.trf.xlu0
    %v2268 = vpop.trf.xlu0
    %v2269 = vpop.trf.xlu0
    %v2270 = vpop.trf.xlu0
    %v2271 = vpop.trf.xlu0
    %v2272 = vpop.trf.xlu0
    %v2273 = vpop.trf.xlu0
    %v2274 = vpop.trf.xlu0
    %v2275 = vpop.trf.xlu0
    %v2276 = vpop.trf.xlu0
    %v2277 = vpop.trf.xlu0
    %v2278 = vpop.trf.xlu0
    %vm2279 = vcmask 130048
    %v2281 = vsel %vm2279, %v2263, 0
    %2283 = vmatpush.msra.mxu0 0.0
    %2284 = vmatpush.msra.mxu0 0.0
    %2285 = vmatpush.msra.mxu0 0.0
    %2286 = vmatpush.msra.mxu0 0.0
    %2287 = vmatpush.msra.mxu0 0.0
    %2288 = vmatpush.msra.mxu0 0.0
    %2289 = vmatpush.msra.mxu0 0.0
    %2290 = vmatpush.msra.mxu0 0.0
    %2291 = vmatpush.msra.mxu0 0.0
    %2292 = vmatpush.msra.mxu0 0.0
    %2293 = vmatpush.msra.mxu0 0.0
    %2294 = vmatpush.msra.mxu0 0.0
    %2295 = vmatpush.msra.mxu0 0.0
    %2296 = vmatpush.msra.mxu0 0.0
    %2297 = vmatpush.msra.mxu0 %v2246
    %2298 = vmatpush.msra.mxu0 %v2244
    %2299 = vmatmul.f32.gmra.mxu0 %v2281
    %v2300 = vpop.f32.mrf.mxu0
    %v2301 = vadd.f32 0.0, %v2300
    %2302 = vdwg.mxu0
    %2303 = vmatpush.msra.mxu0 0.0
    %2304 = vmatpush.msra.mxu0 0.0
    %2305 = vmatpush.msra.mxu0 0.0
    %2306 = vmatpush.msra.mxu0 0.0
    %2307 = vmatpush.msra.mxu0 0.0
    %2308 = vmatpush.msra.mxu0 0.0
    %2309 = vmatpush.msra.mxu0 0.0
    %2310 = vmatpush.msra.mxu0 0.0
    %2311 = vmatpush.msra.mxu0 0.0
    %2312 = vmatpush.msra.mxu0 0.0
    %2313 = vmatpush.msra.mxu0 0.0
    %2314 = vmatpush.msra.mxu0 0.0
    %2315 = vmatpush.msra.mxu0 0.0
    %2316 = vmatpush.msra.mxu0 0.0
    %2317 = vmatpush.msra.mxu0 0.0
    %2318 = vmatpush.msra.mxu0 %v2301
    %2319 = vmatmul.f32.gmra.mxu0 %v129
    %v2320 = vpop.f32.mrf.mxu0
    %v2321 = vadd.f32 1e-16, %v2320
    %2322 = vmatmul.f32.gmra.mxu0 %v132
    %v2323 = vpop.f32.mrf.mxu0
    %v2324 = vadd.f32 1e-16, %v2323
    %2325 = vdwg.mxu0
    %v2326 = vrcp.pop %v2321
    %v2327 = vrcp.pop %v2324
    %v2328 = vmul.f32 %v2244, %v2326
    %v2329 = vmul.f32 %v2246, %v2327
    %v2330 = vld [vmem:[%s18] sm:$0xff]
    %v2332 = vsel %vm98, %v2328, 0
    %v2335 = vsel %vm98, %v2329, 0
    %2337 = vmatpush.msra.mxu0 0.0
    %2338 = vmatpush.msra.mxu0 0.0
    %2339 = vmatpush.msra.mxu0 0.0
    %2340 = vmatpush.msra.mxu0 0.0
    %2341 = vmatpush.msra.mxu0 0.0
    %2342 = vmatpush.msra.mxu0 0.0
    %2343 = vmatpush.msra.mxu0 0.0
    %2344 = vmatpush.msra.mxu0 0.0
    %2345 = vmatpush.msra.mxu0 0.0
    %2346 = vmatpush.msra.mxu0 0.0
    %2347 = vmatpush.msra.mxu0 0.0
    %2348 = vmatpush.msra.mxu0 0.0
    %2349 = vmatpush.msra.mxu0 0.0
    %2350 = vmatpush.msra.mxu0 0.0
    %2351 = vmatpush.msra.mxu0 0.0
    %2352 = vmatpush.msra.mxu0 %v2330
    %2353 = vmatmul.f32.gmra.mxu0 %v2332
    %v2354 = vpop.f32.mrf.mxu0
    %v2355 = vadd.f32 0.0, %v2354
    %2356 = vmatmul.f32.gmra.mxu0 %v2335
    %v2357 = vpop.f32.mrf.mxu0
    %v2358 = vadd.f32 0.0, %v2357
    %2359 = vdwg.mxu0
    %v2360 = vadd.f32 %v1691, %v1824
    %v2361 = vadd.f32 %v1693, %v1826
    %v2362 = vmul.f32 %v2360, %v2355
    %v2363 = vmul.f32 %v2361, %v2358
    %2364 = vmatpush.msra.mxu0 0.0
    %2365 = vmatpush.msra.mxu0 0.0
    %2366 = vmatpush.msra.mxu0 0.0
    %2367 = vmatpush.msra.mxu0 0.0
    %2368 = vmatpush.msra.mxu0 0.0
    %2369 = vmatpush.msra.mxu0 0.0
    %2370 = vmatpush.msra.mxu0 0.0
    %2371 = vmatpush.msra.mxu0 0.0
    %2372 = vmatpush.msra.mxu0 0.0
    %2373 = vmatpush.msra.mxu0 0.0
    %2374 = vmatpush.msra.mxu0 0.0
    %2375 = vmatpush.msra.mxu0 0.0
    %2376 = vmatpush.msra.mxu0 0.0
    %2377 = vmatpush.msra.mxu0 0.0
    %2378 = vmatpush.msra.mxu0 %v2363
    %2379 = vmatpush.msra.mxu0 %v2362
    %2380 = vmatmul.f32.gmra.mxu0 %v2281
    %v2381 = vpop.f32.mrf.mxu0
    %v2382 = vadd.f32 0.0, %v2381
    %2383 = vdwg.mxu0
    %s2384 = scalar_lea.vmem %s8, 64
    %v2385 = vld [vmem:[%s2384] sm:$0xf]
    %v2386 = vld [vmem:[%s2384 + $0x4] sm:$0xf]
    %v2387 = vld [vmem:[%s2384 + $0x8] sm:$0xf]
    %v2388 = vld [vmem:[%s2384 + $0xc] sm:$0xf]
    %v2389 = vld [vmem:[%s2384 + $0x10] sm:$0xf]
    %v2390 = vld [vmem:[%s2384 + $0x14] sm:$0xf]
    %v2391 = vld [vmem:[%s2384 + $0x18] sm:$0xf]
    %v2392 = vld [vmem:[%s2384 + $0x1c] sm:$0xf]
    %v2393 = vld [vmem:[%s2384 + $0x20] sm:$0xf]
    %v2394 = vld [vmem:[%s2384 + $0x24] sm:$0xf]
    %v2395 = vld [vmem:[%s2384 + $0x28] sm:$0xf]
    %v2396 = vld [vmem:[%s2384 + $0x2c] sm:$0xf]
    %v2397 = vld [vmem:[%s2384 + $0x30] sm:$0xf]
    %v2398 = vld [vmem:[%s2384 + $0x34] sm:$0xf]
    %v2399 = vld [vmem:[%s2384 + $0x38] sm:$0xf]
    %v2400 = vld [vmem:[%s2384 + $0x3c] sm:$0xf]
    %v2401 = vpack.c.bf16 %v2382, %v2382
    %s2402 = scalar_lea.vmem %s9, 1
    %v2403 = vld [vmem:[%s2402] sm:$0x1]
    %v2405 = vperm.slane %v2403, 0
    %v2423 = vunpack.c.l.b16 %v2385
    %v2424 = vunpack.c.l.b16 %v2386
    %v2425 = vunpack.c.l.b16 %v2387
    %v2426 = vunpack.c.l.b16 %v2388
    %v2427 = vunpack.c.l.b16 %v2389
    %v2428 = vunpack.c.l.b16 %v2390
    %v2429 = vunpack.c.l.b16 %v2391
    %v2430 = vunpack.c.l.b16 %v2392
    %v2431 = vunpack.c.l.b16 %v2393
    %v2432 = vunpack.c.l.b16 %v2394
    %v2433 = vunpack.c.l.b16 %v2395
    %v2434 = vunpack.c.l.b16 %v2396
    %v2435 = vunpack.c.l.b16 %v2397
    %v2436 = vunpack.c.l.b16 %v2398
    %v2437 = vunpack.c.l.b16 %v2399
    %v2438 = vunpack.c.l.b16 %v2400
    %v2439 = vpack.c.b16 %v2424, %v2423
    %v2440 = vpack.c.b16 %v2426, %v2425
    %v2441 = vpack.c.b16 %v2428, %v2427
    %v2442 = vpack.c.b16 %v2430, %v2429
    %v2443 = vpack.c.b16 %v2432, %v2431
    %v2444 = vpack.c.b16 %v2434, %v2433
    %v2445 = vpack.c.b16 %v2436, %v2435
    %v2446 = vpack.c.b16 %v2438, %v2437
    %2455 = vmatpush.bf16.msra.mxu0 %v2446
    %2456 = vmatpush.bf16.msra.mxu0 %v2445
    %2457 = vmatpush.bf16.msra.mxu0 %v2444
    %2458 = vmatpush.bf16.msra.mxu0 %v2443
    %2459 = vmatpush.bf16.msra.mxu0 %v2442
    %2460 = vmatpush.bf16.msra.mxu0 %v2441
    %2461 = vmatpush.bf16.msra.mxu0 %v2440
    %2462 = vmatpush.bf16.msra.mxu0 %v2439
    %2463 = vmatmul.bf16.gmra.mxu0 %v2401
    %v2464 = vpop.f32.mrf.mxu0
    %v2465 = vadd.f32 %v2405, %v2464
    %v2466 = vpop.f32.mrf.mxu0
    %2467 = vdwg.mxu0
    %v2468 = vadd.f32 %v2465, %v1956
    %v2469 = vxor.u32 %v2468, 2147483648
    %v2470 = vmul.f32 %v2469, 1.442695
    %v2471 = vpow.pop %v2470
    %v2472 = vadd.f32 %v2471, 1.0
    %v2473 = vrcp.pop %v2472
    %v2474 = vmul.f32 %v2472, %v2473
    %v2475 = vsub.f32 1.0, %v2474
    %v2476 = vmul.f32 %v2473, %v2475
    %v2477 = vadd.f32 %v2473, %v2476
    %vm2478 = vweird.f32 %v2472
    %vm2479 = vweird.f32 %v2473
    %vm2480 = vmor %vm2478, %vm2479
    %v2481 = vsel %vm2480, %v2473, %v2477
    %v2482 = vand.u32 2147483647, %v2472
    %vm2483 = vcmp.eq.f32.partialorder %v2482, 8.507059e+37
    %v2484 = vand.u32 %v2472, 2147483648
    %v2485 = vor.u32 1.1754944e-38, %v2484
    %v2486 = vsel %vm2483, %v2485, %v2481
    %v2487 = vmul.f32 1.0, %v2486
    %v2488 = vsub.f32 %v1943, %v2382
    %v2489 = vmul.f32 %v2487, %v2488
    %v2490 = vadd.f32 %v2382, %v2489
    %s2491 = scalar_lea.vmem %s8, 128
    %v2492 = vld [vmem:[%s2491] sm:$0xf]
    %v2493 = vld [vmem:[%s2491 + $0x4] sm:$0xf]
    %v2494 = vld [vmem:[%s2491 + $0x8] sm:$0xf]
    %v2495 = vld [vmem:[%s2491 + $0xc] sm:$0xf]
    %v2496 = vld [vmem:[%s2491 + $0x10] sm:$0xf]
    %v2497 = vld [vmem:[%s2491 + $0x14] sm:$0xf]
    %v2498 = vld [vmem:[%s2491 + $0x18] sm:$0xf]
    %v2499 = vld [vmem:[%s2491 + $0x1c] sm:$0xf]
    %v2500 = vld [vmem:[%s2491 + $0x20] sm:$0xf]
    %v2501 = vld [vmem:[%s2491 + $0x24] sm:$0xf]
    %v2502 = vld [vmem:[%s2491 + $0x28] sm:$0xf]
    %v2503 = vld [vmem:[%s2491 + $0x2c] sm:$0xf]
    %v2504 = vld [vmem:[%s2491 + $0x30] sm:$0xf]
    %v2505 = vld [vmem:[%s2491 + $0x34] sm:$0xf]
    %v2506 = vld [vmem:[%s2491 + $0x38] sm:$0xf]
    %v2507 = vld [vmem:[%s2491 + $0x3c] sm:$0xf]
    %v2508 = vpack.c.bf16 %v2490, %v2490
    %v2525 = vunpack.c.l.b16 %v2492
    %v2526 = vunpack.c.l.b16 %v2493
    %v2527 = vunpack.c.l.b16 %v2494
    %v2528 = vunpack.c.l.b16 %v2495
    %v2529 = vunpack.c.l.b16 %v2496
    %v2530 = vunpack.c.l.b16 %v2497
    %v2531 = vunpack.c.l.b16 %v2498
    %v2532 = vunpack.c.l.b16 %v2499
    %v2533 = vunpack.c.l.b16 %v2500
    %v2534 = vunpack.c.l.b16 %v2501
    %v2535 = vunpack.c.l.b16 %v2502
    %v2536 = vunpack.c.l.b16 %v2503
    %v2537 = vunpack.c.l.b16 %v2504
    %v2538 = vunpack.c.l.b16 %v2505
    %v2539 = vunpack.c.l.b16 %v2506
    %v2540 = vunpack.c.l.b16 %v2507
    %v2541 = vpack.c.b16 %v2526, %v2525
    %v2542 = vpack.c.b16 %v2528, %v2527
    %v2543 = vpack.c.b16 %v2530, %v2529
    %v2544 = vpack.c.b16 %v2532, %v2531
    %v2545 = vpack.c.b16 %v2534, %v2533
    %v2546 = vpack.c.b16 %v2536, %v2535
    %v2547 = vpack.c.b16 %v2538, %v2537
    %v2548 = vpack.c.b16 %v2540, %v2539
    %2557 = vmatpush.bf16.msra.mxu0 %v2548
    %2558 = vmatpush.bf16.msra.mxu0 %v2547
    %2559 = vmatpush.bf16.msra.mxu0 %v2546
    %2560 = vmatpush.bf16.msra.mxu0 %v2545
    %2561 = vmatpush.bf16.msra.mxu0 %v2544
    %2562 = vmatpush.bf16.msra.mxu0 %v2543
    %2563 = vmatpush.bf16.msra.mxu0 %v2542
    %2564 = vmatpush.bf16.msra.mxu0 %v2541
    %2565 = vmatmul.bf16.gmra.mxu0 %v2508
    %v2566 = vpop.f32.mrf.mxu0
    %v2567 = vadd.f32 0.0, %v2566
    %v2568 = vpop.f32.mrf.mxu0
    %2569 = vdwg.mxu0
    %v2570 = vadd.f32 %v1401, %v2567
    %s2571 = scalar_lea.vmem %s9, 2
    %v2572 = vld [vmem:[%s2571] sm:$0x1]
    %v2574 = vperm.slane %v2572, 0
    %v2576 = vadd.f32 %v2570, %v2574
    %s2577 = scalar_lea.vmem %s12, 2
    %v2578 = vld [vmem:[%s2577] sm:$0x1]
    %s2579 = scalar_lea.vmem %s12, 3
    %v2580 = vld [vmem:[%s2579] sm:$0x1]
    %v2581 = vmul.f32 %v2576, %v68
    %2582 = vadd.xlane.f32.xlu0 %v2581
    %v2583 = vpop.xlane.xlu0 %2582
    %v2584 = vmul.f32 %v2583, 0.03125
    %v2585 = vsub.f32 %v2576, %v2584
    %v2586 = vmul.f32 %v2585, %v68
    %v2587 = vmul.f32 %v2586, %v2586
    %2588 = vadd.xlane.f32.xlu0 %v2587
    %v2589 = vpop.xlane.xlu0 %2588
    %v2590 = vmul.f32 %v2589, 0.03125
    %v2591 = vadd.f32 %v2590, 1e-05
    %v2592 = vrsqrt.pop %v2591
    %v2593 = vmul.f32 %v2592, %v2591
    %v2594 = vmul.f32 %v2593, %v2592
    %v2595 = vmul.f32 0.5, %v2594
    %v2596 = vsub.f32 1.5, %v2595
    %v2597 = vmul.f32 %v2592, %v2596
    %vm2598 = vweird.f32 %v2591
    %vm2599 = vweird.f32 %v2592
    %vm2600 = vmor %vm2598, %vm2599
    %v2601 = vsel %vm2600, %v2592, %v2597
    %v2602 = vmul.f32 %v2586, %v2601
    %v2604 = vperm.slane %v2578, 0
    %v2606 = vmul.f32 %v2602, %v2604
    %v2608 = vperm.slane %v2580, 0
    %v2610 = vadd.f32 %v2606, %v2608
    %v2611 = vld [vmem:[%s13] sm:$0xf]
    %v2612 = vld [vmem:[%s13 + $0x4] sm:$0xf]
    %v2613 = vld [vmem:[%s13 + $0x8] sm:$0xf]
    %v2614 = vld [vmem:[%s13 + $0xc] sm:$0xf]
    %v2615 = vld [vmem:[%s13 + $0x10] sm:$0xf]
    %v2616 = vld [vmem:[%s13 + $0x14] sm:$0xf]
    %v2617 = vld [vmem:[%s13 + $0x18] sm:$0xf]
    %v2618 = vld [vmem:[%s13 + $0x1c] sm:$0xf]
    %v2619 = vld [vmem:[%s13 + $0x20] sm:$0xf]
    %v2620 = vld [vmem:[%s13 + $0x24] sm:$0xf]
    %v2621 = vld [vmem:[%s13 + $0x28] sm:$0xf]
    %v2622 = vld [vmem:[%s13 + $0x2c] sm:$0xf]
    %v2623 = vld [vmem:[%s13 + $0x30] sm:$0xf]
    %v2624 = vld [vmem:[%s13 + $0x34] sm:$0xf]
    %v2625 = vld [vmem:[%s13 + $0x38] sm:$0xf]
    %v2626 = vld [vmem:[%s13 + $0x3c] sm:$0xf]
    %v2627 = vpack.c.bf16 %v2610, %v2610
    %v2628 = vld [vmem:[%s14] sm:$0x1]
    %v2630 = vperm.slane %v2628, 0
    %v2648 = vunpack.c.l.b16 %v2611
    %v2649 = vunpack.c.l.b16 %v2612
    %v2650 = vunpack.c.l.b16 %v2613
    %v2651 = vunpack.c.l.b16 %v2614
    %v2652 = vunpack.c.l.b16 %v2615
    %v2653 = vunpack.c.l.b16 %v2616
    %v2654 = vunpack.c.l.b16 %v2617
    %v2655 = vunpack.c.l.b16 %v2618
    %v2656 = vunpack.c.l.b16 %v2619
    %v2657 = vunpack.c.l.b16 %v2620
    %v2658 = vunpack.c.l.b16 %v2621
    %v2659 = vunpack.c.l.b16 %v2622
    %v2660 = vunpack.c.l.b16 %v2623
    %v2661 = vunpack.c.l.b16 %v2624
    %v2662 = vunpack.c.l.b16 %v2625
    %v2663 = vunpack.c.l.b16 %v2626
    %v2664 = vpack.c.b16 %v2649, %v2648
    %v2665 = vpack.c.b16 %v2651, %v2650
    %v2666 = vpack.c.b16 %v2653, %v2652
    %v2667 = vpack.c.b16 %v2655, %v2654
    %v2668 = vpack.c.b16 %v2657, %v2656
    %v2669 = vpack.c.b16 %v2659, %v2658
    %v2670 = vpack.c.b16 %v2661, %v2660
    %v2671 = vpack.c.b16 %v2663, %v2662
    %2680 = vmatpush.bf16.msra.mxu0 %v2671
    %2681 = vmatpush.bf16.msra.mxu0 %v2670
    %2682 = vmatpush.bf16.msra.mxu0 %v2669
    %2683 = vmatpush.bf16.msra.mxu0 %v2668
    %2684 = vmatpush.bf16.msra.mxu0 %v2667
    %2685 = vmatpush.bf16.msra.mxu0 %v2666
    %2686 = vmatpush.bf16.msra.mxu0 %v2665
    %2687 = vmatpush.bf16.msra.mxu0 %v2664
    %2688 = vmatmul.bf16.gmra.mxu0 %v2627
    %v2689 = vpop.f32.mrf.mxu0
    %v2690 = vadd.f32 %v2630, %v2689
    %v2691 = vpop.f32.mrf.mxu0
    %2692 = vdwg.mxu0
    %v2693 = vmax.f32 %v2690, 0.0
    %v2694 = vld [vmem:[%s15] sm:$0xf]
    %v2695 = vld [vmem:[%s15 + $0x4] sm:$0xf]
    %v2696 = vld [vmem:[%s15 + $0x8] sm:$0xf]
    %v2697 = vld [vmem:[%s15 + $0xc] sm:$0xf]
    %v2698 = vld [vmem:[%s15 + $0x10] sm:$0xf]
    %v2699 = vld [vmem:[%s15 + $0x14] sm:$0xf]
    %v2700 = vld [vmem:[%s15 + $0x18] sm:$0xf]
    %v2701 = vld [vmem:[%s15 + $0x1c] sm:$0xf]
    %v2702 = vld [vmem:[%s15 + $0x20] sm:$0xf]
    %v2703 = vld [vmem:[%s15 + $0x24] sm:$0xf]
    %v2704 = vld [vmem:[%s15 + $0x28] sm:$0xf]
    %v2705 = vld [vmem:[%s15 + $0x2c] sm:$0xf]
    %v2706 = vld [vmem:[%s15 + $0x30] sm:$0xf]
    %v2707 = vld [vmem:[%s15 + $0x34] sm:$0xf]
    %v2708 = vld [vmem:[%s15 + $0x38] sm:$0xf]
    %v2709 = vld [vmem:[%s15 + $0x3c] sm:$0xf]
    %v2710 = vpack.c.bf16 %v2693, %v2693
    %v2727 = vunpack.c.l.b16 %v2694
    %v2728 = vunpack.c.l.b16 %v2695
    %v2729 = vunpack.c.l.b16 %v2696
    %v2730 = vunpack.c.l.b16 %v2697
    %v2731 = vunpack.c.l.b16 %v2698
    %v2732 = vunpack.c.l.b16 %v2699
    %v2733 = vunpack.c.l.b16 %v2700
    %v2734 = vunpack.c.l.b16 %v2701
    %v2735 = vunpack.c.l.b16 %v2702
    %v2736 = vunpack.c.l.b16 %v2703
    %v2737 = vunpack.c.l.b16 %v2704
    %v2738 = vunpack.c.l.b16 %v2705
    %v2739 = vunpack.c.l.b16 %v2706
    %v2740 = vunpack.c.l.b16 %v2707
    %v2741 = vunpack.c.l.b16 %v2708
    %v2742 = vunpack.c.l.b16 %v2709
    %v2743 = vpack.c.b16 %v2728, %v2727
    %v2744 = vpack.c.b16 %v2730, %v2729
    %v2745 = vpack.c.b16 %v2732, %v2731
    %v2746 = vpack.c.b16 %v2734, %v2733
    %v2747 = vpack.c.b16 %v2736, %v2735
    %v2748 = vpack.c.b16 %v2738, %v2737
    %v2749 = vpack.c.b16 %v2740, %v2739
    %v2750 = vpack.c.b16 %v2742, %v2741
    %2759 = vmatpush.bf16.msra.mxu0 %v2750
    %2760 = vmatpush.bf16.msra.mxu0 %v2749
    %2761 = vmatpush.bf16.msra.mxu0 %v2748
    %2762 = vmatpush.bf16.msra.mxu0 %v2747
    %2763 = vmatpush.bf16.msra.mxu0 %v2746
    %2764 = vmatpush.bf16.msra.mxu0 %v2745
    %2765 = vmatpush.bf16.msra.mxu0 %v2744
    %2766 = vmatpush.bf16.msra.mxu0 %v2743
    %2767 = vmatmul.bf16.gmra.mxu0 %v2710
    %v2768 = vpop.f32.mrf.mxu0
    %v2769 = vadd.f32 0.0, %v2768
    %v2770 = vpop.f32.mrf.mxu0
    %2771 = vdwg.mxu0
    %v2772 = vadd.f32 %v2576, %v2769
    %v2773 = vld [vmem:[%s16] sm:$0x1]
    %v2775 = vperm.slane %v2773, 0
    %v2777 = vadd.f32 %v2772, %v2775
    %s2778 = scalar_lea.vmem %s12, 4
    %v2779 = vld [vmem:[%s2778] sm:$0x1]
    %s2780 = scalar_lea.vmem %s12, 5
    %v2781 = vld [vmem:[%s2780] sm:$0x1]
    %v2782 = vmul.f32 %v2777, %v68
    %2783 = vadd.xlane.f32.xlu0 %v2782
    %v2784 = vpop.xlane.xlu0 %2783
    %v2785 = vmul.f32 %v2784, 0.03125
    %v2786 = vsub.f32 %v2777, %v2785
    %v2787 = vmul.f32 %v2786, %v68
    %v2788 = vmul.f32 %v2787, %v2787
    %2789 = vadd.xlane.f32.xlu0 %v2788
    %v2790 = vpop.xlane.xlu0 %2789
    %v2791 = vmul.f32 %v2790, 0.03125
    %v2792 = vadd.f32 %v2791, 1e-05
    %v2793 = vrsqrt.pop %v2792
    %v2794 = vmul.f32 %v2793, %v2792
    %v2795 = vmul.f32 %v2794, %v2793
    %v2796 = vmul.f32 0.5, %v2795
    %v2797 = vsub.f32 1.5, %v2796
    %v2798 = vmul.f32 %v2793, %v2797
    %vm2799 = vweird.f32 %v2792
    %vm2800 = vweird.f32 %v2793
    %vm2801 = vmor %vm2799, %vm2800
    %v2802 = vsel %vm2801, %v2793, %v2798
    %v2803 = vmul.f32 %v2787, %v2802
    %v2805 = vperm.slane %v2779, 0
    %v2807 = vmul.f32 %v2803, %v2805
    %v2809 = vperm.slane %v2781, 0
    %v2811 = vadd.f32 %v2807, %v2809
    %2812 = vst [vmem:[#allocation2] sm:$0xff] %v2811
    // Predicated region
    $region78: #{cooperative_interaction_subgraph.1} parent=1 // pred_check
      _
    $region79: #{cooperative_interaction_subgraph.1} parent=1 // pred_check_branch
      %2814 = sbr.rel (0) target = $region81
    $region80: #{cooperative_interaction_subgraph.1} parent=1 // pred_region
      %2816 = vsyncadd [#allocation3], 0
      %s2818 = sshll.u32 [#allocation2], 4
      %s2819 = int_to_ptr.vmem [resolvable:$true] %s2818
      %s2820 = sshll.u32 %s19, 4
      %s2821 = int_to_ptr.hbm [resolvable:$true] %s2820
      %2823 = dma.vmem_to_hbm [thread:$0]  %s2819, 128, %s2821, [#allocation3]
    $region81: #{cooperative_interaction_subgraph.1} parent=1 // pred_fallthru
      _
    // Predicated region
    $region82: #{cooperative_interaction_subgraph.1} parent=1 // pred_check
      _
    $region83: #{cooperative_interaction_subgraph.1} parent=1 // pred_check_branch
      %2825 = sbr.rel (0) target = $region85
    $region84: #{cooperative_interaction_subgraph.1} parent=1 // pred_region
      %2827 = dma.done [#allocation3], 128
    $region85: #{cooperative_interaction_subgraph.1} parent=1 // pred_fallthru
      _
    %2828 = vsyncpa [#allocation3], 1

</llo_original>
